<compile_context>
chip_gen: v7x
topology: tpu7x:2x2x1
jax: 0.10.0
libtpu: 0.0.40
codegen_flags: <defaults>
</compile_context>

<pallas_src>
import functools
import math

import jax
import jax.numpy as jnp
from jax.experimental import pallas as pl
from jax.experimental.pallas import tpu as pltpu

_OUT_LANES = 128  # lane-dense output slab width (>= 2 * top_k)


def _round_up(x, m):
    return (x + m - 1) // m * m


def moe_gate_kernel(x_ref, w_ref, bias_ref, out_ref, *,
                    topk_group, top_k, gs_pad, matmul_dtype):
    # --- gate projection on the MXU (f32 accumulation) --------------------------
    x = x_ref[...].astype(matmul_dtype)                   # in-kernel cast (VPU)
    logits = jnp.dot(x, w_ref[...], preferred_element_type=jnp.float32)
    scores = jax.nn.sigmoid(logits)                       # raw sigmoid scores, f32
    s_choice = scores + bias_ref[...]                     # biased routing scores

    tt, e_pad = s_choice.shape
    neg_inf = jnp.float32(-jnp.inf)
    shift = gs_pad.bit_length() - 1                       # gs_pad is a power of two

    # --- per-group top-2 sum: segmented rotate-and-merge (log2(gs_pad) rolls) ---
    # After merging with lanes +1, +2, ..., +gs_pad/2, the lane at each group's
    # start (pos == 0) holds the top-2 of exactly its own gs_pad-wide group;
    # all other lanes hold cross-group garbage and are masked out below.
    m1, m2 = s_choice, jnp.full_like(s_choice, neg_inf)
    step = 1
    while step < gs_pad:
        r1 = pltpu.roll(m1, shift=e_pad - step, axis=1)   # r1[i] = m1[i + step]
        r2 = pltpu.roll(m2, shift=e_pad - step, axis=1)
        new_m1 = jnp.maximum(m1, r1)
        new_m2 = jnp.maximum(jnp.minimum(m1, r1), jnp.maximum(m2, r2))
        m1, m2 = new_m1, new_m2
        step *= 2

    iota_e = jax.lax.broadcasted_iota(jnp.int32, (tt, e_pad), 1)
    grp_sum = jnp.where((iota_e & (gs_pad - 1)) == 0, m1 + m2, neg_inf)

    # --- keep the topk_group best groups (lower index wins ties) ----------------
    def pick_group(_, carry):
        work, keep = carry
        m = jnp.max(work, axis=-1, keepdims=True)
        a = jnp.min(jnp.where(work == m, iota_e, e_pad), axis=-1, keepdims=True)
        keep = keep | ((iota_e >> shift) == (a >> shift))
        work = jnp.where(iota_e == a, neg_inf, work)
        return work, keep

    _, keep = jax.lax.fori_loop(
        0, topk_group, pick_group,
        (grp_sum, jnp.zeros((tt, e_pad), jnp.bool_)), unroll=True)

    # --- top_k experts among kept groups; pack a lane-dense output slab ---------
    #   lanes [0, top_k)       : raw (unbiased) sigmoid score of pick k
    #   lanes [top_k, 2*top_k) : padded expert index of pick k (stored as f32)
    lane = jax.lax.broadcasted_iota(jnp.int32, (tt, _OUT_LANES), 1)

    def pick_expert(k, carry):
        tmp, slab = carry
        m = jnp.max(tmp, axis=-1, keepdims=True)
        a = jnp.min(jnp.where(tmp == m, iota_e, e_pad), axis=-1, keepdims=True)
        raw = jnp.max(jnp.where(iota_e == a, scores, neg_inf), axis=-1, keepdims=True)
        tmp = jnp.where(iota_e == a, neg_inf, tmp)
        slab = jnp.where(lane == k, raw, slab)
        slab = jnp.where(lane == top_k + k, a.astype(jnp.float32), slab)
        return tmp, slab

    _, slab = jax.lax.fori_loop(
        0, top_k, pick_expert,
        (jnp.where(keep, s_choice, neg_inf),
         jnp.zeros((tt, _OUT_LANES), jnp.float32)), unroll=True)
    out_ref[...] = slab


def moe_gate(hidden_states, weight, e_score_correction_bias, *, top_k, n_group,
             topk_group, norm_topk_prob, routed_scaling_factor,
             token_tile=None, matmul_dtype=jnp.bfloat16):
    """Pallas TPU MoEGate forward. Returns (topk_idx int32, topk_weight f32).

    Indices are int32 (the PyTorch module returns int64).  The gate matmul runs
    in `matmul_dtype` (bf16 default for MXU/HBM throughput; pass jnp.float32 to
    match the module's f32 matmul exactly).
    """
    bsz, seq_len, h = hidden_states.shape
    t = bsz * seq_len
    e = weight.shape[0]
    assert e % n_group == 0, "n_routed_experts must be divisible by n_group"
    gs = e // n_group
    assert 2 * top_k <= _OUT_LANES

    # --- pad each group to a power-of-two width (E_pad = n_group * gs_pad is a
    # 128-lane multiple; at most ~2x inflation, and gid/pos become shifts/ands).
    gs_pad = 1 << max(gs - 1, 0).bit_length()
    while (n_group * gs_pad) % 128 != 0:
        gs_pad *= 2
    e_pad = n_group * gs_pad

    w = jnp.asarray(weight, matmul_dtype)                         # (E, H)
    bias_f32 = jnp.asarray(e_score_correction_bias, jnp.float32)  # (E,)
    if gs_pad != gs:
        w = jnp.pad(w.reshape(n_group, gs, h),
                    ((0, 0), (0, gs_pad - gs), (0, 0))).reshape(e_pad, h)
        bias_p = jnp.pad(bias_f32.reshape(n_group, gs),
                         ((0, 0), (0, gs_pad - gs)),
                         constant_values=-1e30).reshape(e_pad)
    else:
        bias_p = bias_f32
    w_t = w.T                                       # (H, E_pad): experts on lanes
    bias2 = bias_p.reshape(1, e_pad)

    # --- x stays in its native dtype; the cast happens inside the kernel --------
    x = hidden_states.reshape(t, h)

    # --- per-generation tile / VMEM budget ---------------------------------------
    try:
        vmem_cap = int(getattr(pltpu.get_tpu_info(), "vmem_capacity_bytes",
                               64 * 1024 * 1024))
    except Exception:
        vmem_cap = 64 * 1024 * 1024                 # conservative (v7x-sized) default
    vmem_budget = int(vmem_cap * 0.75)              # leave compiler headroom
    if token_tile is None:
        token_tile = 512 if vmem_cap >= 96 * 1024 * 1024 else 256

    x_b = x.dtype.itemsize
    w_b = w_t.dtype.itemsize

    def vmem_est(tl):
        return (2 * tl * h * x_b                    # x, double-buffered
                + 2 * h * e_pad * w_b               # weight (worst case 2 buffers)
                + 2 * e_pad * 4                     # bias
                + 2 * tl * _OUT_LANES * 4           # output slab
                + 8 * tl * e_pad * 4)               # in-kernel f32/i32 working set

    # >= 2 grid steps whenever possible so both v7x TensorCores get work.
    tile = max(8, min(token_tile, _round_up(-(-t // 2), 8)))
    while tile > 8 and vmem_est(tile) > vmem_budget:
        tile = max(8, _round_up(tile // 2, 8))
    vmem_limit = int(min(max(int(vmem_est(tile) * 1.25), 32 * 1024 * 1024),
                         vmem_budget))

    t_pad = _round_up(t, tile)
    if t_pad != t:
        x = jnp.pad(x, ((0, t_pad - t), (0, 0)))

    kernel = functools.partial(
        moe_gate_kernel, topk_group=topk_group, top_k=top_k, gs_pad=gs_pad,
        matmul_dtype=matmul_dtype)

    def _call(single_buffer_consts):
        extra = ({"pipeline_mode": pl.Buffered(1)} if single_buffer_consts else {})
        return pl.pallas_call(
            kernel,
            out_shape=jax.ShapeDtypeStruct((t_pad, _OUT_LANES), jnp.float32),
            grid=(t_pad // tile,),
            in_specs=[
                pl.BlockSpec((tile, h), lambda i: (i, 0)),
                pl.BlockSpec((h, e_pad), lambda i: (0, 0), **extra),  # resident
                pl.BlockSpec((1, e_pad), lambda i: (0, 0), **extra),  # resident
            ],
            out_specs=pl.BlockSpec((tile, _OUT_LANES), lambda i: (i, 0)),
            compiler_params=pltpu.CompilerParams(
                dimension_semantics=("parallel",),
                vmem_limit_bytes=vmem_limit),
        )(x, w_t, bias2)

    try:
        slab = _call(True)     # grid-invariant weight/bias: single-buffered
    except Exception:          # pl.Buffered(1) unsupported -> default buffering
        slab = _call(False)

    # --- tiny (T, top_k) epilogue in plain JAX -----------------------------------
    slab = slab[:t]
    topk_weight = slab[:, :top_k]                           # raw sigmoid scores
    idx_pad = slab[:, top_k:2 * top_k].astype(jnp.int32)    # exact: E_pad << 2^24
    if gs_pad != gs:                                        # undo per-group padding
        topk_idx = (idx_pad // gs_pad) * gs + (idx_pad % gs_pad)
    else:
        topk_idx = idx_pad
    # TODO(synk): degenerate configs (< top_k finite candidates, or a padded
    # expert selected) alias onto real expert ids instead of torch's -inf picks.
    if top_k > 1 and norm_topk_prob:
        topk_weight = topk_weight / (jnp.sum(topk_weight, -1, keepdims=True) + 1e-20)
    topk_weight = topk_weight * jnp.float32(routed_scaling_factor)
    return topk_idx, topk_weight


def ref_moe_gate(hidden_states, weight, bias, *, top_k, n_group, topk_group,
                 norm_topk_prob, routed_scaling_factor, matmul_dtype=jnp.float32):
    """Pure-JAX mirror of the PyTorch forward (matmul in `matmul_dtype`)."""
    bsz, seq_len, h = hidden_states.shape
    t = bsz * seq_len
    x = hidden_states.reshape(t, h).astype(matmul_dtype)
    w = jnp.asarray(weight, matmul_dtype)
    logits = jnp.dot(x, w.T, preferred_element_type=jnp.float32)
    scores = jax.nn.sigmoid(logits)
    sc = scores + jnp.asarray(bias, jnp.float32)[None, :]
    grp = sc.reshape(t, n_group, -1)
    group_scores = jnp.sum(jax.lax.top_k(grp, 2)[0], axis=-1)
    group_idx = jax.lax.top_k(group_scores, topk_group)[1]
    group_mask = jnp.zeros((t, n_group), jnp.float32).at[
        jnp.arange(t)[:, None], group_idx].set(1.0)
    score_mask = jnp.repeat(group_mask, sc.shape[-1] // n_group, axis=-1)
    tmp = jnp.where(score_mask > 0, sc, -jnp.inf)
    _, topk_idx = jax.lax.top_k(tmp, top_k)
    topk_w = jnp.take_along_axis(scores, topk_idx, axis=-1)
    if top_k > 1 and norm_topk_prob:
        topk_w = topk_w / (topk_w.sum(-1, keepdims=True) + 1e-20)
    return topk_idx, topk_w * routed_scaling_factor


if __name__ == "__main__":
    # Config: hidden_size=32, n_routed_experts=8, n_group=4, topk_group=2,
    #         num_experts_per_tok=2, norm_topk_prob=True, routed_scaling_factor=2.5
    bsz, seq, H = 2, 64, 32
    E, n_group, topk_group, top_k = 8, 4, 2, 2
    scale = 2.5

    key = jax.random.PRNGKey(0)
    k_x, k_w, k_b = jax.random.split(key, 3)
    hidden = jax.random.normal(k_x, (bsz, seq, H), jnp.float32)
    bound = 1.0 / math.sqrt(H)     # kaiming_uniform_(a=sqrt(5)) on (E, H)
    weight = jax.random.uniform(k_w, (E, H), jnp.float32, -bound, bound)
    corr_bias = 0.01 * jax.random.normal(k_b, (E,), jnp.float32)

    for mdt in (jnp.bfloat16, jnp.float32):
        idx, wts = moe_gate(
            hidden, weight, corr_bias,
            top_k=top_k, n_group=n_group, topk_group=topk_group,
            norm_topk_prob=True, routed_scaling_factor=scale, matmul_dtype=mdt)
        jax.block_until_ready((idx, wts))

        ridx, rwts = ref_moe_gate(
            hidden, weight, corr_bias,
            top_k=top_k, n_group=n_group, topk_group=topk_group,
            norm_topk_prob=True, routed_scaling_factor=scale, matmul_dtype=mdt)
        assert jnp.array_equal(idx, ridx), f"topk_idx mismatch ({mdt})"
        assert jnp.allclose(wts, rwts, atol=1e-5, rtol=1e-5), f"topk_weight mismatch ({mdt})"

    print("KERNEL_OK")
</pallas_src>

<mosaic_0001>
module attributes {stable_mosaic.version = 11 : i64} {
  func.func @moe_gate_kernel(%arg0: i32, %arg1: memref<64x32xf32, #tpu.memory_space<vmem>>, %arg2: memref<32x128xbf16, #tpu.memory_space<vmem>>, %arg3: memref<1x128xf32, #tpu.memory_space<vmem>>, %arg4: memref<64x128xf32, #tpu.memory_space<vmem>>) attributes {dimension_semantics = [#tpu.dimension_semantics<parallel>], iteration_bounds = array<i64: 2>, scalar_prefetch = 0 : i64, scratch_operands = 0 : i64, tpu.core_type = #tpu.core_type<tc>, window_params = [{transform_indices = @transform_0, window_bounds = array<i64: 64, 32>}, {pipeline_mode = #tpu.pipeline_mode<synchronous>, transform_indices = @transform_1, window_bounds = array<i64: 32, 128>}, {pipeline_mode = #tpu.pipeline_mode<synchronous>, transform_indices = @transform_2, window_bounds = array<i64: 1, 128>}, {transform_indices = @transform_3, window_bounds = array<i64: 64, 128>}]} {
    %c0 = arith.constant 0 : index
    %c0_0 = arith.constant 0 : index
    %0 = vector.load %arg1[%c0, %c0_0] : memref<64x32xf32, #tpu.memory_space<vmem>>, vector<64x32xf32>
    %1 = arith.truncf %0 : vector<64x32xf32> to vector<64x32xbf16>
    %c0_1 = arith.constant 0 : index
    %c0_2 = arith.constant 0 : index
    %2 = vector.load %arg2[%c0_1, %c0_2] : memref<32x128xbf16, #tpu.memory_space<vmem>>, vector<32x128xbf16>
    %cst = arith.constant dense<0.000000e+00> : vector<64x128xf32>
    %3 = tpu.matmul %1, %2, %cst {dimension_numbers = #tpu.dot_dimension_numbers<[1], [0], [0], [1], [0, 0, 1, 1], [], []>} : vector<64x32xbf16>, vector<32x128xbf16>, vector<64x128xf32> -> vector<64x128xf32>
    %4 = arith.negf %3 : vector<64x128xf32>
    %5 = math.exp %4 : vector<64x128xf32>
    %cst_3 = arith.constant 1.000000e+00 : f32
    %6 = vector.broadcast %cst_3 : f32 to vector<64x128xf32>
    %7 = arith.addf %6, %5 : vector<64x128xf32>
    %8 = arith.divf %6, %7 : vector<64x128xf32>
    %c0_4 = arith.constant 0 : index
    %c0_5 = arith.constant 0 : index
    %9 = vector.load %arg3[%c0_4, %c0_5] : memref<1x128xf32, #tpu.memory_space<vmem>>, vector<1x128xf32>
    %10 = vector.broadcast %9 : vector<1x128xf32> to vector<64x128xf32>
    %11 = arith.addf %8, %10 : vector<64x128xf32>
    %cst_6 = arith.constant 0xFF800000 : f32
    %12 = vector.broadcast %cst_6 : f32 to vector<64x128xf32>
    %c127_i32 = arith.constant 127 : i32
    %13 = tpu.dynamic_rotate %11 by %c127_i32 dim 1 : vector<64x128xf32>, i32 -> vector<64x128xf32>
    %c127_i32_7 = arith.constant 127 : i32
    %14 = tpu.dynamic_rotate %12 by %c127_i32_7 dim 1 : vector<64x128xf32>, i32 -> vector<64x128xf32>
    %15 = arith.maximumf %11, %13 : vector<64x128xf32>
    %16 = arith.minimumf %11, %13 : vector<64x128xf32>
    %17 = arith.maximumf %12, %14 : vector<64x128xf32>
    %18 = arith.maximumf %16, %17 : vector<64x128xf32>
    %c126_i32 = arith.constant 126 : i32
    %19 = tpu.dynamic_rotate %15 by %c126_i32 dim 1 : vector<64x128xf32>, i32 -> vector<64x128xf32>
    %c126_i32_8 = arith.constant 126 : i32
    %20 = tpu.dynamic_rotate %18 by %c126_i32_8 dim 1 : vector<64x128xf32>, i32 -> vector<64x128xf32>
    %21 = arith.maximumf %15, %19 : vector<64x128xf32>
    %22 = arith.minimumf %15, %19 : vector<64x128xf32>
    %23 = arith.maximumf %18, %20 : vector<64x128xf32>
    %24 = arith.maximumf %22, %23 : vector<64x128xf32>
    %c124_i32 = arith.constant 124 : i32
    %25 = tpu.dynamic_rotate %21 by %c124_i32 dim 1 : vector<64x128xf32>, i32 -> vector<64x128xf32>
    %c124_i32_9 = arith.constant 124 : i32
    %26 = tpu.dynamic_rotate %24 by %c124_i32_9 dim 1 : vector<64x128xf32>, i32 -> vector<64x128xf32>
    %27 = arith.maximumf %21, %25 : vector<64x128xf32>
    %28 = arith.minimumf %21, %25 : vector<64x128xf32>
    %29 = arith.maximumf %24, %26 : vector<64x128xf32>
    %30 = arith.maximumf %28, %29 : vector<64x128xf32>
    %c120_i32 = arith.constant 120 : i32
    %31 = tpu.dynamic_rotate %27 by %c120_i32 dim 1 : vector<64x128xf32>, i32 -> vector<64x128xf32>
    %c120_i32_10 = arith.constant 120 : i32
    %32 = tpu.dynamic_rotate %30 by %c120_i32_10 dim 1 : vector<64x128xf32>, i32 -> vector<64x128xf32>
    %33 = arith.maximumf %27, %31 : vector<64x128xf32>
    %34 = arith.minimumf %27, %31 : vector<64x128xf32>
    %35 = arith.maximumf %30, %32 : vector<64x128xf32>
    %36 = arith.maximumf %34, %35 : vector<64x128xf32>
    %c112_i32 = arith.constant 112 : i32
    %37 = tpu.dynamic_rotate %33 by %c112_i32 dim 1 : vector<64x128xf32>, i32 -> vector<64x128xf32>
    %c112_i32_11 = arith.constant 112 : i32
    %38 = tpu.dynamic_rotate %36 by %c112_i32_11 dim 1 : vector<64x128xf32>, i32 -> vector<64x128xf32>
    %39 = arith.maximumf %33, %37 : vector<64x128xf32>
    %40 = arith.minimumf %33, %37 : vector<64x128xf32>
    %41 = arith.maximumf %36, %38 : vector<64x128xf32>
    %42 = arith.maximumf %40, %41 : vector<64x128xf32>
    %43 = tpu.iota {dimensions = array<i32: 1>} : vector<64x128xi32>
    %c31_i32 = arith.constant 31 : i32
    %44 = vector.broadcast %c31_i32 : i32 to vector<64x128xi32>
    %45 = arith.andi %43, %44 : vector<64x128xi32>
    %c0_i32 = arith.constant 0 : i32
    %46 = vector.broadcast %c0_i32 : i32 to vector<64x128xi32>
    %47 = arith.cmpi eq, %45, %46 : vector<64x128xi32>
    %48 = arith.addf %39, %42 : vector<64x128xf32>
    %cst_12 = arith.constant 0xFF800000 : f32
    %49 = vector.broadcast %cst_12 : f32 to vector<64x128xf32>
    %50 = arith.select %47, %48, %49 : vector<64x128xi1>, vector<64x128xf32>
    %false = arith.constant false
    %51 = vector.broadcast %false : i1 to vector<64x128xi1>
    %cst_13 = arith.constant 0xFF800000 : f32
    %c0_i32_14 = arith.constant 0 : i32
    %cst_15 = arith.constant dense<0xFF800000> : vector<64xf32>
    %52 = vector.multi_reduction <maximumf>, %50, %cst_15 [1] : vector<64x128xf32> to vector<64xf32>
    %53 = vector.shape_cast %52 : vector<64xf32> to vector<64x1xf32>
    %54 = vector.broadcast %53 : vector<64x1xf32> to vector<64x128xf32>
    %55 = arith.cmpf oeq, %50, %54 : vector<64x128xf32>
    %c128_i32 = arith.constant 128 : i32
    %56 = vector.broadcast %c128_i32 : i32 to vector<64x128xi32>
    %57 = arith.select %55, %43, %56 : vector<64x128xi1>, vector<64x128xi32>
    %cst_16 = arith.constant dense<2147483647> : vector<64xi32>
    %58 = vector.multi_reduction <minsi>, %57, %cst_16 [1] : vector<64x128xi32> to vector<64xi32>
    %59 = vector.shape_cast %58 : vector<64xi32> to vector<64x1xi32>
    %c5_i32 = arith.constant 5 : i32
    %60 = vector.broadcast %c5_i32 : i32 to vector<64x128xi32>
    %61 = arith.shrsi %43, %60 : vector<64x128xi32>
    %c5_i32_17 = arith.constant 5 : i32
    %62 = vector.broadcast %c5_i32_17 : i32 to vector<64x1xi32>
    %63 = arith.shrsi %59, %62 : vector<64x1xi32>
    %64 = vector.broadcast %63 : vector<64x1xi32> to vector<64x128xi32>
    %65 = arith.cmpi eq, %61, %64 : vector<64x128xi32>
    %66 = arith.ori %51, %65 : vector<64x128xi1>
    %67 = vector.broadcast %59 : vector<64x1xi32> to vector<64x128xi32>
    %68 = arith.cmpi eq, %43, %67 : vector<64x128xi32>
    %69 = vector.broadcast %cst_13 : f32 to vector<64x128xf32>
    %70 = arith.select %68, %69, %50 : vector<64x128xi1>, vector<64x128xf32>
    %c1_i32 = arith.constant 1 : i32
    %cst_18 = arith.constant dense<0xFF800000> : vector<64xf32>
    %71 = vector.multi_reduction <maximumf>, %70, %cst_18 [1] : vector<64x128xf32> to vector<64xf32>
    %72 = vector.shape_cast %71 : vector<64xf32> to vector<64x1xf32>
    %73 = vector.broadcast %72 : vector<64x1xf32> to vector<64x128xf32>
    %74 = arith.cmpf oeq, %70, %73 : vector<64x128xf32>
    %c128_i32_19 = arith.constant 128 : i32
    %75 = vector.broadcast %c128_i32_19 : i32 to vector<64x128xi32>
    %76 = arith.select %74, %43, %75 : vector<64x128xi1>, vector<64x128xi32>
    %cst_20 = arith.constant dense<2147483647> : vector<64xi32>
    %77 = vector.multi_reduction <minsi>, %76, %cst_20 [1] : vector<64x128xi32> to vector<64xi32>
    %78 = vector.shape_cast %77 : vector<64xi32> to vector<64x1xi32>
    %c5_i32_21 = arith.constant 5 : i32
    %79 = vector.broadcast %c5_i32_21 : i32 to vector<64x128xi32>
    %80 = arith.shrsi %43, %79 : vector<64x128xi32>
    %c5_i32_22 = arith.constant 5 : i32
    %81 = vector.broadcast %c5_i32_22 : i32 to vector<64x1xi32>
    %82 = arith.shrsi %78, %81 : vector<64x1xi32>
    %83 = vector.broadcast %82 : vector<64x1xi32> to vector<64x128xi32>
    %84 = arith.cmpi eq, %80, %83 : vector<64x128xi32>
    %85 = arith.ori %66, %84 : vector<64x128xi1>
    %86 = vector.broadcast %78 : vector<64x1xi32> to vector<64x128xi32>
    %87 = arith.cmpi eq, %43, %86 : vector<64x128xi32>
    %88 = vector.broadcast %cst_13 : f32 to vector<64x128xf32>
    %89 = arith.select %87, %88, %70 : vector<64x128xi1>, vector<64x128xf32>
    %90 = tpu.iota {dimensions = array<i32: 1>} : vector<64x128xi32>
    %cst_23 = arith.constant 0xFF800000 : f32
    %91 = vector.broadcast %cst_23 : f32 to vector<64x128xf32>
    %92 = arith.select %85, %11, %91 : vector<64x128xi1>, vector<64x128xf32>
    %cst_24 = arith.constant 0.000000e+00 : f32
    %93 = vector.broadcast %cst_24 : f32 to vector<64x128xf32>
    %cst_25 = arith.constant 0xFF800000 : f32
    %c0_i32_26 = arith.constant 0 : i32
    %cst_27 = arith.constant dense<0xFF800000> : vector<64xf32>
    %94 = vector.multi_reduction <maximumf>, %92, %cst_27 [1] : vector<64x128xf32> to vector<64xf32>
    %95 = vector.shape_cast %94 : vector<64xf32> to vector<64x1xf32>
    %96 = vector.broadcast %95 : vector<64x1xf32> to vector<64x128xf32>
    %97 = arith.cmpf oeq, %92, %96 : vector<64x128xf32>
    %c128_i32_28 = arith.constant 128 : i32
    %98 = vector.broadcast %c128_i32_28 : i32 to vector<64x128xi32>
    %99 = arith.select %97, %43, %98 : vector<64x128xi1>, vector<64x128xi32>
    %cst_29 = arith.constant dense<2147483647> : vector<64xi32>
    %100 = vector.multi_reduction <minsi>, %99, %cst_29 [1] : vector<64x128xi32> to vector<64xi32>
    %101 = vector.shape_cast %100 : vector<64xi32> to vector<64x1xi32>
    %102 = vector.broadcast %101 : vector<64x1xi32> to vector<64x128xi32>
    %103 = arith.cmpi eq, %43, %102 : vector<64x128xi32>
    %104 = vector.broadcast %cst_25 : f32 to vector<64x128xf32>
    %105 = arith.select %103, %8, %104 : vector<64x128xi1>, vector<64x128xf32>
    %cst_30 = arith.constant dense<0xFF800000> : vector<64xf32>
    %106 = vector.multi_reduction <maximumf>, %105, %cst_30 [1] : vector<64x128xf32> to vector<64xf32>
    %107 = vector.shape_cast %106 : vector<64xf32> to vector<64x1xf32>
    %108 = vector.broadcast %101 : vector<64x1xi32> to vector<64x128xi32>
    %109 = arith.cmpi eq, %43, %108 : vector<64x128xi32>
    %110 = vector.broadcast %cst_25 : f32 to vector<64x128xf32>
    %111 = arith.select %109, %110, %92 : vector<64x128xi1>, vector<64x128xf32>
    %112 = vector.broadcast %c0_i32_26 : i32 to vector<64x128xi32>
    %113 = arith.cmpi eq, %90, %112 : vector<64x128xi32>
    %114 = vector.shape_cast %107 : vector<64x1xf32> to vector<64x1xf32>
    %115 = vector.broadcast %114 : vector<64x1xf32> to vector<64x128xf32>
    %116 = arith.select %113, %115, %93 : vector<64x128xi1>, vector<64x128xf32>
    %c2_i32 = arith.constant 2 : i32
    %117 = arith.addi %c2_i32, %c0_i32_26 : i32
    %118 = vector.broadcast %117 : i32 to vector<64x128xi32>
    %119 = arith.cmpi eq, %90, %118 : vector<64x128xi32>
    %120 = arith.sitofp %101 : vector<64x1xi32> to vector<64x1xf32>
    %121 = vector.shape_cast %120 : vector<64x1xf32> to vector<64x1xf32>
    %122 = vector.broadcast %121 : vector<64x1xf32> to vector<64x128xf32>
    %123 = arith.select %119, %122, %116 : vector<64x128xi1>, vector<64x128xf32>
    %c1_i32_31 = arith.constant 1 : i32
    %cst_32 = arith.constant dense<0xFF800000> : vector<64xf32>
    %124 = vector.multi_reduction <maximumf>, %111, %cst_32 [1] : vector<64x128xf32> to vector<64xf32>
    %125 = vector.shape_cast %124 : vector<64xf32> to vector<64x1xf32>
    %126 = vector.broadcast %125 : vector<64x1xf32> to vector<64x128xf32>
    %127 = arith.cmpf oeq, %111, %126 : vector<64x128xf32>
    %c128_i32_33 = arith.constant 128 : i32
    %128 = vector.broadcast %c128_i32_33 : i32 to vector<64x128xi32>
    %129 = arith.select %127, %43, %128 : vector<64x128xi1>, vector<64x128xi32>
    %cst_34 = arith.constant dense<2147483647> : vector<64xi32>
    %130 = vector.multi_reduction <minsi>, %129, %cst_34 [1] : vector<64x128xi32> to vector<64xi32>
    %131 = vector.shape_cast %130 : vector<64xi32> to vector<64x1xi32>
    %132 = vector.broadcast %131 : vector<64x1xi32> to vector<64x128xi32>
    %133 = arith.cmpi eq, %43, %132 : vector<64x128xi32>
    %134 = vector.broadcast %cst_25 : f32 to vector<64x128xf32>
    %135 = arith.select %133, %8, %134 : vector<64x128xi1>, vector<64x128xf32>
    %cst_35 = arith.constant dense<0xFF800000> : vector<64xf32>
    %136 = vector.multi_reduction <maximumf>, %135, %cst_35 [1] : vector<64x128xf32> to vector<64xf32>
    %137 = vector.shape_cast %136 : vector<64xf32> to vector<64x1xf32>
    %138 = vector.broadcast %131 : vector<64x1xi32> to vector<64x128xi32>
    %139 = arith.cmpi eq, %43, %138 : vector<64x128xi32>
    %140 = vector.broadcast %cst_25 : f32 to vector<64x128xf32>
    %141 = arith.select %139, %140, %111 : vector<64x128xi1>, vector<64x128xf32>
    %142 = vector.broadcast %c1_i32_31 : i32 to vector<64x128xi32>
    %143 = arith.cmpi eq, %90, %142 : vector<64x128xi32>
    %144 = vector.shape_cast %137 : vector<64x1xf32> to vector<64x1xf32>
    %145 = vector.broadcast %144 : vector<64x1xf32> to vector<64x128xf32>
    %146 = arith.select %143, %145, %123 : vector<64x128xi1>, vector<64x128xf32>
    %c2_i32_36 = arith.constant 2 : i32
    %147 = arith.addi %c2_i32_36, %c1_i32_31 : i32
    %148 = vector.broadcast %147 : i32 to vector<64x128xi32>
    %149 = arith.cmpi eq, %90, %148 : vector<64x128xi32>
    %150 = arith.sitofp %131 : vector<64x1xi32> to vector<64x1xf32>
    %151 = vector.shape_cast %150 : vector<64x1xf32> to vector<64x1xf32>
    %152 = vector.broadcast %151 : vector<64x1xf32> to vector<64x128xf32>
    %153 = arith.select %149, %152, %146 : vector<64x128xi1>, vector<64x128xf32>
    %c2_i32_37 = arith.constant 2 : i32
    %c0_38 = arith.constant 0 : index
    %c0_39 = arith.constant 0 : index
    %154 = vector.load %arg4[%c0_38, %c0_39] : memref<64x128xf32, #tpu.memory_space<vmem>>, vector<64x128xf32>
    tpu.vector_store %arg4[%c0_38, %c0_39], %153 {strides = array<i32>} : memref<64x128xf32, #tpu.memory_space<vmem>>, vector<64x128xf32>,
    return
  }
  func.func @transform_0(%arg0: i32) -> (i32, i32) {
    %c0_i32 = arith.constant 0 : i32
    %c0_i32_0 = arith.constant 0 : i32
    return %arg0, %c0_i32 : i32, i32
  }
  func.func @transform_1(%arg0: i32) -> (i32, i32) {
    %c0_i32 = arith.constant 0 : i32
    %c0_i32_0 = arith.constant 0 : i32
    %c0_i32_1 = arith.constant 0 : i32
    return %c0_i32, %c0_i32_0 : i32, i32
  }
  func.func @transform_2(%arg0: i32) -> (i32, i32) {
    %c0_i32 = arith.constant 0 : i32
    %c0_i32_0 = arith.constant 0 : i32
    %c0_i32_1 = arith.constant 0 : i32
    return %c0_i32, %c0_i32_0 : i32, i32
  }
  func.func @transform_3(%arg0: i32) -> (i32, i32) {
    %c0_i32 = arith.constant 0 : i32
    %c0_i32_0 = arith.constant 0 : i32
    return %arg0, %c0_i32 : i32, i32
  }
}

module attributes {stable_mosaic.version = 11 : i64} {
  func.func @moe_gate_kernel(%arg0: i32, %arg1: memref<64x32xf32, #tpu.memory_space<vmem>>, %arg2: memref<32x128xbf16, #tpu.memory_space<vmem>>, %arg3: memref<1x128xf32, #tpu.memory_space<vmem>>, %arg4: memref<64x128xf32, #tpu.memory_space<vmem>>) attributes {dimension_semantics = [#tpu.dimension_semantics<parallel>], iteration_bounds = array<i64: 2>, scalar_prefetch = 0 : i64, scratch_operands = 0 : i64, tpu.core_type = #tpu.core_type<tc>, window_params = [{transform_indices = @transform_0, window_bounds = array<i64: 64, 32>}, {pipeline_mode = #tpu.pipeline_mode<synchronous>, transform_indices = @transform_1, window_bounds = array<i64: 32, 128>}, {pipeline_mode = #tpu.pipeline_mode<synchronous>, transform_indices = @transform_2, window_bounds = array<i64: 1, 128>}, {transform_indices = @transform_3, window_bounds = array<i64: 64, 128>}]} {
    %c0 = arith.constant 0 : index
    %c0_0 = arith.constant 0 : index
    %0 = vector.load %arg1[%c0, %c0_0] : memref<64x32xf32, #tpu.memory_space<vmem>>, vector<64x32xf32>
    %1 = arith.truncf %0 : vector<64x32xf32> to vector<64x32xbf16>
    %c0_1 = arith.constant 0 : index
    %c0_2 = arith.constant 0 : index
    %2 = vector.load %arg2[%c0_1, %c0_2] : memref<32x128xbf16, #tpu.memory_space<vmem>>, vector<32x128xbf16>
    %cst = arith.constant dense<0.000000e+00> : vector<64x128xf32>
    %3 = tpu.matmul %1, %2, %cst {dimension_numbers = #tpu.dot_dimension_numbers<[1], [0], [0], [1], [0, 0, 1, 1], [], []>} : vector<64x32xbf16>, vector<32x128xbf16>, vector<64x128xf32> -> vector<64x128xf32>
    %4 = arith.negf %3 : vector<64x128xf32>
    %5 = math.exp %4 : vector<64x128xf32>
    %cst_3 = arith.constant 1.000000e+00 : f32
    %6 = vector.broadcast %cst_3 : f32 to vector<64x128xf32>
    %7 = arith.addf %6, %5 : vector<64x128xf32>
    %8 = arith.divf %6, %7 : vector<64x128xf32>
    %c0_4 = arith.constant 0 : index
    %c0_5 = arith.constant 0 : index
    %9 = vector.load %arg3[%c0_4, %c0_5] : memref<1x128xf32, #tpu.memory_space<vmem>>, vector<1x128xf32>
    %10 = vector.broadcast %9 : vector<1x128xf32> to vector<64x128xf32>
    %11 = arith.addf %8, %10 : vector<64x128xf32>
    %cst_6 = arith.constant 0xFF800000 : f32
    %12 = vector.broadcast %cst_6 : f32 to vector<64x128xf32>
    %c127_i32 = arith.constant 127 : i32
    %13 = tpu.dynamic_rotate %11 by %c127_i32 dim 1 : vector<64x128xf32>, i32 -> vector<64x128xf32>
    %c127_i32_7 = arith.constant 127 : i32
    %14 = tpu.dynamic_rotate %12 by %c127_i32_7 dim 1 : vector<64x128xf32>, i32 -> vector<64x128xf32>
    %15 = arith.maximumf %11, %13 : vector<64x128xf32>
    %16 = arith.minimumf %11, %13 : vector<64x128xf32>
    %17 = arith.maximumf %12, %14 : vector<64x128xf32>
    %18 = arith.maximumf %16, %17 : vector<64x128xf32>
    %c126_i32 = arith.constant 126 : i32
    %19 = tpu.dynamic_rotate %15 by %c126_i32 dim 1 : vector<64x128xf32>, i32 -> vector<64x128xf32>
    %c126_i32_8 = arith.constant 126 : i32
    %20 = tpu.dynamic_rotate %18 by %c126_i32_8 dim 1 : vector<64x128xf32>, i32 -> vector<64x128xf32>
    %21 = arith.maximumf %15, %19 : vector<64x128xf32>
    %22 = arith.minimumf %15, %19 : vector<64x128xf32>
    %23 = arith.maximumf %18, %20 : vector<64x128xf32>
    %24 = arith.maximumf %22, %23 : vector<64x128xf32>
    %c124_i32 = arith.constant 124 : i32
    %25 = tpu.dynamic_rotate %21 by %c124_i32 dim 1 : vector<64x128xf32>, i32 -> vector<64x128xf32>
    %c124_i32_9 = arith.constant 124 : i32
    %26 = tpu.dynamic_rotate %24 by %c124_i32_9 dim 1 : vector<64x128xf32>, i32 -> vector<64x128xf32>
    %27 = arith.maximumf %21, %25 : vector<64x128xf32>
    %28 = arith.minimumf %21, %25 : vector<64x128xf32>
    %29 = arith.maximumf %24, %26 : vector<64x128xf32>
    %30 = arith.maximumf %28, %29 : vector<64x128xf32>
    %c120_i32 = arith.constant 120 : i32
    %31 = tpu.dynamic_rotate %27 by %c120_i32 dim 1 : vector<64x128xf32>, i32 -> vector<64x128xf32>
    %c120_i32_10 = arith.constant 120 : i32
    %32 = tpu.dynamic_rotate %30 by %c120_i32_10 dim 1 : vector<64x128xf32>, i32 -> vector<64x128xf32>
    %33 = arith.maximumf %27, %31 : vector<64x128xf32>
    %34 = arith.minimumf %27, %31 : vector<64x128xf32>
    %35 = arith.maximumf %30, %32 : vector<64x128xf32>
    %36 = arith.maximumf %34, %35 : vector<64x128xf32>
    %c112_i32 = arith.constant 112 : i32
    %37 = tpu.dynamic_rotate %33 by %c112_i32 dim 1 : vector<64x128xf32>, i32 -> vector<64x128xf32>
    %c112_i32_11 = arith.constant 112 : i32
    %38 = tpu.dynamic_rotate %36 by %c112_i32_11 dim 1 : vector<64x128xf32>, i32 -> vector<64x128xf32>
    %39 = arith.maximumf %33, %37 : vector<64x128xf32>
    %40 = arith.minimumf %33, %37 : vector<64x128xf32>
    %41 = arith.maximumf %36, %38 : vector<64x128xf32>
    %42 = arith.maximumf %40, %41 : vector<64x128xf32>
    %43 = tpu.iota {dimensions = array<i32: 1>} : vector<64x128xi32>
    %c31_i32 = arith.constant 31 : i32
    %44 = vector.broadcast %c31_i32 : i32 to vector<64x128xi32>
    %45 = arith.andi %43, %44 : vector<64x128xi32>
    %c0_i32 = arith.constant 0 : i32
    %46 = vector.broadcast %c0_i32 : i32 to vector<64x128xi32>
    %47 = arith.cmpi eq, %45, %46 : vector<64x128xi32>
    %48 = arith.addf %39, %42 : vector<64x128xf32>
    %cst_12 = arith.constant 0xFF800000 : f32
    %49 = vector.broadcast %cst_12 : f32 to vector<64x128xf32>
    %50 = arith.select %47, %48, %49 : vector<64x128xi1>, vector<64x128xf32>
    %false = arith.constant false
    %51 = vector.broadcast %false : i1 to vector<64x128xi1>
    %cst_13 = arith.constant 0xFF800000 : f32
    %c0_i32_14 = arith.constant 0 : i32
    %cst_15 = arith.constant dense<0xFF800000> : vector<64xf32>
    %52 = vector.multi_reduction <maximumf>, %50, %cst_15 [1] : vector<64x128xf32> to vector<64xf32>
    %53 = vector.shape_cast %52 : vector<64xf32> to vector<64x1xf32>
    %54 = vector.broadcast %53 : vector<64x1xf32> to vector<64x128xf32>
    %55 = arith.cmpf oeq, %50, %54 : vector<64x128xf32>
    %c128_i32 = arith.constant 128 : i32
    %56 = vector.broadcast %c128_i32 : i32 to vector<64x128xi32>
    %57 = arith.select %55, %43, %56 : vector<64x128xi1>, vector<64x128xi32>
    %cst_16 = arith.constant dense<2147483647> : vector<64xi32>
    %58 = vector.multi_reduction <minsi>, %57, %cst_16 [1] : vector<64x128xi32> to vector<64xi32>
    %59 = vector.shape_cast %58 : vector<64xi32> to vector<64x1xi32>
    %c5_i32 = arith.constant 5 : i32
    %60 = vector.broadcast %c5_i32 : i32 to vector<64x128xi32>
    %61 = arith.shrsi %43, %60 : vector<64x128xi32>
    %c5_i32_17 = arith.constant 5 : i32
    %62 = vector.broadcast %c5_i32_17 : i32 to vector<64x1xi32>
    %63 = arith.shrsi %59, %62 : vector<64x1xi32>
    %64 = vector.broadcast %63 : vector<64x1xi32> to vector<64x128xi32>
    %65 = arith.cmpi eq, %61, %64 : vector<64x128xi32>
    %66 = arith.ori %51, %65 : vector<64x128xi1>
    %67 = vector.broadcast %59 : vector<64x1xi32> to vector<64x128xi32>
    %68 = arith.cmpi eq, %43, %67 : vector<64x128xi32>
    %69 = vector.broadcast %cst_13 : f32 to vector<64x128xf32>
    %70 = arith.select %68, %69, %50 : vector<64x128xi1>, vector<64x128xf32>
    %c1_i32 = arith.constant 1 : i32
    %cst_18 = arith.constant dense<0xFF800000> : vector<64xf32>
    %71 = vector.multi_reduction <maximumf>, %70, %cst_18 [1] : vector<64x128xf32> to vector<64xf32>
    %72 = vector.shape_cast %71 : vector<64xf32> to vector<64x1xf32>
    %73 = vector.broadcast %72 : vector<64x1xf32> to vector<64x128xf32>
    %74 = arith.cmpf oeq, %70, %73 : vector<64x128xf32>
    %c128_i32_19 = arith.constant 128 : i32
    %75 = vector.broadcast %c128_i32_19 : i32 to vector<64x128xi32>
    %76 = arith.select %74, %43, %75 : vector<64x128xi1>, vector<64x128xi32>
    %cst_20 = arith.constant dense<2147483647> : vector<64xi32>
    %77 = vector.multi_reduction <minsi>, %76, %cst_20 [1] : vector<64x128xi32> to vector<64xi32>
    %78 = vector.shape_cast %77 : vector<64xi32> to vector<64x1xi32>
    %c5_i32_21 = arith.constant 5 : i32
    %79 = vector.broadcast %c5_i32_21 : i32 to vector<64x128xi32>
    %80 = arith.shrsi %43, %79 : vector<64x128xi32>
    %c5_i32_22 = arith.constant 5 : i32
    %81 = vector.broadcast %c5_i32_22 : i32 to vector<64x1xi32>
    %82 = arith.shrsi %78, %81 : vector<64x1xi32>
    %83 = vector.broadcast %82 : vector<64x1xi32> to vector<64x128xi32>
    %84 = arith.cmpi eq, %80, %83 : vector<64x128xi32>
    %85 = arith.ori %66, %84 : vector<64x128xi1>
    %86 = vector.broadcast %78 : vector<64x1xi32> to vector<64x128xi32>
    %87 = arith.cmpi eq, %43, %86 : vector<64x128xi32>
    %88 = vector.broadcast %cst_13 : f32 to vector<64x128xf32>
    %89 = arith.select %87, %88, %70 : vector<64x128xi1>, vector<64x128xf32>
    %90 = tpu.iota {dimensions = array<i32: 1>} : vector<64x128xi32>
    %cst_23 = arith.constant 0xFF800000 : f32
    %91 = vector.broadcast %cst_23 : f32 to vector<64x128xf32>
    %92 = arith.select %85, %11, %91 : vector<64x128xi1>, vector<64x128xf32>
    %cst_24 = arith.constant 0.000000e+00 : f32
    %93 = vector.broadcast %cst_24 : f32 to vector<64x128xf32>
    %cst_25 = arith.constant 0xFF800000 : f32
    %c0_i32_26 = arith.constant 0 : i32
    %cst_27 = arith.constant dense<0xFF800000> : vector<64xf32>
    %94 = vector.multi_reduction <maximumf>, %92, %cst_27 [1] : vector<64x128xf32> to vector<64xf32>
    %95 = vector.shape_cast %94 : vector<64xf32> to vector<64x1xf32>
    %96 = vector.broadcast %95 : vector<64x1xf32> to vector<64x128xf32>
    %97 = arith.cmpf oeq, %92, %96 : vector<64x128xf32>
    %c128_i32_28 = arith.constant 128 : i32
    %98 = vector.broadcast %c128_i32_28 : i32 to vector<64x128xi32>
    %99 = arith.select %97, %43, %98 : vector<64x128xi1>, vector<64x128xi32>
    %cst_29 = arith.constant dense<2147483647> : vector<64xi32>
    %100 = vector.multi_reduction <minsi>, %99, %cst_29 [1] : vector<64x128xi32> to vector<64xi32>
    %101 = vector.shape_cast %100 : vector<64xi32> to vector<64x1xi32>
    %102 = vector.broadcast %101 : vector<64x1xi32> to vector<64x128xi32>
    %103 = arith.cmpi eq, %43, %102 : vector<64x128xi32>
    %104 = vector.broadcast %cst_25 : f32 to vector<64x128xf32>
    %105 = arith.select %103, %8, %104 : vector<64x128xi1>, vector<64x128xf32>
    %cst_30 = arith.constant dense<0xFF800000> : vector<64xf32>
    %106 = vector.multi_reduction <maximumf>, %105, %cst_30 [1] : vector<64x128xf32> to vector<64xf32>
    %107 = vector.shape_cast %106 : vector<64xf32> to vector<64x1xf32>
    %108 = vector.broadcast %101 : vector<64x1xi32> to vector<64x128xi32>
    %109 = arith.cmpi eq, %43, %108 : vector<64x128xi32>
    %110 = vector.broadcast %cst_25 : f32 to vector<64x128xf32>
    %111 = arith.select %109, %110, %92 : vector<64x128xi1>, vector<64x128xf32>
    %112 = vector.broadcast %c0_i32_26 : i32 to vector<64x128xi32>
    %113 = arith.cmpi eq, %90, %112 : vector<64x128xi32>
    %114 = vector.shape_cast %107 : vector<64x1xf32> to vector<64x1xf32>
    %115 = vector.broadcast %114 : vector<64x1xf32> to vector<64x128xf32>
    %116 = arith.select %113, %115, %93 : vector<64x128xi1>, vector<64x128xf32>
    %c2_i32 = arith.constant 2 : i32
    %117 = arith.addi %c2_i32, %c0_i32_26 : i32
    %118 = vector.broadcast %117 : i32 to vector<64x128xi32>
    %119 = arith.cmpi eq, %90, %118 : vector<64x128xi32>
    %120 = arith.sitofp %101 : vector<64x1xi32> to vector<64x1xf32>
    %121 = vector.shape_cast %120 : vector<64x1xf32> to vector<64x1xf32>
    %122 = vector.broadcast %121 : vector<64x1xf32> to vector<64x128xf32>
    %123 = arith.select %119, %122, %116 : vector<64x128xi1>, vector<64x128xf32>
    %c1_i32_31 = arith.constant 1 : i32
    %cst_32 = arith.constant dense<0xFF800000> : vector<64xf32>
    %124 = vector.multi_reduction <maximumf>, %111, %cst_32 [1] : vector<64x128xf32> to vector<64xf32>
    %125 = vector.shape_cast %124 : vector<64xf32> to vector<64x1xf32>
    %126 = vector.broadcast %125 : vector<64x1xf32> to vector<64x128xf32>
    %127 = arith.cmpf oeq, %111, %126 : vector<64x128xf32>
    %c128_i32_33 = arith.constant 128 : i32
    %128 = vector.broadcast %c128_i32_33 : i32 to vector<64x128xi32>
    %129 = arith.select %127, %43, %128 : vector<64x128xi1>, vector<64x128xi32>
    %cst_34 = arith.constant dense<2147483647> : vector<64xi32>
    %130 = vector.multi_reduction <minsi>, %129, %cst_34 [1] : vector<64x128xi32> to vector<64xi32>
    %131 = vector.shape_cast %130 : vector<64xi32> to vector<64x1xi32>
    %132 = vector.broadcast %131 : vector<64x1xi32> to vector<64x128xi32>
    %133 = arith.cmpi eq, %43, %132 : vector<64x128xi32>
    %134 = vector.broadcast %cst_25 : f32 to vector<64x128xf32>
    %135 = arith.select %133, %8, %134 : vector<64x128xi1>, vector<64x128xf32>
    %cst_35 = arith.constant dense<0xFF800000> : vector<64xf32>
    %136 = vector.multi_reduction <maximumf>, %135, %cst_35 [1] : vector<64x128xf32> to vector<64xf32>
    %137 = vector.shape_cast %136 : vector<64xf32> to vector<64x1xf32>
    %138 = vector.broadcast %131 : vector<64x1xi32> to vector<64x128xi32>
    %139 = arith.cmpi eq, %43, %138 : vector<64x128xi32>
    %140 = vector.broadcast %cst_25 : f32 to vector<64x128xf32>
    %141 = arith.select %139, %140, %111 : vector<64x128xi1>, vector<64x128xf32>
    %142 = vector.broadcast %c1_i32_31 : i32 to vector<64x128xi32>
    %143 = arith.cmpi eq, %90, %142 : vector<64x128xi32>
    %144 = vector.shape_cast %137 : vector<64x1xf32> to vector<64x1xf32>
    %145 = vector.broadcast %144 : vector<64x1xf32> to vector<64x128xf32>
    %146 = arith.select %143, %145, %123 : vector<64x128xi1>, vector<64x128xf32>
    %c2_i32_36 = arith.constant 2 : i32
    %147 = arith.addi %c2_i32_36, %c1_i32_31 : i32
    %148 = vector.broadcast %147 : i32 to vector<64x128xi32>
    %149 = arith.cmpi eq, %90, %148 : vector<64x128xi32>
    %150 = arith.sitofp %131 : vector<64x1xi32> to vector<64x1xf32>
    %151 = vector.shape_cast %150 : vector<64x1xf32> to vector<64x1xf32>
    %152 = vector.broadcast %151 : vector<64x1xf32> to vector<64x128xf32>
    %153 = arith.select %149, %152, %146 : vector<64x128xi1>, vector<64x128xf32>
    %c2_i32_37 = arith.constant 2 : i32
    %c0_38 = arith.constant 0 : index
    %c0_39 = arith.constant 0 : index
    %154 = vector.load %arg4[%c0_38, %c0_39] : memref<64x128xf32, #tpu.memory_space<vmem>>, vector<64x128xf32>
    tpu.vector_store %arg4[%c0_38, %c0_39], %153 {strides = array<i32>} : memref<64x128xf32, #tpu.memory_space<vmem>>, vector<64x128xf32>,
    return
  }
  func.func @transform_0(%arg0: i32) -> (i32, i32) {
    %c0_i32 = arith.constant 0 : i32
    %c0_i32_0 = arith.constant 0 : i32
    return %arg0, %c0_i32 : i32, i32
  }
  func.func @transform_1(%arg0: i32) -> (i32, i32) {
    %c0_i32 = arith.constant 0 : i32
    %c0_i32_0 = arith.constant 0 : i32
    %c0_i32_1 = arith.constant 0 : i32
    return %c0_i32, %c0_i32_0 : i32, i32
  }
  func.func @transform_2(%arg0: i32) -> (i32, i32) {
    %c0_i32 = arith.constant 0 : i32
    %c0_i32_0 = arith.constant 0 : i32
    %c0_i32_1 = arith.constant 0 : i32
    return %c0_i32, %c0_i32_0 : i32, i32
  }
  func.func @transform_3(%arg0: i32) -> (i32, i32) {
    %c0_i32 = arith.constant 0 : i32
    %c0_i32_0 = arith.constant 0 : i32
    return %arg0, %c0_i32 : i32, i32
  }
}

</mosaic_0001>

<llo_original>
// kernel: tpu_custom_call.1
$region0: #{tpu_custom_call.1}
  #allocation0 [shape = 'u32[]', space=smem, size = 0x4, offset = 0x4, fixed_abs, tag = 'smem constant byte address 0x4 - core index']
  #allocation1 [shape = 'u32[144,128]{1,0:T(1,128)}', space=vmem, size = 0x12000, scoped, tag = 'internal scratch']
  %s0 = inlined_call_operand.vmem [shape: f32[128,32], index: 0, kind: input, shape index: {}]
  %s1 = inlined_call_operand.vmem [shape: bf16[32,128], index: 1, kind: input, shape index: {}]
  %s2 = inlined_call_operand.vmem [shape: f32[1,128], index: 2, kind: input, shape index: {}]
  %s3 = inlined_call_operand.hbm [shape: f32[128,128], index: 3, kind: output, shape index: {}]
  %s4 = sld [smem:[#allocation0]]
  $region45: #{tpu_custom_call.1} parent=0
    _
  %s6 = ssub.s32 1, %s4
  %s7 = scalar_select 0, %s6, %s4
  $region1: #{tpu_custom_call.1} parent=0
    #allocation2 [shape = 'u8[65536]{0}', space=vmem, size = 0x10000, scoped, tag = 'output window, operand 0']
    #allocation3 [shape = 's32[2]{0}', space=sflag, size = 0x8, scoped, tag = 'scoped memory for tpu_custom_call.1']
    %8 = vsyncpa [#allocation3], 0
    %s9 = scalar_lea.sflag [#allocation3], 1
    %10 = vsyncpa %s9, 0
    loop: start=0, step=1, limit=4
    $region2: #{tpu_custom_call.1} parent=1 // loop_pre_header
      _
    $region3: #{tpu_custom_call.1} parent=1 // loop_header
      %s12 = sphi 0, %s16
      %p13 = scmp.ge.s32.totalorder %s12, 4
      %s22 = sphi 0, %s24
      %s25 = sphi 0, %s22
      %s26 = sphi 0, %s25
      %s42 = sphi 0, %s26
      %s46 = sphi 0, %s46
      %s48 = sphi 0, %s46
      %s49 = sphi 0, %s48
      %s63 = sphi 0, %s49
      %s67 = sphi 0, %s67
      %s69 = sphi 0, %s67
      %s70 = sphi 0, %s69
      %s84 = sphi 0, %s70
      %s90 = sphi 0, %s92
      %s93 = sphi 0, %s90
      %s94 = sphi 0, %s93
      %s110 = sphi 0, %s94
    $region4: #{tpu_custom_call.1} parent=1 // loop_header_branch
      %15 = sbr.rel (%p13) target = $region8
    $region5: #{tpu_custom_call.1} parent=1 // loop_body
      %s17 = ssub.s32 %s12, 1
      %s18 = ssub.s32 %s12, 2
      %s19 = sadd.s32 %s12, 1
      %s20 = ssub.s32 %s12, %s19
      %p21 = scmp.eq.s32.totalorder %s20, 0
      %s23 = sadd.s32 %s22, 1
      %s24 = scalar_select %p21, %s22, %s23
      %p27 = pneg %p21
      %p28 = scmp.eq.s32.totalorder %s12, 1
      %p29 = por %p27, %p28
      %p30 = scmp.ne.s32.totalorder %s22, %s25
      %p31 = scmp.eq.s32.totalorder %s12, 0
      %p32 = por %p30, %p31
      %p33 = scmp.ne.s32.totalorder %s22, %s25
      %p34 = scmp.eq.s32.totalorder %s17, 1
      %p35 = por %p33, %p34
      %p36 = scmp.ne.s32.totalorder %s25, %s26
      %p37 = scmp.eq.s32.totalorder %s17, 0
      %p38 = por %p36, %p37
      %p39 = scmp.ne.s32.totalorder %s25, %s26
      %p40 = scmp.eq.s32.totalorder %s18, 1
      %p41 = por %p39, %p40
      %p43 = scmp.ne.s32.totalorder %s26, %s42
      %p44 = scmp.eq.s32.totalorder %s18, 0
      %p45 = por %p43, %p44
      %s47 = sadd.s32 %s46, 1
      %p50 = scmp.eq.s32.totalorder %s12, 1
      %p51 = scmp.ne.s32.totalorder %s46, %s48
      %p52 = scmp.eq.s32.totalorder %s12, 0
      %p53 = por %p51, %p52
      %p54 = scmp.ne.s32.totalorder %s46, %s48
      %p55 = scmp.eq.s32.totalorder %s17, 1
      %p56 = por %p54, %p55
      %p57 = scmp.ne.s32.totalorder %s48, %s49
      %p58 = scmp.eq.s32.totalorder %s17, 0
      %p59 = por %p57, %p58
      %p60 = scmp.ne.s32.totalorder %s48, %s49
      %p61 = scmp.eq.s32.totalorder %s18, 1
      %p62 = por %p60, %p61
      %p64 = scmp.ne.s32.totalorder %s49, %s63
      %p65 = scmp.eq.s32.totalorder %s18, 0
      %p66 = por %p64, %p65
      %s68 = sadd.s32 %s67, 1
      %p71 = scmp.eq.s32.totalorder %s12, 1
      %p72 = scmp.ne.s32.totalorder %s67, %s69
      %p73 = scmp.eq.s32.totalorder %s12, 0
      %p74 = por %p72, %p73
      %p75 = scmp.ne.s32.totalorder %s67, %s69
      %p76 = scmp.eq.s32.totalorder %s17, 1
      %p77 = por %p75, %p76
      %p78 = scmp.ne.s32.totalorder %s69, %s70
      %p79 = scmp.eq.s32.totalorder %s17, 0
      %p80 = por %p78, %p79
      %p81 = scmp.ne.s32.totalorder %s69, %s70
      %p82 = scmp.eq.s32.totalorder %s18, 1
      %p83 = por %p81, %p82
      %p85 = scmp.ne.s32.totalorder %s70, %s84
      %p86 = scmp.eq.s32.totalorder %s18, 0
      %p87 = por %p85, %p86
      %s88 = ssub.s32 %s12, %s19
      %p89 = scmp.eq.s32.totalorder %s88, 0
      %s91 = sadd.s32 %s90, 1
      %s92 = scalar_select %p89, %s90, %s91
      %p95 = pneg %p89
      %p96 = scmp.eq.s32.totalorder %s12, 1
      %p97 = por %p95, %p96
      %p98 = scmp.ne.s32.totalorder %s90, %s93
      %p99 = scmp.eq.s32.totalorder %s12, 0
      %p100 = por %p98, %p99
      %p101 = scmp.ne.s32.totalorder %s90, %s93
      %p102 = scmp.eq.s32.totalorder %s17, 1
      %p103 = por %p101, %p102
      %p104 = scmp.ne.s32.totalorder %s93, %s94
      %p105 = scmp.eq.s32.totalorder %s17, 0
      %p106 = por %p104, %p105
      %p107 = scmp.ne.s32.totalorder %s93, %s94
      %p108 = scmp.eq.s32.totalorder %s18, 1
      %p109 = por %p107, %p108
      %p111 = scmp.ne.s32.totalorder %s94, %s110
      %p112 = scmp.eq.s32.totalorder %s18, 0
      %p113 = por %p111, %p112
      %p114 = scmp.le.s32.totalorder 1, %s12
      %p115 = scmp.lt.s32.totalorder %s12, 3
      %p116 = pnand %p114, %p115
      %p117 = pneg %p116
      // Predicated region
      $region9: #{tpu_custom_call.1} parent=5 // pred_check
        _
      $region10: #{tpu_custom_call.1} parent=5 // pred_check_branch
        %119 = sbr.rel (%p116) target = $region12
      $region11: #{tpu_custom_call.1} parent=5 // pred_region
        %s120 = ssub.s32 %s12, 1
        // Predicated region
        $region13: #{tpu_custom_call.1} parent=11 // pred_check
          %p121 = pneg %p59
        $region14: #{tpu_custom_call.1} parent=11 // pred_check_branch
          %123 = sbr.rel (%p121) target = $region16
        $region15: #{tpu_custom_call.1} parent=11 // pred_region
          _
        $region16: #{tpu_custom_call.1} parent=11 // pred_fallthru
          _
        // Predicated region
        $region17: #{tpu_custom_call.1} parent=11 // pred_check
          %p124 = pneg %p80
        $region18: #{tpu_custom_call.1} parent=11 // pred_check_branch
          %126 = sbr.rel (%p124) target = $region20
        $region19: #{tpu_custom_call.1} parent=11 // pred_region
          _
        $region20: #{tpu_custom_call.1} parent=11 // pred_fallthru
          _
      $region12: #{tpu_custom_call.1} parent=5 // pred_fallthru
        _
      %p127 = scmp.lt.s32.totalorder %s12, 2
      // Predicated region
      $region21: #{tpu_custom_call.1} parent=5 // pred_check
        %p128 = pneg %p127
      $region22: #{tpu_custom_call.1} parent=5 // pred_check_branch
        %130 = sbr.rel (%p128) target = $region24
      $region23: #{tpu_custom_call.1} parent=5 // pred_region
        // Predicated region
        $region25: #{tpu_custom_call.1} parent=23 // pred_check
          %p131 = pneg %p32
        $region26: #{tpu_custom_call.1} parent=23 // pred_check_branch
          %133 = sbr.rel (%p131) target = $region28
        $region27: #{tpu_custom_call.1} parent=23 // pred_region
          %s134 = smul.u32 8, %s12
          %p135 = scmp.lt.s32.totalorder %s134, 15
          %s136 = scalar_select %p135, %s134, 15
          %s137 = smul.addr %s136, 8
          %s138 = scalar_lea.vmem %s0, %s137
          %s139 = smul.u32 8, %s12
        $region28: #{tpu_custom_call.1} parent=23 // pred_fallthru
          _
      $region24: #{tpu_custom_call.1} parent=5 // pred_fallthru
        _
      %p140 = scmp.le.s32.totalorder 1, %s12
      %p141 = scmp.lt.s32.totalorder %s12, 3
      %p142 = pnand %p140, %p141
      %p143 = pneg %p142
      // Predicated region
      $region29: #{tpu_custom_call.1} parent=5 // pred_check
        _
      $region30: #{tpu_custom_call.1} parent=5 // pred_check_branch
        %145 = sbr.rel (%p142) target = $region32
      $region31: #{tpu_custom_call.1} parent=5 // pred_region
        %s146 = ssub.s32 %s12, 1
        %s147 = smul.u32 8, %s17
        %p148 = scmp.lt.s32.totalorder %s147, 15
        %s149 = scalar_select %p148, %s147, 15
        %s150 = smul.addr %s149, 8
        %s151 = scalar_lea.vmem %s0, %s150
        %p152 = pneg %p38
        %p153 = pneg %p35
        %p154 = pneg %p59
        %p155 = pneg %p56
        %p156 = pneg %p80
        %p157 = pneg %p77
        %p158 = pneg %p106
        %p159 = pneg %p103
        %s160 = sand.u32 %s93, 1
        %s161 = scalar_lea.sflag [#allocation3], %s160
        %s162 = sand.u32 %s93, 1
        %s163 = smul.addr %s162, 64
        %s164 = scalar_lea.vmem [#allocation2], %s163
        %s165 = smul.u32 8, %s17
        %p166 = scmp.lt.s32.totalorder %s165, 15
        %s167 = scalar_select %p166, %s165, 15
        %s168 = smul.addr %s167, 8
        %s169 = scalar_lea.vmem %s0, %s168
        %s170 = smul.u32 8, %s17
        %s171 = smul.u32 8, %s17
        %v173 = vld [vmem:[%s169] sm:$0xff]
        %v174 = vld [vmem:[%s169 + $0x8] sm:$0xff]
        %v175 = vld [vmem:[%s169 + $0x10] sm:$0xff]
        %v176 = vld [vmem:[%s169 + $0x18] sm:$0xff]
        %v177 = vld [vmem:[%s169 + $0x20] sm:$0xff]
        %v178 = vld [vmem:[%s169 + $0x28] sm:$0xff]
        %v179 = vld [vmem:[%s169 + $0x30] sm:$0xff]
        %v180 = vld [vmem:[%s169 + $0x38] sm:$0xff]
        %v181 = vpack.c.bf16 %v174, %v173
        %v182 = vpack.c.bf16 %v176, %v175
        %v183 = vpack.c.bf16 %v178, %v177
        %v184 = vpack.c.bf16 %v180, %v179
        %v185 = vld [vmem:[%s1] sm:$0xf]
        %v186 = vld [vmem:[%s1 + $0x4] sm:$0xf]
        %v187 = vld [vmem:[%s1 + $0x8] sm:$0xf]
        %v188 = vld [vmem:[%s1 + $0xc] sm:$0xf]
        %v193 = vunpack.c.l.b16 %v185
        %v194 = vunpack.c.l.b16 %v186
        %v195 = vunpack.c.l.b16 %v187
        %v196 = vunpack.c.l.b16 %v188
        %v197 = vpack.c.b16 %v194, %v193
        %v198 = vpack.c.b16 %v196, %v195
        %vm201 = vcmask 261120
        %v203 = vsel %vm201, %v181, 0
        %v206 = vsel %vm201, %v182, 0
        %v209 = vsel %vm201, %v183, 0
        %v212 = vsel %vm201, %v184, 0
        %214 = vmatprep.subr.bf16.mxu0 0
        %215 = vmatpush1.bf16.msra.mxu0 %v197
        %216 = vmatprep.subr.bf16.mxu0 0
        %217 = vmatpush1.bf16.msra.mxu0 %v198
        %218 = vmatprep.subr.bf16.mxu0 0
        %219 = vmatpush1.bf16.msra.mxu0 0
        %220 = vmatprep.subr.bf16.mxu0 0
        %221 = vmatpush1.bf16.msra.mxu0 0
        %222 = vmatprep.subr.bf16.mxu0 0
        %223 = vmatpush1.bf16.msra.mxu0 0
        %224 = vmatprep.subr.bf16.mxu0 0
        %225 = vmatpush1.bf16.msra.mxu0 0
        %226 = vmatprep.subr.bf16.mxu0 0
        %227 = vmatpush1.bf16.msra.mxu0 0
        %228 = vmatprep.subr.bf16.mxu0 0
        %229 = vmatpush1.bf16.msra.mxu0 0
        %230 = vmatprep.subr.bf16.mxu0 0
        %231 = vmatpush1.bf16.msra.mxu0 0
        %232 = vmatprep.subr.bf16.mxu0 0
        %233 = vmatpush1.bf16.msra.mxu0 0
        %234 = vmatprep.subr.bf16.mxu0 0
        %235 = vmatpush1.bf16.msra.mxu0 0
        %236 = vmatprep.subr.bf16.mxu0 0
        %237 = vmatpush1.bf16.msra.mxu0 0
        %238 = vmatprep.subr.bf16.mxu0 0
        %239 = vmatpush1.bf16.msra.mxu0 0
        %240 = vmatprep.subr.bf16.mxu0 0
        %241 = vmatpush1.bf16.msra.mxu0 0
        %242 = vmatprep.subr.bf16.mxu0 0
        %243 = vmatpush1.bf16.msra.mxu0 0
        %244 = vmatprep.subr.bf16.mxu0 0
        %245 = vmatpush1.bf16.msra.mxu0 0
        %246 = vmatprep.mubr.bf16.mxu0 0
        %247 = vmatmul.mubr.bf16.gmra.mrb[0].mxu0 %v203
        %v248 = vpop.f32.mrb[0].mxu0
        %v249 = vadd.f32 0.0, %v248
        %v250 = vpop.f32.mrb[0].mxu0
        %v251 = vpop.f32.mrb[0].mxu0
        %v252 = vadd.f32 0.0, %v251
        %v253 = vpop.f32.mrb[0].mxu0
        %254 = vmatprep.mubr.bf16.mxu0 0
        %255 = vmatmul.mubr.bf16.gmra.mrb[0].mxu0 %v206
        %v256 = vpop.f32.mrb[0].mxu0
        %v257 = vadd.f32 0.0, %v256
        %v258 = vpop.f32.mrb[0].mxu0
        %v259 = vpop.f32.mrb[0].mxu0
        %v260 = vadd.f32 0.0, %v259
        %v261 = vpop.f32.mrb[0].mxu0
        %262 = vmatprep.mubr.bf16.mxu0 0
        %263 = vmatmul.mubr.bf16.gmra.mrb[0].mxu0 %v209
        %v264 = vpop.f32.mrb[0].mxu0
        %v265 = vadd.f32 0.0, %v264
        %v266 = vpop.f32.mrb[0].mxu0
        %v267 = vpop.f32.mrb[0].mxu0
        %v268 = vadd.f32 0.0, %v267
        %v269 = vpop.f32.mrb[0].mxu0
        %270 = vmatprep.mubr.bf16.mxu0 0
        %271 = vmatmul.mubr.bf16.gmra.mrb[0].mxu0 %v212
        %v272 = vpop.f32.mrb[0].mxu0
        %v273 = vadd.f32 0.0, %v272
        %v274 = vpop.f32.mrb[0].mxu0
        %v275 = vpop.f32.mrb[0].mxu0
        %v276 = vadd.f32 0.0, %v275
        %v277 = vpop.f32.mrb[0].mxu0
        %278 = vdwg.mxu0
        %v279 = vxor.u32 %v249, 2147483648
        %v280 = vxor.u32 %v252, 2147483648
        %v281 = vxor.u32 %v257, 2147483648
        %v282 = vxor.u32 %v260, 2147483648
        %v283 = vxor.u32 %v265, 2147483648
        %v284 = vxor.u32 %v268, 2147483648
        %v285 = vxor.u32 %v273, 2147483648
        %v286 = vxor.u32 %v276, 2147483648
        %v287 = vmul.f32 %v279, 1.442695
        %v288 = vpow.pop %v287
        %v289 = vmul.f32 %v280, 1.442695
        %v290 = vpow.pop %v289
        %v291 = vmul.f32 %v281, 1.442695
        %v292 = vpow.pop %v291
        %v293 = vmul.f32 %v282, 1.442695
        %v294 = vpow.pop %v293
        %v295 = vmul.f32 %v283, 1.442695
        %v296 = vpow.pop %v295
        %v297 = vmul.f32 %v284, 1.442695
        %v298 = vpow.pop %v297
        %v299 = vmul.f32 %v285, 1.442695
        %v300 = vpow.pop %v299
        %v301 = vmul.f32 %v286, 1.442695
        %v302 = vpow.pop %v301
        %v303 = vadd.f32 %v288, 1.0
        %v304 = vadd.f32 %v290, 1.0
        %v305 = vadd.f32 %v292, 1.0
        %v306 = vadd.f32 %v294, 1.0
        %v307 = vadd.f32 %v296, 1.0
        %v308 = vadd.f32 %v298, 1.0
        %v309 = vadd.f32 %v300, 1.0
        %v310 = vadd.f32 %v302, 1.0
        %v311 = vrcp.pop %v303
        %v312 = vmul.f32 1.0, %v311
        %v313 = vrcp.pop %v304
        %v314 = vmul.f32 1.0, %v313
        %v315 = vrcp.pop %v305
        %v316 = vmul.f32 1.0, %v315
        %v317 = vrcp.pop %v306
        %v318 = vmul.f32 1.0, %v317
        %v319 = vrcp.pop %v307
        %v320 = vmul.f32 1.0, %v319
        %v321 = vrcp.pop %v308
        %v322 = vmul.f32 1.0, %v321
        %v323 = vrcp.pop %v309
        %v324 = vmul.f32 1.0, %v323
        %v325 = vrcp.pop %v310
        %v326 = vmul.f32 1.0, %v325
        %v327 = vld [vmem:[%s2] sm:$0x1]
        %v329 = vlaneseq
        %v330 = vshrl.u32 %v329, 7
        %v331 = vsub.s32 0, %v330
        %v332 = vrot.slane %v327, %v331
        %v334 = vadd.f32 %v312, %v332
        %v335 = vadd.f32 %v314, %v332
        %v336 = vadd.f32 %v316, %v332
        %v337 = vadd.f32 %v318, %v332
        %v338 = vadd.f32 %v320, %v332
        %v339 = vadd.f32 %v322, %v332
        %v340 = vadd.f32 %v324, %v332
        %v341 = vadd.f32 %v326, %v332
        %342 = vrot.lane.b32.xlu0 %v334, 127
        %v343 = vpop.permute.xlu0 %342
        %344 = vrot.lane.b32.xlu0 %v335, 127
        %v345 = vpop.permute.xlu0 %344
        %346 = vrot.lane.b32.xlu0 %v336, 127
        %v347 = vpop.permute.xlu0 %346
        %348 = vrot.lane.b32.xlu0 %v337, 127
        %v349 = vpop.permute.xlu0 %348
        %350 = vrot.lane.b32.xlu0 %v338, 127
        %v351 = vpop.permute.xlu0 %350
        %352 = vrot.lane.b32.xlu0 %v339, 127
        %v353 = vpop.permute.xlu0 %352
        %354 = vrot.lane.b32.xlu0 %v340, 127
        %v355 = vpop.permute.xlu0 %354
        %356 = vrot.lane.b32.xlu0 %v341, 127
        %v357 = vpop.permute.xlu0 %356
        %358 = vrot.lane.b32.xlu0 -inf, 127
        %v359 = vpop.permute.xlu0 %358
        %v360 = vmax.f32 %v334, %v343
        %v361 = vmax.f32 %v335, %v345
        %v362 = vmax.f32 %v336, %v347
        %v363 = vmax.f32 %v337, %v349
        %v364 = vmax.f32 %v338, %v351
        %v365 = vmax.f32 %v339, %v353
        %v366 = vmax.f32 %v340, %v355
        %v367 = vmax.f32 %v341, %v357
        %v368 = vmin.f32 %v334, %v343
        %v369 = vmin.f32 %v335, %v345
        %v370 = vmin.f32 %v336, %v347
        %v371 = vmin.f32 %v337, %v349
        %v372 = vmin.f32 %v338, %v351
        %v373 = vmin.f32 %v339, %v353
        %v374 = vmin.f32 %v340, %v355
        %v375 = vmin.f32 %v341, %v357
        %v376 = vmax.f32 %v368, %v359
        %v377 = vmax.f32 %v369, %v359
        %v378 = vmax.f32 %v370, %v359
        %v379 = vmax.f32 %v371, %v359
        %v380 = vmax.f32 %v372, %v359
        %v381 = vmax.f32 %v373, %v359
        %v382 = vmax.f32 %v374, %v359
        %v383 = vmax.f32 %v375, %v359
        %384 = vrot.lane.b32.xlu0 %v360, 126
        %v385 = vpop.permute.xlu0 %384
        %386 = vrot.lane.b32.xlu0 %v361, 126
        %v387 = vpop.permute.xlu0 %386
        %388 = vrot.lane.b32.xlu0 %v362, 126
        %v389 = vpop.permute.xlu0 %388
        %390 = vrot.lane.b32.xlu0 %v363, 126
        %v391 = vpop.permute.xlu0 %390
        %392 = vrot.lane.b32.xlu0 %v364, 126
        %v393 = vpop.permute.xlu0 %392
        %394 = vrot.lane.b32.xlu0 %v365, 126
        %v395 = vpop.permute.xlu0 %394
        %396 = vrot.lane.b32.xlu0 %v366, 126
        %v397 = vpop.permute.xlu0 %396
        %398 = vrot.lane.b32.xlu0 %v367, 126
        %v399 = vpop.permute.xlu0 %398
        %400 = vrot.lane.b32.xlu0 %v376, 126
        %v401 = vpop.permute.xlu0 %400
        %402 = vrot.lane.b32.xlu0 %v377, 126
        %v403 = vpop.permute.xlu0 %402
        %404 = vrot.lane.b32.xlu0 %v378, 126
        %v405 = vpop.permute.xlu0 %404
        %406 = vrot.lane.b32.xlu0 %v379, 126
        %v407 = vpop.permute.xlu0 %406
        %408 = vrot.lane.b32.xlu0 %v380, 126
        %v409 = vpop.permute.xlu0 %408
        %410 = vrot.lane.b32.xlu0 %v381, 126
        %v411 = vpop.permute.xlu0 %410
        %412 = vrot.lane.b32.xlu0 %v382, 126
        %v413 = vpop.permute.xlu0 %412
        %414 = vrot.lane.b32.xlu0 %v383, 126
        %v415 = vpop.permute.xlu0 %414
        %v416 = vmax.f32 %v360, %v385
        %v417 = vmax.f32 %v361, %v387
        %v418 = vmax.f32 %v362, %v389
        %v419 = vmax.f32 %v363, %v391
        %v420 = vmax.f32 %v364, %v393
        %v421 = vmax.f32 %v365, %v395
        %v422 = vmax.f32 %v366, %v397
        %v423 = vmax.f32 %v367, %v399
        %v424 = vmin.f32 %v360, %v385
        %v425 = vmin.f32 %v361, %v387
        %v426 = vmin.f32 %v362, %v389
        %v427 = vmin.f32 %v363, %v391
        %v428 = vmin.f32 %v364, %v393
        %v429 = vmin.f32 %v365, %v395
        %v430 = vmin.f32 %v366, %v397
        %v431 = vmin.f32 %v367, %v399
        %v432 = vmax.f32 %v376, %v401
        %v433 = vmax.f32 %v377, %v403
        %v434 = vmax.f32 %v378, %v405
        %v435 = vmax.f32 %v379, %v407
        %v436 = vmax.f32 %v380, %v409
        %v437 = vmax.f32 %v381, %v411
        %v438 = vmax.f32 %v382, %v413
        %v439 = vmax.f32 %v383, %v415
        %v440 = vmax.f32 %v424, %v432
        %v441 = vmax.f32 %v425, %v433
        %v442 = vmax.f32 %v426, %v434
        %v443 = vmax.f32 %v427, %v435
        %v444 = vmax.f32 %v428, %v436
        %v445 = vmax.f32 %v429, %v437
        %v446 = vmax.f32 %v430, %v438
        %v447 = vmax.f32 %v431, %v439
        %448 = vrot.lane.b32.xlu0 %v416, 124
        %v449 = vpop.permute.xlu0 %448
        %450 = vrot.lane.b32.xlu0 %v417, 124
        %v451 = vpop.permute.xlu0 %450
        %452 = vrot.lane.b32.xlu0 %v418, 124
        %v453 = vpop.permute.xlu0 %452
        %454 = vrot.lane.b32.xlu0 %v419, 124
        %v455 = vpop.permute.xlu0 %454
        %456 = vrot.lane.b32.xlu0 %v420, 124
        %v457 = vpop.permute.xlu0 %456
        %458 = vrot.lane.b32.xlu0 %v421, 124
        %v459 = vpop.permute.xlu0 %458
        %460 = vrot.lane.b32.xlu0 %v422, 124
        %v461 = vpop.permute.xlu0 %460
        %462 = vrot.lane.b32.xlu0 %v423, 124
        %v463 = vpop.permute.xlu0 %462
        %464 = vrot.lane.b32.xlu0 %v440, 124
        %v465 = vpop.permute.xlu0 %464
        %466 = vrot.lane.b32.xlu0 %v441, 124
        %v467 = vpop.permute.xlu0 %466
        %468 = vrot.lane.b32.xlu0 %v442, 124
        %v469 = vpop.permute.xlu0 %468
        %470 = vrot.lane.b32.xlu0 %v443, 124
        %v471 = vpop.permute.xlu0 %470
        %472 = vrot.lane.b32.xlu0 %v444, 124
        %v473 = vpop.permute.xlu0 %472
        %474 = vrot.lane.b32.xlu0 %v445, 124
        %v475 = vpop.permute.xlu0 %474
        %476 = vrot.lane.b32.xlu0 %v446, 124
        %v477 = vpop.permute.xlu0 %476
        %478 = vrot.lane.b32.xlu0 %v447, 124
        %v479 = vpop.permute.xlu0 %478
        %v480 = vmax.f32 %v416, %v449
        %v481 = vmax.f32 %v417, %v451
        %v482 = vmax.f32 %v418, %v453
        %v483 = vmax.f32 %v419, %v455
        %v484 = vmax.f32 %v420, %v457
        %v485 = vmax.f32 %v421, %v459
        %v486 = vmax.f32 %v422, %v461
        %v487 = vmax.f32 %v423, %v463
        %v488 = vmin.f32 %v416, %v449
        %v489 = vmin.f32 %v417, %v451
        %v490 = vmin.f32 %v418, %v453
        %v491 = vmin.f32 %v419, %v455
        %v492 = vmin.f32 %v420, %v457
        %v493 = vmin.f32 %v421, %v459
        %v494 = vmin.f32 %v422, %v461
        %v495 = vmin.f32 %v423, %v463
        %v496 = vmax.f32 %v440, %v465
        %v497 = vmax.f32 %v441, %v467
        %v498 = vmax.f32 %v442, %v469
        %v499 = vmax.f32 %v443, %v471
        %v500 = vmax.f32 %v444, %v473
        %v501 = vmax.f32 %v445, %v475
        %v502 = vmax.f32 %v446, %v477
        %v503 = vmax.f32 %v447, %v479
        %v504 = vmax.f32 %v488, %v496
        %v505 = vmax.f32 %v489, %v497
        %v506 = vmax.f32 %v490, %v498
        %v507 = vmax.f32 %v491, %v499
        %v508 = vmax.f32 %v492, %v500
        %v509 = vmax.f32 %v493, %v501
        %v510 = vmax.f32 %v494, %v502
        %v511 = vmax.f32 %v495, %v503
        %512 = vrot.lane.b32.xlu0 %v480, 120
        %v513 = vpop.permute.xlu0 %512
        %514 = vrot.lane.b32.xlu0 %v481, 120
        %v515 = vpop.permute.xlu0 %514
        %516 = vrot.lane.b32.xlu0 %v482, 120
        %v517 = vpop.permute.xlu0 %516
        %518 = vrot.lane.b32.xlu0 %v483, 120
        %v519 = vpop.permute.xlu0 %518
        %520 = vrot.lane.b32.xlu0 %v484, 120
        %v521 = vpop.permute.xlu0 %520
        %522 = vrot.lane.b32.xlu0 %v485, 120
        %v523 = vpop.permute.xlu0 %522
        %524 = vrot.lane.b32.xlu0 %v486, 120
        %v525 = vpop.permute.xlu0 %524
        %526 = vrot.lane.b32.xlu0 %v487, 120
        %v527 = vpop.permute.xlu0 %526
        %528 = vrot.lane.b32.xlu0 %v504, 120
        %v529 = vpop.permute.xlu0 %528
        %530 = vrot.lane.b32.xlu0 %v505, 120
        %v531 = vpop.permute.xlu0 %530
        %532 = vrot.lane.b32.xlu0 %v506, 120
        %v533 = vpop.permute.xlu0 %532
        %534 = vrot.lane.b32.xlu0 %v507, 120
        %v535 = vpop.permute.xlu0 %534
        %536 = vrot.lane.b32.xlu0 %v508, 120
        %v537 = vpop.permute.xlu0 %536
        %538 = vrot.lane.b32.xlu0 %v509, 120
        %v539 = vpop.permute.xlu0 %538
        %540 = vrot.lane.b32.xlu0 %v510, 120
        %v541 = vpop.permute.xlu0 %540
        %542 = vrot.lane.b32.xlu0 %v511, 120
        %v543 = vpop.permute.xlu0 %542
        %v544 = vmax.f32 %v480, %v513
        %v545 = vmax.f32 %v481, %v515
        %v546 = vmax.f32 %v482, %v517
        %v547 = vmax.f32 %v483, %v519
        %v548 = vmax.f32 %v484, %v521
        %v549 = vmax.f32 %v485, %v523
        %v550 = vmax.f32 %v486, %v525
        %v551 = vmax.f32 %v487, %v527
        %v552 = vmin.f32 %v480, %v513
        %v553 = vmin.f32 %v481, %v515
        %v554 = vmin.f32 %v482, %v517
        %v555 = vmin.f32 %v483, %v519
        %v556 = vmin.f32 %v484, %v521
        %v557 = vmin.f32 %v485, %v523
        %v558 = vmin.f32 %v486, %v525
        %v559 = vmin.f32 %v487, %v527
        %v560 = vmax.f32 %v504, %v529
        %v561 = vmax.f32 %v505, %v531
        %v562 = vmax.f32 %v506, %v533
        %v563 = vmax.f32 %v507, %v535
        %v564 = vmax.f32 %v508, %v537
        %v565 = vmax.f32 %v509, %v539
        %v566 = vmax.f32 %v510, %v541
        %v567 = vmax.f32 %v511, %v543
        %v568 = vmax.f32 %v552, %v560
        %v569 = vmax.f32 %v553, %v561
        %v570 = vmax.f32 %v554, %v562
        %v571 = vmax.f32 %v555, %v563
        %v572 = vmax.f32 %v556, %v564
        %v573 = vmax.f32 %v557, %v565
        %v574 = vmax.f32 %v558, %v566
        %v575 = vmax.f32 %v559, %v567
        %576 = vrot.lane.b32.xlu0 %v544, 112
        %v577 = vpop.permute.xlu0 %576
        %578 = vrot.lane.b32.xlu0 %v545, 112
        %v579 = vpop.permute.xlu0 %578
        %580 = vrot.lane.b32.xlu0 %v546, 112
        %v581 = vpop.permute.xlu0 %580
        %582 = vrot.lane.b32.xlu0 %v547, 112
        %v583 = vpop.permute.xlu0 %582
        %584 = vrot.lane.b32.xlu0 %v548, 112
        %v585 = vpop.permute.xlu0 %584
        %586 = vrot.lane.b32.xlu0 %v549, 112
        %v587 = vpop.permute.xlu0 %586
        %588 = vrot.lane.b32.xlu0 %v550, 112
        %v589 = vpop.permute.xlu0 %588
        %590 = vrot.lane.b32.xlu0 %v551, 112
        %v591 = vpop.permute.xlu0 %590
        %592 = vrot.lane.b32.xlu0 %v568, 112
        %v593 = vpop.permute.xlu0 %592
        %594 = vrot.lane.b32.xlu0 %v569, 112
        %v595 = vpop.permute.xlu0 %594
        %596 = vrot.lane.b32.xlu0 %v570, 112
        %v597 = vpop.permute.xlu0 %596
        %598 = vrot.lane.b32.xlu0 %v571, 112
        %v599 = vpop.permute.xlu0 %598
        %600 = vrot.lane.b32.xlu0 %v572, 112
        %v601 = vpop.permute.xlu0 %600
        %602 = vrot.lane.b32.xlu0 %v573, 112
        %v603 = vpop.permute.xlu0 %602
        %604 = vrot.lane.b32.xlu0 %v574, 112
        %v605 = vpop.permute.xlu0 %604
        %606 = vrot.lane.b32.xlu0 %v575, 112
        %v607 = vpop.permute.xlu0 %606
        %v608 = vmax.f32 %v544, %v577
        %v609 = vmax.f32 %v545, %v579
        %v610 = vmax.f32 %v546, %v581
        %v611 = vmax.f32 %v547, %v583
        %v612 = vmax.f32 %v548, %v585
        %v613 = vmax.f32 %v549, %v587
        %v614 = vmax.f32 %v550, %v589
        %v615 = vmax.f32 %v551, %v591
        %v616 = vmin.f32 %v544, %v577
        %v617 = vmin.f32 %v545, %v579
        %v618 = vmin.f32 %v546, %v581
        %v619 = vmin.f32 %v547, %v583
        %v620 = vmin.f32 %v548, %v585
        %v621 = vmin.f32 %v549, %v587
        %v622 = vmin.f32 %v550, %v589
        %v623 = vmin.f32 %v551, %v591
        %v624 = vmax.f32 %v568, %v593
        %v625 = vmax.f32 %v569, %v595
        %v626 = vmax.f32 %v570, %v597
        %v627 = vmax.f32 %v571, %v599
        %v628 = vmax.f32 %v572, %v601
        %v629 = vmax.f32 %v573, %v603
        %v630 = vmax.f32 %v574, %v605
        %v631 = vmax.f32 %v575, %v607
        %v632 = vmax.f32 %v616, %v624
        %v633 = vmax.f32 %v617, %v625
        %v634 = vmax.f32 %v618, %v626
        %v635 = vmax.f32 %v619, %v627
        %v636 = vmax.f32 %v620, %v628
        %v637 = vmax.f32 %v621, %v629
        %v638 = vmax.f32 %v622, %v630
        %v639 = vmax.f32 %v623, %v631
        %v640 = vlaneseq
        %v641 = vand.u32 %v640, 127
        %v642 = vand.u32 %v641, 31
        %vm643 = vcmp.eq.s32.totalorder %v642, 0
        %v644 = vadd.f32 %v608, %v632
        %v645 = vadd.f32 %v609, %v633
        %v646 = vadd.f32 %v610, %v634
        %v647 = vadd.f32 %v611, %v635
        %v648 = vadd.f32 %v612, %v636
        %v649 = vadd.f32 %v613, %v637
        %v650 = vadd.f32 %v614, %v638
        %v651 = vadd.f32 %v615, %v639
        %v652 = vsel %vm643, %v644, -inf
        %v653 = vsel %vm643, %v645, -inf
        %v654 = vsel %vm643, %v646, -inf
        %v655 = vsel %vm643, %v647, -inf
        %v656 = vsel %vm643, %v648, -inf
        %v657 = vsel %vm643, %v649, -inf
        %v658 = vsel %vm643, %v650, -inf
        %v659 = vsel %vm643, %v651, -inf
        %660 = vmax.xlane.f32.xlu0 %v652
        %v661 = vpop.xlane.xlu0 %660
        %662 = vmax.xlane.f32.xlu0 %v653
        %v663 = vpop.xlane.xlu0 %662
        %664 = vmax.xlane.f32.xlu0 %v654
        %v665 = vpop.xlane.xlu0 %664
        %666 = vmax.xlane.f32.xlu0 %v655
        %v667 = vpop.xlane.xlu0 %666
        %668 = vmax.xlane.f32.xlu0 %v656
        %v669 = vpop.xlane.xlu0 %668
        %670 = vmax.xlane.f32.xlu0 %v657
        %v671 = vpop.xlane.xlu0 %670
        %672 = vmax.xlane.f32.xlu0 %v658
        %v673 = vpop.xlane.xlu0 %672
        %674 = vmax.xlane.f32.xlu0 %v659
        %v675 = vpop.xlane.xlu0 %674
        %vm676 = vcmp.eq.f32.partialorder %v652, %v661
        %vm677 = vcmp.eq.f32.partialorder %v653, %v663
        %vm678 = vcmp.eq.f32.partialorder %v654, %v665
        %vm679 = vcmp.eq.f32.partialorder %v655, %v667
        %vm680 = vcmp.eq.f32.partialorder %v656, %v669
        %vm681 = vcmp.eq.f32.partialorder %v657, %v671
        %vm682 = vcmp.eq.f32.partialorder %v658, %v673
        %vm683 = vcmp.eq.f32.partialorder %v659, %v675
        %v684 = vsel %vm676, %v641, 128
        %v685 = vsel %vm677, %v641, 128
        %v686 = vsel %vm678, %v641, 128
        %v687 = vsel %vm679, %v641, 128
        %v688 = vsel %vm680, %v641, 128
        %v689 = vsel %vm681, %v641, 128
        %v690 = vsel %vm682, %v641, 128
        %v691 = vsel %vm683, %v641, 128
        %v692 = vand.u32 %v684, 65535
        %v693 = vshra.s32 %v684, 16
        %v694 = vcvt.s32.f32 %v692
        %v695 = vcvt.s32.f32 %v693
        %696 = vmin.xlane.f32.xlu0 %v695
        %v697 = vpop.xlane.xlu0 %696
        %vm698 = vcmp.eq.f32.partialorder %v695, %v697
        %v699 = vsel %vm698, %v694, inf
        %700 = vmin.xlane.f32.xlu0 %v699
        %v701 = vpop.xlane.xlu0 %700
        %v702 = vcvt.f32.s32 %v701
        %v703 = vcvt.f32.s32 %v697
        %v704 = vshll.u32 %v703, 16
        %v705 = vadd.s32 %v704, %v702
        %v706 = vand.u32 %v685, 65535
        %v707 = vshra.s32 %v685, 16
        %v708 = vcvt.s32.f32 %v706
        %v709 = vcvt.s32.f32 %v707
        %710 = vmin.xlane.f32.xlu0 %v709
        %v711 = vpop.xlane.xlu0 %710
        %vm712 = vcmp.eq.f32.partialorder %v709, %v711
        %v713 = vsel %vm712, %v708, inf
        %714 = vmin.xlane.f32.xlu0 %v713
        %v715 = vpop.xlane.xlu0 %714
        %v716 = vcvt.f32.s32 %v715
        %v717 = vcvt.f32.s32 %v711
        %v718 = vshll.u32 %v717, 16
        %v719 = vadd.s32 %v718, %v716
        %v720 = vand.u32 %v686, 65535
        %v721 = vshra.s32 %v686, 16
        %v722 = vcvt.s32.f32 %v720
        %v723 = vcvt.s32.f32 %v721
        %724 = vmin.xlane.f32.xlu0 %v723
        %v725 = vpop.xlane.xlu0 %724
        %vm726 = vcmp.eq.f32.partialorder %v723, %v725
        %v727 = vsel %vm726, %v722, inf
        %728 = vmin.xlane.f32.xlu0 %v727
        %v729 = vpop.xlane.xlu0 %728
        %v730 = vcvt.f32.s32 %v729
        %v731 = vcvt.f32.s32 %v725
        %v732 = vshll.u32 %v731, 16
        %v733 = vadd.s32 %v732, %v730
        %v734 = vand.u32 %v687, 65535
        %v735 = vshra.s32 %v687, 16
        %v736 = vcvt.s32.f32 %v734
        %v737 = vcvt.s32.f32 %v735
        %738 = vmin.xlane.f32.xlu0 %v737
        %v739 = vpop.xlane.xlu0 %738
        %vm740 = vcmp.eq.f32.partialorder %v737, %v739
        %v741 = vsel %vm740, %v736, inf
        %742 = vmin.xlane.f32.xlu0 %v741
        %v743 = vpop.xlane.xlu0 %742
        %v744 = vcvt.f32.s32 %v743
        %v745 = vcvt.f32.s32 %v739
        %v746 = vshll.u32 %v745, 16
        %v747 = vadd.s32 %v746, %v744
        %v748 = vand.u32 %v688, 65535
        %v749 = vshra.s32 %v688, 16
        %v750 = vcvt.s32.f32 %v748
        %v751 = vcvt.s32.f32 %v749
        %752 = vmin.xlane.f32.xlu0 %v751
        %v753 = vpop.xlane.xlu0 %752
        %vm754 = vcmp.eq.f32.partialorder %v751, %v753
        %v755 = vsel %vm754, %v750, inf
        %756 = vmin.xlane.f32.xlu0 %v755
        %v757 = vpop.xlane.xlu0 %756
        %v758 = vcvt.f32.s32 %v757
        %v759 = vcvt.f32.s32 %v753
        %v760 = vshll.u32 %v759, 16
        %v761 = vadd.s32 %v760, %v758
        %v762 = vand.u32 %v689, 65535
        %v763 = vshra.s32 %v689, 16
        %v764 = vcvt.s32.f32 %v762
        %v765 = vcvt.s32.f32 %v763
        %766 = vmin.xlane.f32.xlu0 %v765
        %v767 = vpop.xlane.xlu0 %766
        %vm768 = vcmp.eq.f32.partialorder %v765, %v767
        %v769 = vsel %vm768, %v764, inf
        %770 = vmin.xlane.f32.xlu0 %v769
        %v771 = vpop.xlane.xlu0 %770
        %v772 = vcvt.f32.s32 %v771
        %v773 = vcvt.f32.s32 %v767
        %v774 = vshll.u32 %v773, 16
        %v775 = vadd.s32 %v774, %v772
        %v776 = vand.u32 %v690, 65535
        %v777 = vshra.s32 %v690, 16
        %v778 = vcvt.s32.f32 %v776
        %v779 = vcvt.s32.f32 %v777
        %780 = vmin.xlane.f32.xlu0 %v779
        %v781 = vpop.xlane.xlu0 %780
        %vm782 = vcmp.eq.f32.partialorder %v779, %v781
        %v783 = vsel %vm782, %v778, inf
        %784 = vmin.xlane.f32.xlu0 %v783
        %v785 = vpop.xlane.xlu0 %784
        %v786 = vcvt.f32.s32 %v785
        %v787 = vcvt.f32.s32 %v781
        %v788 = vshll.u32 %v787, 16
        %v789 = vadd.s32 %v788, %v786
        %v790 = vand.u32 %v691, 65535
        %v791 = vshra.s32 %v691, 16
        %v792 = vcvt.s32.f32 %v790
        %v793 = vcvt.s32.f32 %v791
        %794 = vmin.xlane.f32.xlu0 %v793
        %v795 = vpop.xlane.xlu0 %794
        %vm796 = vcmp.eq.f32.partialorder %v793, %v795
        %v797 = vsel %vm796, %v792, inf
        %798 = vmin.xlane.f32.xlu0 %v797
        %v799 = vpop.xlane.xlu0 %798
        %v800 = vcvt.f32.s32 %v799
        %v801 = vcvt.f32.s32 %v795
        %v802 = vshll.u32 %v801, 16
        %v803 = vadd.s32 %v802, %v800
        %v804 = vshra.s32 %v641, 5
        %v805 = vshra.s32 %v705, 5
        %v806 = vshra.s32 %v719, 5
        %v807 = vshra.s32 %v733, 5
        %v808 = vshra.s32 %v747, 5
        %v809 = vshra.s32 %v761, 5
        %v810 = vshra.s32 %v775, 5
        %v811 = vshra.s32 %v789, 5
        %v812 = vshra.s32 %v803, 5
        %vm813 = vcmp.eq.s32.totalorder %v804, %v805
        %vm814 = vcmp.eq.s32.totalorder %v804, %v806
        %vm815 = vcmp.eq.s32.totalorder %v804, %v807
        %vm816 = vcmp.eq.s32.totalorder %v804, %v808
        %vm817 = vcmp.eq.s32.totalorder %v804, %v809
        %vm818 = vcmp.eq.s32.totalorder %v804, %v810
        %vm819 = vcmp.eq.s32.totalorder %v804, %v811
        %vm820 = vcmp.eq.s32.totalorder %v804, %v812
        %vm821 = vcmp.eq.s32.totalorder %v641, %v705
        %vm822 = vcmp.eq.s32.totalorder %v641, %v719
        %vm823 = vcmp.eq.s32.totalorder %v641, %v733
        %vm824 = vcmp.eq.s32.totalorder %v641, %v747
        %vm825 = vcmp.eq.s32.totalorder %v641, %v761
        %vm826 = vcmp.eq.s32.totalorder %v641, %v775
        %vm827 = vcmp.eq.s32.totalorder %v641, %v789
        %vm828 = vcmp.eq.s32.totalorder %v641, %v803
        %v829 = vsel %vm821, -inf, %v652
        %v830 = vsel %vm822, -inf, %v653
        %v831 = vsel %vm823, -inf, %v654
        %v832 = vsel %vm824, -inf, %v655
        %v833 = vsel %vm825, -inf, %v656
        %v834 = vsel %vm826, -inf, %v657
        %v835 = vsel %vm827, -inf, %v658
        %v836 = vsel %vm828, -inf, %v659
        %837 = vmax.xlane.f32.xlu0 %v829
        %v838 = vpop.xlane.xlu0 %837
        %839 = vmax.xlane.f32.xlu0 %v830
        %v840 = vpop.xlane.xlu0 %839
        %841 = vmax.xlane.f32.xlu0 %v831
        %v842 = vpop.xlane.xlu0 %841
        %843 = vmax.xlane.f32.xlu0 %v832
        %v844 = vpop.xlane.xlu0 %843
        %845 = vmax.xlane.f32.xlu0 %v833
        %v846 = vpop.xlane.xlu0 %845
        %847 = vmax.xlane.f32.xlu0 %v834
        %v848 = vpop.xlane.xlu0 %847
        %849 = vmax.xlane.f32.xlu0 %v835
        %v850 = vpop.xlane.xlu0 %849
        %851 = vmax.xlane.f32.xlu0 %v836
        %v852 = vpop.xlane.xlu0 %851
        %vm853 = vcmp.eq.f32.partialorder %v829, %v838
        %vm854 = vcmp.eq.f32.partialorder %v830, %v840
        %vm855 = vcmp.eq.f32.partialorder %v831, %v842
        %vm856 = vcmp.eq.f32.partialorder %v832, %v844
        %vm857 = vcmp.eq.f32.partialorder %v833, %v846
        %vm858 = vcmp.eq.f32.partialorder %v834, %v848
        %vm859 = vcmp.eq.f32.partialorder %v835, %v850
        %vm860 = vcmp.eq.f32.partialorder %v836, %v852
        %v861 = vsel %vm853, %v641, 128
        %v862 = vsel %vm854, %v641, 128
        %v863 = vsel %vm855, %v641, 128
        %v864 = vsel %vm856, %v641, 128
        %v865 = vsel %vm857, %v641, 128
        %v866 = vsel %vm858, %v641, 128
        %v867 = vsel %vm859, %v641, 128
        %v868 = vsel %vm860, %v641, 128
        %v869 = vand.u32 %v861, 65535
        %v870 = vshra.s32 %v861, 16
        %v871 = vcvt.s32.f32 %v869
        %v872 = vcvt.s32.f32 %v870
        %873 = vmin.xlane.f32.xlu0 %v872
        %v874 = vpop.xlane.xlu0 %873
        %vm875 = vcmp.eq.f32.partialorder %v872, %v874
        %v876 = vsel %vm875, %v871, inf
        %877 = vmin.xlane.f32.xlu0 %v876
        %v878 = vpop.xlane.xlu0 %877
        %v879 = vcvt.f32.s32 %v878
        %v880 = vcvt.f32.s32 %v874
        %v881 = vshll.u32 %v880, 16
        %v882 = vadd.s32 %v881, %v879
        %v883 = vand.u32 %v862, 65535
        %v884 = vshra.s32 %v862, 16
        %v885 = vcvt.s32.f32 %v883
        %v886 = vcvt.s32.f32 %v884
        %887 = vmin.xlane.f32.xlu0 %v886
        %v888 = vpop.xlane.xlu0 %887
        %vm889 = vcmp.eq.f32.partialorder %v886, %v888
        %v890 = vsel %vm889, %v885, inf
        %891 = vmin.xlane.f32.xlu0 %v890
        %v892 = vpop.xlane.xlu0 %891
        %v893 = vcvt.f32.s32 %v892
        %v894 = vcvt.f32.s32 %v888
        %v895 = vshll.u32 %v894, 16
        %v896 = vadd.s32 %v895, %v893
        %v897 = vand.u32 %v863, 65535
        %v898 = vshra.s32 %v863, 16
        %v899 = vcvt.s32.f32 %v897
        %v900 = vcvt.s32.f32 %v898
        %901 = vmin.xlane.f32.xlu0 %v900
        %v902 = vpop.xlane.xlu0 %901
        %vm903 = vcmp.eq.f32.partialorder %v900, %v902
        %v904 = vsel %vm903, %v899, inf
        %905 = vmin.xlane.f32.xlu0 %v904
        %v906 = vpop.xlane.xlu0 %905
        %v907 = vcvt.f32.s32 %v906
        %v908 = vcvt.f32.s32 %v902
        %v909 = vshll.u32 %v908, 16
        %v910 = vadd.s32 %v909, %v907
        %v911 = vand.u32 %v864, 65535
        %v912 = vshra.s32 %v864, 16
        %v913 = vcvt.s32.f32 %v911
        %v914 = vcvt.s32.f32 %v912
        %915 = vmin.xlane.f32.xlu0 %v914
        %v916 = vpop.xlane.xlu0 %915
        %vm917 = vcmp.eq.f32.partialorder %v914, %v916
        %v918 = vsel %vm917, %v913, inf
        %919 = vmin.xlane.f32.xlu0 %v918
        %v920 = vpop.xlane.xlu0 %919
        %v921 = vcvt.f32.s32 %v920
        %v922 = vcvt.f32.s32 %v916
        %v923 = vshll.u32 %v922, 16
        %v924 = vadd.s32 %v923, %v921
        %v925 = vand.u32 %v865, 65535
        %v926 = vshra.s32 %v865, 16
        %v927 = vcvt.s32.f32 %v925
        %v928 = vcvt.s32.f32 %v926
        %929 = vmin.xlane.f32.xlu0 %v928
        %v930 = vpop.xlane.xlu0 %929
        %vm931 = vcmp.eq.f32.partialorder %v928, %v930
        %v932 = vsel %vm931, %v927, inf
        %933 = vmin.xlane.f32.xlu0 %v932
        %v934 = vpop.xlane.xlu0 %933
        %v935 = vcvt.f32.s32 %v934
        %v936 = vcvt.f32.s32 %v930
        %v937 = vshll.u32 %v936, 16
        %v938 = vadd.s32 %v937, %v935
        %v939 = vand.u32 %v866, 65535
        %v940 = vshra.s32 %v866, 16
        %v941 = vcvt.s32.f32 %v939
        %v942 = vcvt.s32.f32 %v940
        %943 = vmin.xlane.f32.xlu0 %v942
        %v944 = vpop.xlane.xlu0 %943
        %vm945 = vcmp.eq.f32.partialorder %v942, %v944
        %v946 = vsel %vm945, %v941, inf
        %947 = vmin.xlane.f32.xlu0 %v946
        %v948 = vpop.xlane.xlu0 %947
        %v949 = vcvt.f32.s32 %v948
        %v950 = vcvt.f32.s32 %v944
        %v951 = vshll.u32 %v950, 16
        %v952 = vadd.s32 %v951, %v949
        %v953 = vand.u32 %v867, 65535
        %v954 = vshra.s32 %v867, 16
        %v955 = vcvt.s32.f32 %v953
        %v956 = vcvt.s32.f32 %v954
        %957 = vmin.xlane.f32.xlu0 %v956
        %v958 = vpop.xlane.xlu0 %957
        %vm959 = vcmp.eq.f32.partialorder %v956, %v958
        %v960 = vsel %vm959, %v955, inf
        %961 = vmin.xlane.f32.xlu0 %v960
        %v962 = vpop.xlane.xlu0 %961
        %v963 = vcvt.f32.s32 %v962
        %v964 = vcvt.f32.s32 %v958
        %v965 = vshll.u32 %v964, 16
        %v966 = vadd.s32 %v965, %v963
        %v967 = vand.u32 %v868, 65535
        %v968 = vshra.s32 %v868, 16
        %v969 = vcvt.s32.f32 %v967
        %v970 = vcvt.s32.f32 %v968
        %971 = vmin.xlane.f32.xlu0 %v970
        %v972 = vpop.xlane.xlu0 %971
        %vm973 = vcmp.eq.f32.partialorder %v970, %v972
        %v974 = vsel %vm973, %v969, inf
        %975 = vmin.xlane.f32.xlu0 %v974
        %v976 = vpop.xlane.xlu0 %975
        %v977 = vcvt.f32.s32 %v976
        %v978 = vcvt.f32.s32 %v972
        %v979 = vshll.u32 %v978, 16
        %v980 = vadd.s32 %v979, %v977
        %v981 = vshra.s32 %v882, 5
        %v982 = vshra.s32 %v896, 5
        %v983 = vshra.s32 %v910, 5
        %v984 = vshra.s32 %v924, 5
        %v985 = vshra.s32 %v938, 5
        %v986 = vshra.s32 %v952, 5
        %v987 = vshra.s32 %v966, 5
        %v988 = vshra.s32 %v980, 5
        %vm989 = vcmp.eq.s32.totalorder %v804, %v981
        %vm990 = vcmp.eq.s32.totalorder %v804, %v982
        %vm991 = vcmp.eq.s32.totalorder %v804, %v983
        %vm992 = vcmp.eq.s32.totalorder %v804, %v984
        %vm993 = vcmp.eq.s32.totalorder %v804, %v985
        %vm994 = vcmp.eq.s32.totalorder %v804, %v986
        %vm995 = vcmp.eq.s32.totalorder %v804, %v987
        %vm996 = vcmp.eq.s32.totalorder %v804, %v988
        %vm997 = vmor %vm813, %vm989
        %vm998 = vmor %vm814, %vm990
        %vm999 = vmor %vm815, %vm991
        %vm1000 = vmor %vm816, %vm992
        %vm1001 = vmor %vm817, %vm993
        %vm1002 = vmor %vm818, %vm994
        %vm1003 = vmor %vm819, %vm995
        %vm1004 = vmor %vm820, %vm996
        %v1005 = vsel %vm997, %v334, -inf
        %v1006 = vsel %vm998, %v335, -inf
        %v1007 = vsel %vm999, %v336, -inf
        %v1008 = vsel %vm1000, %v337, -inf
        %v1009 = vsel %vm1001, %v338, -inf
        %v1010 = vsel %vm1002, %v339, -inf
        %v1011 = vsel %vm1003, %v340, -inf
        %v1012 = vsel %vm1004, %v341, -inf
        %1013 = vmax.xlane.f32.xlu0 %v1005
        %v1014 = vpop.xlane.xlu0 %1013
        %1015 = vmax.xlane.f32.xlu0 %v1006
        %v1016 = vpop.xlane.xlu0 %1015
        %1017 = vmax.xlane.f32.xlu0 %v1007
        %v1018 = vpop.xlane.xlu0 %1017
        %1019 = vmax.xlane.f32.xlu0 %v1008
        %v1020 = vpop.xlane.xlu0 %1019
        %1021 = vmax.xlane.f32.xlu0 %v1009
        %v1022 = vpop.xlane.xlu0 %1021
        %1023 = vmax.xlane.f32.xlu0 %v1010
        %v1024 = vpop.xlane.xlu0 %1023
        %1025 = vmax.xlane.f32.xlu0 %v1011
        %v1026 = vpop.xlane.xlu0 %1025
        %1027 = vmax.xlane.f32.xlu0 %v1012
        %v1028 = vpop.xlane.xlu0 %1027
        %vm1029 = vcmp.eq.f32.partialorder %v1005, %v1014
        %vm1030 = vcmp.eq.f32.partialorder %v1006, %v1016
        %vm1031 = vcmp.eq.f32.partialorder %v1007, %v1018
        %vm1032 = vcmp.eq.f32.partialorder %v1008, %v1020
        %vm1033 = vcmp.eq.f32.partialorder %v1009, %v1022
        %vm1034 = vcmp.eq.f32.partialorder %v1010, %v1024
        %vm1035 = vcmp.eq.f32.partialorder %v1011, %v1026
        %vm1036 = vcmp.eq.f32.partialorder %v1012, %v1028
        %v1037 = vsel %vm1029, %v641, 128
        %v1038 = vsel %vm1030, %v641, 128
        %v1039 = vsel %vm1031, %v641, 128
        %v1040 = vsel %vm1032, %v641, 128
        %v1041 = vsel %vm1033, %v641, 128
        %v1042 = vsel %vm1034, %v641, 128
        %v1043 = vsel %vm1035, %v641, 128
        %v1044 = vsel %vm1036, %v641, 128
        %v1045 = vand.u32 %v1037, 65535
        %v1046 = vshra.s32 %v1037, 16
        %v1047 = vcvt.s32.f32 %v1045
        %v1048 = vcvt.s32.f32 %v1046
        %1049 = vmin.xlane.f32.xlu0 %v1048
        %v1050 = vpop.xlane.xlu0 %1049
        %vm1051 = vcmp.eq.f32.partialorder %v1048, %v1050
        %v1052 = vsel %vm1051, %v1047, inf
        %1053 = vmin.xlane.f32.xlu0 %v1052
        %v1054 = vpop.xlane.xlu0 %1053
        %v1055 = vcvt.f32.s32 %v1054
        %v1056 = vcvt.f32.s32 %v1050
        %v1057 = vshll.u32 %v1056, 16
        %v1058 = vadd.s32 %v1057, %v1055
        %v1059 = vand.u32 %v1038, 65535
        %v1060 = vshra.s32 %v1038, 16
        %v1061 = vcvt.s32.f32 %v1059
        %v1062 = vcvt.s32.f32 %v1060
        %1063 = vmin.xlane.f32.xlu0 %v1062
        %v1064 = vpop.xlane.xlu0 %1063
        %vm1065 = vcmp.eq.f32.partialorder %v1062, %v1064
        %v1066 = vsel %vm1065, %v1061, inf
        %1067 = vmin.xlane.f32.xlu0 %v1066
        %v1068 = vpop.xlane.xlu0 %1067
        %v1069 = vcvt.f32.s32 %v1068
        %v1070 = vcvt.f32.s32 %v1064
        %v1071 = vshll.u32 %v1070, 16
        %v1072 = vadd.s32 %v1071, %v1069
        %v1073 = vand.u32 %v1039, 65535
        %v1074 = vshra.s32 %v1039, 16
        %v1075 = vcvt.s32.f32 %v1073
        %v1076 = vcvt.s32.f32 %v1074
        %1077 = vmin.xlane.f32.xlu0 %v1076
        %v1078 = vpop.xlane.xlu0 %1077
        %vm1079 = vcmp.eq.f32.partialorder %v1076, %v1078
        %v1080 = vsel %vm1079, %v1075, inf
        %1081 = vmin.xlane.f32.xlu0 %v1080
        %v1082 = vpop.xlane.xlu0 %1081
        %v1083 = vcvt.f32.s32 %v1082
        %v1084 = vcvt.f32.s32 %v1078
        %v1085 = vshll.u32 %v1084, 16
        %v1086 = vadd.s32 %v1085, %v1083
        %v1087 = vand.u32 %v1040, 65535
        %v1088 = vshra.s32 %v1040, 16
        %v1089 = vcvt.s32.f32 %v1087
        %v1090 = vcvt.s32.f32 %v1088
        %1091 = vmin.xlane.f32.xlu0 %v1090
        %v1092 = vpop.xlane.xlu0 %1091
        %vm1093 = vcmp.eq.f32.partialorder %v1090, %v1092
        %v1094 = vsel %vm1093, %v1089, inf
        %1095 = vmin.xlane.f32.xlu0 %v1094
        %v1096 = vpop.xlane.xlu0 %1095
        %v1097 = vcvt.f32.s32 %v1096
        %v1098 = vcvt.f32.s32 %v1092
        %v1099 = vshll.u32 %v1098, 16
        %v1100 = vadd.s32 %v1099, %v1097
        %v1101 = vand.u32 %v1041, 65535
        %v1102 = vshra.s32 %v1041, 16
        %v1103 = vcvt.s32.f32 %v1101
        %v1104 = vcvt.s32.f32 %v1102
        %1105 = vmin.xlane.f32.xlu0 %v1104
        %v1106 = vpop.xlane.xlu0 %1105
        %vm1107 = vcmp.eq.f32.partialorder %v1104, %v1106
        %v1108 = vsel %vm1107, %v1103, inf
        %1109 = vmin.xlane.f32.xlu0 %v1108
        %v1110 = vpop.xlane.xlu0 %1109
        %v1111 = vcvt.f32.s32 %v1110
        %v1112 = vcvt.f32.s32 %v1106
        %v1113 = vshll.u32 %v1112, 16
        %v1114 = vadd.s32 %v1113, %v1111
        %v1115 = vand.u32 %v1042, 65535
        %v1116 = vshra.s32 %v1042, 16
        %v1117 = vcvt.s32.f32 %v1115
        %v1118 = vcvt.s32.f32 %v1116
        %1119 = vmin.xlane.f32.xlu0 %v1118
        %v1120 = vpop.xlane.xlu0 %1119
        %vm1121 = vcmp.eq.f32.partialorder %v1118, %v1120
        %v1122 = vsel %vm1121, %v1117, inf
        %1123 = vmin.xlane.f32.xlu0 %v1122
        %v1124 = vpop.xlane.xlu0 %1123
        %v1125 = vcvt.f32.s32 %v1124
        %v1126 = vcvt.f32.s32 %v1120
        %v1127 = vshll.u32 %v1126, 16
        %v1128 = vadd.s32 %v1127, %v1125
        %v1129 = vand.u32 %v1043, 65535
        %v1130 = vshra.s32 %v1043, 16
        %v1131 = vcvt.s32.f32 %v1129
        %v1132 = vcvt.s32.f32 %v1130
        %1133 = vmin.xlane.f32.xlu0 %v1132
        %v1134 = vpop.xlane.xlu0 %1133
        %vm1135 = vcmp.eq.f32.partialorder %v1132, %v1134
        %v1136 = vsel %vm1135, %v1131, inf
        %1137 = vmin.xlane.f32.xlu0 %v1136
        %v1138 = vpop.xlane.xlu0 %1137
        %v1139 = vcvt.f32.s32 %v1138
        %v1140 = vcvt.f32.s32 %v1134
        %v1141 = vshll.u32 %v1140, 16
        %v1142 = vadd.s32 %v1141, %v1139
        %v1143 = vand.u32 %v1044, 65535
        %v1144 = vshra.s32 %v1044, 16
        %v1145 = vcvt.s32.f32 %v1143
        %v1146 = vcvt.s32.f32 %v1144
        %1147 = vmin.xlane.f32.xlu0 %v1146
        %v1148 = vpop.xlane.xlu0 %1147
        %vm1149 = vcmp.eq.f32.partialorder %v1146, %v1148
        %v1150 = vsel %vm1149, %v1145, inf
        %1151 = vmin.xlane.f32.xlu0 %v1150
        %v1152 = vpop.xlane.xlu0 %1151
        %v1153 = vcvt.f32.s32 %v1152
        %v1154 = vcvt.f32.s32 %v1148
        %v1155 = vshll.u32 %v1154, 16
        %v1156 = vadd.s32 %v1155, %v1153
        %vm1157 = vcmp.eq.s32.totalorder %v641, %v1058
        %vm1158 = vcmp.eq.s32.totalorder %v641, %v1072
        %vm1159 = vcmp.eq.s32.totalorder %v641, %v1086
        %vm1160 = vcmp.eq.s32.totalorder %v641, %v1100
        %vm1161 = vcmp.eq.s32.totalorder %v641, %v1114
        %vm1162 = vcmp.eq.s32.totalorder %v641, %v1128
        %vm1163 = vcmp.eq.s32.totalorder %v641, %v1142
        %vm1164 = vcmp.eq.s32.totalorder %v641, %v1156
        %v1165 = vsel %vm1157, %v312, -inf
        %v1166 = vsel %vm1158, %v314, -inf
        %v1167 = vsel %vm1159, %v316, -inf
        %v1168 = vsel %vm1160, %v318, -inf
        %v1169 = vsel %vm1161, %v320, -inf
        %v1170 = vsel %vm1162, %v322, -inf
        %v1171 = vsel %vm1163, %v324, -inf
        %v1172 = vsel %vm1164, %v326, -inf
        %1173 = vmax.xlane.f32.xlu0 %v1165
        %v1174 = vpop.xlane.xlu0 %1173
        %1175 = vmax.xlane.f32.xlu0 %v1166
        %v1176 = vpop.xlane.xlu0 %1175
        %1177 = vmax.xlane.f32.xlu0 %v1167
        %v1178 = vpop.xlane.xlu0 %1177
        %1179 = vmax.xlane.f32.xlu0 %v1168
        %v1180 = vpop.xlane.xlu0 %1179
        %1181 = vmax.xlane.f32.xlu0 %v1169
        %v1182 = vpop.xlane.xlu0 %1181
        %1183 = vmax.xlane.f32.xlu0 %v1170
        %v1184 = vpop.xlane.xlu0 %1183
        %1185 = vmax.xlane.f32.xlu0 %v1171
        %v1186 = vpop.xlane.xlu0 %1185
        %1187 = vmax.xlane.f32.xlu0 %v1172
        %v1188 = vpop.xlane.xlu0 %1187
        %v1189 = vsel %vm1157, -inf, %v1005
        %v1190 = vsel %vm1158, -inf, %v1006
        %v1191 = vsel %vm1159, -inf, %v1007
        %v1192 = vsel %vm1160, -inf, %v1008
        %v1193 = vsel %vm1161, -inf, %v1009
        %v1194 = vsel %vm1162, -inf, %v1010
        %v1195 = vsel %vm1163, -inf, %v1011
        %v1196 = vsel %vm1164, -inf, %v1012
        %vm1197 = vcmp.eq.s32.totalorder %v641, 0
        %v1198 = vsel %vm1197, %v1174, 0.0
        %v1199 = vsel %vm1197, %v1176, 0.0
        %v1200 = vsel %vm1197, %v1178, 0.0
        %v1201 = vsel %vm1197, %v1180, 0.0
        %v1202 = vsel %vm1197, %v1182, 0.0
        %v1203 = vsel %vm1197, %v1184, 0.0
        %v1204 = vsel %vm1197, %v1186, 0.0
        %v1205 = vsel %vm1197, %v1188, 0.0
        %vm1206 = vcmp.eq.s32.totalorder %v641, 2
        %v1207 = vcvt.s32.f32 %v1058
        %v1208 = vcvt.s32.f32 %v1072
        %v1209 = vcvt.s32.f32 %v1086
        %v1210 = vcvt.s32.f32 %v1100
        %v1211 = vcvt.s32.f32 %v1114
        %v1212 = vcvt.s32.f32 %v1128
        %v1213 = vcvt.s32.f32 %v1142
        %v1214 = vcvt.s32.f32 %v1156
        %v1215 = vsel %vm1206, %v1207, %v1198
        %v1216 = vsel %vm1206, %v1208, %v1199
        %v1217 = vsel %vm1206, %v1209, %v1200
        %v1218 = vsel %vm1206, %v1210, %v1201
        %v1219 = vsel %vm1206, %v1211, %v1202
        %v1220 = vsel %vm1206, %v1212, %v1203
        %v1221 = vsel %vm1206, %v1213, %v1204
        %v1222 = vsel %vm1206, %v1214, %v1205
        %1223 = vmax.xlane.f32.xlu0 %v1189
        %v1224 = vpop.xlane.xlu0 %1223
        %1225 = vmax.xlane.f32.xlu0 %v1190
        %v1226 = vpop.xlane.xlu0 %1225
        %1227 = vmax.xlane.f32.xlu0 %v1191
        %v1228 = vpop.xlane.xlu0 %1227
        %1229 = vmax.xlane.f32.xlu0 %v1192
        %v1230 = vpop.xlane.xlu0 %1229
        %1231 = vmax.xlane.f32.xlu0 %v1193
        %v1232 = vpop.xlane.xlu0 %1231
        %1233 = vmax.xlane.f32.xlu0 %v1194
        %v1234 = vpop.xlane.xlu0 %1233
        %1235 = vmax.xlane.f32.xlu0 %v1195
        %v1236 = vpop.xlane.xlu0 %1235
        %1237 = vmax.xlane.f32.xlu0 %v1196
        %v1238 = vpop.xlane.xlu0 %1237
        %vm1239 = vcmp.eq.f32.partialorder %v1189, %v1224
        %vm1240 = vcmp.eq.f32.partialorder %v1190, %v1226
        %vm1241 = vcmp.eq.f32.partialorder %v1191, %v1228
        %vm1242 = vcmp.eq.f32.partialorder %v1192, %v1230
        %vm1243 = vcmp.eq.f32.partialorder %v1193, %v1232
        %vm1244 = vcmp.eq.f32.partialorder %v1194, %v1234
        %vm1245 = vcmp.eq.f32.partialorder %v1195, %v1236
        %vm1246 = vcmp.eq.f32.partialorder %v1196, %v1238
        %v1247 = vsel %vm1239, %v641, 128
        %v1248 = vsel %vm1240, %v641, 128
        %v1249 = vsel %vm1241, %v641, 128
        %v1250 = vsel %vm1242, %v641, 128
        %v1251 = vsel %vm1243, %v641, 128
        %v1252 = vsel %vm1244, %v641, 128
        %v1253 = vsel %vm1245, %v641, 128
        %v1254 = vsel %vm1246, %v641, 128
        %v1255 = vand.u32 %v1247, 65535
        %v1256 = vshra.s32 %v1247, 16
        %v1257 = vcvt.s32.f32 %v1255
        %v1258 = vcvt.s32.f32 %v1256
        %1259 = vmin.xlane.f32.xlu0 %v1258
        %v1260 = vpop.xlane.xlu0 %1259
        %vm1261 = vcmp.eq.f32.partialorder %v1258, %v1260
        %v1262 = vsel %vm1261, %v1257, inf
        %1263 = vmin.xlane.f32.xlu0 %v1262
        %v1264 = vpop.xlane.xlu0 %1263
        %v1265 = vcvt.f32.s32 %v1264
        %v1266 = vcvt.f32.s32 %v1260
        %v1267 = vshll.u32 %v1266, 16
        %v1268 = vadd.s32 %v1267, %v1265
        %v1269 = vand.u32 %v1248, 65535
        %v1270 = vshra.s32 %v1248, 16
        %v1271 = vcvt.s32.f32 %v1269
        %v1272 = vcvt.s32.f32 %v1270
        %1273 = vmin.xlane.f32.xlu0 %v1272
        %v1274 = vpop.xlane.xlu0 %1273
        %vm1275 = vcmp.eq.f32.partialorder %v1272, %v1274
        %v1276 = vsel %vm1275, %v1271, inf
        %1277 = vmin.xlane.f32.xlu0 %v1276
        %v1278 = vpop.xlane.xlu0 %1277
        %v1279 = vcvt.f32.s32 %v1278
        %v1280 = vcvt.f32.s32 %v1274
        %v1281 = vshll.u32 %v1280, 16
        %v1282 = vadd.s32 %v1281, %v1279
        %v1283 = vand.u32 %v1249, 65535
        %v1284 = vshra.s32 %v1249, 16
        %v1285 = vcvt.s32.f32 %v1283
        %v1286 = vcvt.s32.f32 %v1284
        %1287 = vmin.xlane.f32.xlu0 %v1286
        %v1288 = vpop.xlane.xlu0 %1287
        %vm1289 = vcmp.eq.f32.partialorder %v1286, %v1288
        %v1290 = vsel %vm1289, %v1285, inf
        %1291 = vmin.xlane.f32.xlu0 %v1290
        %v1292 = vpop.xlane.xlu0 %1291
        %v1293 = vcvt.f32.s32 %v1292
        %v1294 = vcvt.f32.s32 %v1288
        %v1295 = vshll.u32 %v1294, 16
        %v1296 = vadd.s32 %v1295, %v1293
        %v1297 = vand.u32 %v1250, 65535
        %v1298 = vshra.s32 %v1250, 16
        %v1299 = vcvt.s32.f32 %v1297
        %v1300 = vcvt.s32.f32 %v1298
        %1301 = vmin.xlane.f32.xlu0 %v1300
        %v1302 = vpop.xlane.xlu0 %1301
        %vm1303 = vcmp.eq.f32.partialorder %v1300, %v1302
        %v1304 = vsel %vm1303, %v1299, inf
        %1305 = vmin.xlane.f32.xlu0 %v1304
        %v1306 = vpop.xlane.xlu0 %1305
        %v1307 = vcvt.f32.s32 %v1306
        %v1308 = vcvt.f32.s32 %v1302
        %v1309 = vshll.u32 %v1308, 16
        %v1310 = vadd.s32 %v1309, %v1307
        %v1311 = vand.u32 %v1251, 65535
        %v1312 = vshra.s32 %v1251, 16
        %v1313 = vcvt.s32.f32 %v1311
        %v1314 = vcvt.s32.f32 %v1312
        %1315 = vmin.xlane.f32.xlu0 %v1314
        %v1316 = vpop.xlane.xlu0 %1315
        %vm1317 = vcmp.eq.f32.partialorder %v1314, %v1316
        %v1318 = vsel %vm1317, %v1313, inf
        %1319 = vmin.xlane.f32.xlu0 %v1318
        %v1320 = vpop.xlane.xlu0 %1319
        %v1321 = vcvt.f32.s32 %v1320
        %v1322 = vcvt.f32.s32 %v1316
        %v1323 = vshll.u32 %v1322, 16
        %v1324 = vadd.s32 %v1323, %v1321
        %v1325 = vand.u32 %v1252, 65535
        %v1326 = vshra.s32 %v1252, 16
        %v1327 = vcvt.s32.f32 %v1325
        %v1328 = vcvt.s32.f32 %v1326
        %1329 = vmin.xlane.f32.xlu0 %v1328
        %v1330 = vpop.xlane.xlu0 %1329
        %vm1331 = vcmp.eq.f32.partialorder %v1328, %v1330
        %v1332 = vsel %vm1331, %v1327, inf
        %1333 = vmin.xlane.f32.xlu0 %v1332
        %v1334 = vpop.xlane.xlu0 %1333
        %v1335 = vcvt.f32.s32 %v1334
        %v1336 = vcvt.f32.s32 %v1330
        %v1337 = vshll.u32 %v1336, 16
        %v1338 = vadd.s32 %v1337, %v1335
        %v1339 = vand.u32 %v1253, 65535
        %v1340 = vshra.s32 %v1253, 16
        %v1341 = vcvt.s32.f32 %v1339
        %v1342 = vcvt.s32.f32 %v1340
        %1343 = vmin.xlane.f32.xlu0 %v1342
        %v1344 = vpop.xlane.xlu0 %1343
        %vm1345 = vcmp.eq.f32.partialorder %v1342, %v1344
        %v1346 = vsel %vm1345, %v1341, inf
        %1347 = vmin.xlane.f32.xlu0 %v1346
        %v1348 = vpop.xlane.xlu0 %1347
        %v1349 = vcvt.f32.s32 %v1348
        %v1350 = vcvt.f32.s32 %v1344
        %v1351 = vshll.u32 %v1350, 16
        %v1352 = vadd.s32 %v1351, %v1349
        %v1353 = vand.u32 %v1254, 65535
        %v1354 = vshra.s32 %v1254, 16
        %v1355 = vcvt.s32.f32 %v1353
        %v1356 = vcvt.s32.f32 %v1354
        %1357 = vmin.xlane.f32.xlu0 %v1356
        %v1358 = vpop.xlane.xlu0 %1357
        %vm1359 = vcmp.eq.f32.partialorder %v1356, %v1358
        %v1360 = vsel %vm1359, %v1355, inf
        %1361 = vmin.xlane.f32.xlu0 %v1360
        %v1362 = vpop.xlane.xlu0 %1361
        %v1363 = vcvt.f32.s32 %v1362
        %v1364 = vcvt.f32.s32 %v1358
        %v1365 = vshll.u32 %v1364, 16
        %v1366 = vadd.s32 %v1365, %v1363
        %vm1367 = vcmp.eq.s32.totalorder %v641, %v1268
        %vm1368 = vcmp.eq.s32.totalorder %v641, %v1282
        %vm1369 = vcmp.eq.s32.totalorder %v641, %v1296
        %vm1370 = vcmp.eq.s32.totalorder %v641, %v1310
        %vm1371 = vcmp.eq.s32.totalorder %v641, %v1324
        %vm1372 = vcmp.eq.s32.totalorder %v641, %v1338
        %vm1373 = vcmp.eq.s32.totalorder %v641, %v1352
        %vm1374 = vcmp.eq.s32.totalorder %v641, %v1366
        %v1375 = vsel %vm1367, %v312, -inf
        %v1376 = vsel %vm1368, %v314, -inf
        %v1377 = vsel %vm1369, %v316, -inf
        %v1378 = vsel %vm1370, %v318, -inf
        %v1379 = vsel %vm1371, %v320, -inf
        %v1380 = vsel %vm1372, %v322, -inf
        %v1381 = vsel %vm1373, %v324, -inf
        %v1382 = vsel %vm1374, %v326, -inf
        %1383 = vmax.xlane.f32.xlu0 %v1375
        %v1384 = vpop.xlane.xlu0 %1383
        %1385 = vmax.xlane.f32.xlu0 %v1376
        %v1386 = vpop.xlane.xlu0 %1385
        %1387 = vmax.xlane.f32.xlu0 %v1377
        %v1388 = vpop.xlane.xlu0 %1387
        %1389 = vmax.xlane.f32.xlu0 %v1378
        %v1390 = vpop.xlane.xlu0 %1389
        %1391 = vmax.xlane.f32.xlu0 %v1379
        %v1392 = vpop.xlane.xlu0 %1391
        %1393 = vmax.xlane.f32.xlu0 %v1380
        %v1394 = vpop.xlane.xlu0 %1393
        %1395 = vmax.xlane.f32.xlu0 %v1381
        %v1396 = vpop.xlane.xlu0 %1395
        %1397 = vmax.xlane.f32.xlu0 %v1382
        %v1398 = vpop.xlane.xlu0 %1397
        %vm1399 = vcmp.eq.s32.totalorder %v641, 1
        %v1400 = vsel %vm1399, %v1384, %v1215
        %v1401 = vsel %vm1399, %v1386, %v1216
        %v1402 = vsel %vm1399, %v1388, %v1217
        %v1403 = vsel %vm1399, %v1390, %v1218
        %v1404 = vsel %vm1399, %v1392, %v1219
        %v1405 = vsel %vm1399, %v1394, %v1220
        %v1406 = vsel %vm1399, %v1396, %v1221
        %v1407 = vsel %vm1399, %v1398, %v1222
        %vm1408 = vcmp.eq.s32.totalorder %v641, 3
        %v1409 = vcvt.s32.f32 %v1268
        %v1410 = vcvt.s32.f32 %v1282
        %v1411 = vcvt.s32.f32 %v1296
        %v1412 = vcvt.s32.f32 %v1310
        %v1413 = vcvt.s32.f32 %v1324
        %v1414 = vcvt.s32.f32 %v1338
        %v1415 = vcvt.s32.f32 %v1352
        %v1416 = vcvt.s32.f32 %v1366
        %v1417 = vsel %vm1408, %v1409, %v1400
        %v1418 = vsel %vm1408, %v1410, %v1401
        %v1419 = vsel %vm1408, %v1411, %v1402
        %v1420 = vsel %vm1408, %v1412, %v1403
        %v1421 = vsel %vm1408, %v1413, %v1404
        %v1422 = vsel %vm1408, %v1414, %v1405
        %v1423 = vsel %vm1408, %v1415, %v1406
        %v1424 = vsel %vm1408, %v1416, %v1407
        %1425 = vst [vmem:[%s164] sm:$0xff] %v1417
        %1426 = vst [vmem:[%s164 + $0x8] sm:$0xff] %v1418
        %1427 = vst [vmem:[%s164 + $0x10] sm:$0xff] %v1419
        %1428 = vst [vmem:[%s164 + $0x18] sm:$0xff] %v1420
        %1429 = vst [vmem:[%s164 + $0x20] sm:$0xff] %v1421
        %1430 = vst [vmem:[%s164 + $0x28] sm:$0xff] %v1422
        %1431 = vst [vmem:[%s164 + $0x30] sm:$0xff] %v1423
        %1432 = vst [vmem:[%s164 + $0x38] sm:$0xff] %v1424
        %s1433 = sand.u32 %s93, 1
        %s1434 = scalar_lea.sflag [#allocation3], %s1433
        %s1435 = sand.u32 %s93, 1
        %s1436 = smul.addr %s1435, 64
        %s1437 = scalar_lea.vmem [#allocation2], %s1436
        // Predicated region
        $region33: #{tpu_custom_call.1} parent=31 // pred_check
          %p1438 = pneg %p103
        $region34: #{tpu_custom_call.1} parent=31 // pred_check_branch
          %1440 = sbr.rel (%p1438) target = $region36
        $region35: #{tpu_custom_call.1} parent=31 // pred_region
          %s1441 = smul.u32 8, %s17
          %s1443 = ssub.s32 1024, 1024
          %1444 = vsyncadd %s1434, %s1443
          %s1445 = smul.addr %s1441, 128
          %s1446 = scalar_lea.hbm %s3, %s1445
          %s1447 = sshll.u32 %s1437, 4
          %s1448 = int_to_ptr.vmem [resolvable:$true] %s1447
          %1453 = dma.vmem_to_hbm [thread:$0]  %s1448, 1024, %s1446, %s1434, 128, 128, 8
        $region36: #{tpu_custom_call.1} parent=31 // pred_fallthru
          _
      $region32: #{tpu_custom_call.1} parent=5 // pred_fallthru
        _
      %p1454 = scmp.le.s32.totalorder 2, %s12
      // Predicated region
      $region37: #{tpu_custom_call.1} parent=5 // pred_check
        %p1455 = pneg %p1454
      $region38: #{tpu_custom_call.1} parent=5 // pred_check_branch
        %1457 = sbr.rel (%p1455) target = $region40
      $region39: #{tpu_custom_call.1} parent=5 // pred_region
        %s1458 = ssub.s32 %s12, 2
        // Predicated region
        $region41: #{tpu_custom_call.1} parent=39 // pred_check
          %p1459 = pneg %p109
        $region42: #{tpu_custom_call.1} parent=39 // pred_check_branch
          %1461 = sbr.rel (%p1459) target = $region44
        $region43: #{tpu_custom_call.1} parent=39 // pred_region
          %s1462 = sand.u32 %s94, 1
          %s1463 = scalar_lea.sflag [#allocation3], %s1462
          %s1464 = sand.u32 %s94, 1
          %s1465 = smul.addr %s1464, 64
          %s1466 = scalar_lea.vmem [#allocation2], %s1465
          %1467 = dma.done %s1463, 1024
        $region44: #{tpu_custom_call.1} parent=39 // pred_fallthru
          _
      $region40: #{tpu_custom_call.1} parent=5 // pred_fallthru
        _
    $region6: #{tpu_custom_call.1} parent=1 // loop_footer
      %s16 = sadd.s32 1, %s12
    $region7: #{tpu_custom_call.1} parent=1 // loop_footer_branch
      %11 = sbr.rel target = $region3
    $region8: #{tpu_custom_call.1} parent=1 // loop_exit
      _
    %1468 = vsyncpa [#allocation3], 1
    %s1469 = scalar_lea.sflag [#allocation3], 1
    %1470 = vsyncpa %s1469, 1

// kernel: tpu_custom_call.1
$region0: #{tpu_custom_call.1}
  #allocation0 [shape = 'u32[]', space=smem, size = 0x4, offset = 0x4, fixed_abs, tag = 'smem constant byte address 0x4 - core index']
  #allocation1 [shape = 'u32[144,128]{1,0:T(1,128)}', space=vmem, size = 0x12000, scoped, tag = 'internal scratch']
  %s0 = inlined_call_operand.vmem [shape: f32[128,32], index: 0, kind: input, shape index: {}]
  %s1 = inlined_call_operand.vmem [shape: bf16[32,128], index: 1, kind: input, shape index: {}]
  %s2 = inlined_call_operand.vmem [shape: f32[1,128], index: 2, kind: input, shape index: {}]
  %s3 = inlined_call_operand.hbm [shape: f32[128,128], index: 3, kind: output, shape index: {}]
  %s4 = sld [smem:[#allocation0]]
  $region45: #{tpu_custom_call.1} parent=0
    _
  %s6 = ssub.s32 1, %s4
  %s7 = scalar_select 0, %s6, %s4
  $region1: #{tpu_custom_call.1} parent=0
    #allocation2 [shape = 'u8[65536]{0}', space=vmem, size = 0x10000, scoped, tag = 'output window, operand 0']
    #allocation3 [shape = 's32[2]{0}', space=sflag, size = 0x8, scoped, tag = 'scoped memory for tpu_custom_call.1']
    %8 = vsyncpa [#allocation3], 0
    %s9 = scalar_lea.sflag [#allocation3], 1
    %10 = vsyncpa %s9, 0
    loop: start=0, step=1, limit=4
    $region2: #{tpu_custom_call.1} parent=1 // loop_pre_header
      _
    $region3: #{tpu_custom_call.1} parent=1 // loop_header
      %s12 = sphi 0, %s16
      %p13 = scmp.ge.s32.totalorder %s12, 4
      %s22 = sphi 0, %s24
      %s25 = sphi 0, %s22
      %s26 = sphi 0, %s25
      %s42 = sphi 0, %s26
      %s46 = sphi 0, %s46
      %s48 = sphi 0, %s46
      %s49 = sphi 0, %s48
      %s63 = sphi 0, %s49
      %s67 = sphi 0, %s67
      %s69 = sphi 0, %s67
      %s70 = sphi 0, %s69
      %s84 = sphi 0, %s70
      %s90 = sphi 0, %s92
      %s93 = sphi 0, %s90
      %s94 = sphi 0, %s93
      %s110 = sphi 0, %s94
    $region4: #{tpu_custom_call.1} parent=1 // loop_header_branch
      %15 = sbr.rel (%p13) target = $region8
    $region5: #{tpu_custom_call.1} parent=1 // loop_body
      %s17 = ssub.s32 %s12, 1
      %s18 = ssub.s32 %s12, 2
      %s19 = sadd.s32 %s12, 1
      %s20 = ssub.s32 %s12, %s19
      %p21 = scmp.eq.s32.totalorder %s20, 0
      %s23 = sadd.s32 %s22, 1
      %s24 = scalar_select %p21, %s22, %s23
      %p27 = pneg %p21
      %p28 = scmp.eq.s32.totalorder %s12, 1
      %p29 = por %p27, %p28
      %p30 = scmp.ne.s32.totalorder %s22, %s25
      %p31 = scmp.eq.s32.totalorder %s12, 0
      %p32 = por %p30, %p31
      %p33 = scmp.ne.s32.totalorder %s22, %s25
      %p34 = scmp.eq.s32.totalorder %s17, 1
      %p35 = por %p33, %p34
      %p36 = scmp.ne.s32.totalorder %s25, %s26
      %p37 = scmp.eq.s32.totalorder %s17, 0
      %p38 = por %p36, %p37
      %p39 = scmp.ne.s32.totalorder %s25, %s26
      %p40 = scmp.eq.s32.totalorder %s18, 1
      %p41 = por %p39, %p40
      %p43 = scmp.ne.s32.totalorder %s26, %s42
      %p44 = scmp.eq.s32.totalorder %s18, 0
      %p45 = por %p43, %p44
      %s47 = sadd.s32 %s46, 1
      %p50 = scmp.eq.s32.totalorder %s12, 1
      %p51 = scmp.ne.s32.totalorder %s46, %s48
      %p52 = scmp.eq.s32.totalorder %s12, 0
      %p53 = por %p51, %p52
      %p54 = scmp.ne.s32.totalorder %s46, %s48
      %p55 = scmp.eq.s32.totalorder %s17, 1
      %p56 = por %p54, %p55
      %p57 = scmp.ne.s32.totalorder %s48, %s49
      %p58 = scmp.eq.s32.totalorder %s17, 0
      %p59 = por %p57, %p58
      %p60 = scmp.ne.s32.totalorder %s48, %s49
      %p61 = scmp.eq.s32.totalorder %s18, 1
      %p62 = por %p60, %p61
      %p64 = scmp.ne.s32.totalorder %s49, %s63
      %p65 = scmp.eq.s32.totalorder %s18, 0
      %p66 = por %p64, %p65
      %s68 = sadd.s32 %s67, 1
      %p71 = scmp.eq.s32.totalorder %s12, 1
      %p72 = scmp.ne.s32.totalorder %s67, %s69
      %p73 = scmp.eq.s32.totalorder %s12, 0
      %p74 = por %p72, %p73
      %p75 = scmp.ne.s32.totalorder %s67, %s69
      %p76 = scmp.eq.s32.totalorder %s17, 1
      %p77 = por %p75, %p76
      %p78 = scmp.ne.s32.totalorder %s69, %s70
      %p79 = scmp.eq.s32.totalorder %s17, 0
      %p80 = por %p78, %p79
      %p81 = scmp.ne.s32.totalorder %s69, %s70
      %p82 = scmp.eq.s32.totalorder %s18, 1
      %p83 = por %p81, %p82
      %p85 = scmp.ne.s32.totalorder %s70, %s84
      %p86 = scmp.eq.s32.totalorder %s18, 0
      %p87 = por %p85, %p86
      %s88 = ssub.s32 %s12, %s19
      %p89 = scmp.eq.s32.totalorder %s88, 0
      %s91 = sadd.s32 %s90, 1
      %s92 = scalar_select %p89, %s90, %s91
      %p95 = pneg %p89
      %p96 = scmp.eq.s32.totalorder %s12, 1
      %p97 = por %p95, %p96
      %p98 = scmp.ne.s32.totalorder %s90, %s93
      %p99 = scmp.eq.s32.totalorder %s12, 0
      %p100 = por %p98, %p99
      %p101 = scmp.ne.s32.totalorder %s90, %s93
      %p102 = scmp.eq.s32.totalorder %s17, 1
      %p103 = por %p101, %p102
      %p104 = scmp.ne.s32.totalorder %s93, %s94
      %p105 = scmp.eq.s32.totalorder %s17, 0
      %p106 = por %p104, %p105
      %p107 = scmp.ne.s32.totalorder %s93, %s94
      %p108 = scmp.eq.s32.totalorder %s18, 1
      %p109 = por %p107, %p108
      %p111 = scmp.ne.s32.totalorder %s94, %s110
      %p112 = scmp.eq.s32.totalorder %s18, 0
      %p113 = por %p111, %p112
      %p114 = scmp.le.s32.totalorder 1, %s12
      %p115 = scmp.lt.s32.totalorder %s12, 3
      %p116 = pnand %p114, %p115
      %p117 = pneg %p116
      // Predicated region
      $region9: #{tpu_custom_call.1} parent=5 // pred_check
        _
      $region10: #{tpu_custom_call.1} parent=5 // pred_check_branch
        %119 = sbr.rel (%p116) target = $region12
      $region11: #{tpu_custom_call.1} parent=5 // pred_region
        %s120 = ssub.s32 %s12, 1
        // Predicated region
        $region13: #{tpu_custom_call.1} parent=11 // pred_check
          %p121 = pneg %p59
        $region14: #{tpu_custom_call.1} parent=11 // pred_check_branch
          %123 = sbr.rel (%p121) target = $region16
        $region15: #{tpu_custom_call.1} parent=11 // pred_region
          _
        $region16: #{tpu_custom_call.1} parent=11 // pred_fallthru
          _
        // Predicated region
        $region17: #{tpu_custom_call.1} parent=11 // pred_check
          %p124 = pneg %p80
        $region18: #{tpu_custom_call.1} parent=11 // pred_check_branch
          %126 = sbr.rel (%p124) target = $region20
        $region19: #{tpu_custom_call.1} parent=11 // pred_region
          _
        $region20: #{tpu_custom_call.1} parent=11 // pred_fallthru
          _
      $region12: #{tpu_custom_call.1} parent=5 // pred_fallthru
        _
      %p127 = scmp.lt.s32.totalorder %s12, 2
      // Predicated region
      $region21: #{tpu_custom_call.1} parent=5 // pred_check
        %p128 = pneg %p127
      $region22: #{tpu_custom_call.1} parent=5 // pred_check_branch
        %130 = sbr.rel (%p128) target = $region24
      $region23: #{tpu_custom_call.1} parent=5 // pred_region
        // Predicated region
        $region25: #{tpu_custom_call.1} parent=23 // pred_check
          %p131 = pneg %p32
        $region26: #{tpu_custom_call.1} parent=23 // pred_check_branch
          %133 = sbr.rel (%p131) target = $region28
        $region27: #{tpu_custom_call.1} parent=23 // pred_region
          %s134 = smul.u32 8, %s12
          %p135 = scmp.lt.s32.totalorder %s134, 15
          %s136 = scalar_select %p135, %s134, 15
          %s137 = smul.addr %s136, 8
          %s138 = scalar_lea.vmem %s0, %s137
          %s139 = smul.u32 8, %s12
        $region28: #{tpu_custom_call.1} parent=23 // pred_fallthru
          _
      $region24: #{tpu_custom_call.1} parent=5 // pred_fallthru
        _
      %p140 = scmp.le.s32.totalorder 1, %s12
      %p141 = scmp.lt.s32.totalorder %s12, 3
      %p142 = pnand %p140, %p141
      %p143 = pneg %p142
      // Predicated region
      $region29: #{tpu_custom_call.1} parent=5 // pred_check
        _
      $region30: #{tpu_custom_call.1} parent=5 // pred_check_branch
        %145 = sbr.rel (%p142) target = $region32
      $region31: #{tpu_custom_call.1} parent=5 // pred_region
        %s146 = ssub.s32 %s12, 1
        %s147 = smul.u32 8, %s17
        %p148 = scmp.lt.s32.totalorder %s147, 15
        %s149 = scalar_select %p148, %s147, 15
        %s150 = smul.addr %s149, 8
        %s151 = scalar_lea.vmem %s0, %s150
        %p152 = pneg %p38
        %p153 = pneg %p35
        %p154 = pneg %p59
        %p155 = pneg %p56
        %p156 = pneg %p80
        %p157 = pneg %p77
        %p158 = pneg %p106
        %p159 = pneg %p103
        %s160 = sand.u32 %s93, 1
        %s161 = scalar_lea.sflag [#allocation3], %s160
        %s162 = sand.u32 %s93, 1
        %s163 = smul.addr %s162, 64
        %s164 = scalar_lea.vmem [#allocation2], %s163
        %s165 = smul.u32 8, %s17
        %p166 = scmp.lt.s32.totalorder %s165, 15
        %s167 = scalar_select %p166, %s165, 15
        %s168 = smul.addr %s167, 8
        %s169 = scalar_lea.vmem %s0, %s168
        %s170 = smul.u32 8, %s17
        %s171 = smul.u32 8, %s17
        %v173 = vld [vmem:[%s169] sm:$0xff]
        %v174 = vld [vmem:[%s169 + $0x8] sm:$0xff]
        %v175 = vld [vmem:[%s169 + $0x10] sm:$0xff]
        %v176 = vld [vmem:[%s169 + $0x18] sm:$0xff]
        %v177 = vld [vmem:[%s169 + $0x20] sm:$0xff]
        %v178 = vld [vmem:[%s169 + $0x28] sm:$0xff]
        %v179 = vld [vmem:[%s169 + $0x30] sm:$0xff]
        %v180 = vld [vmem:[%s169 + $0x38] sm:$0xff]
        %v181 = vpack.c.bf16 %v174, %v173
        %v182 = vpack.c.bf16 %v176, %v175
        %v183 = vpack.c.bf16 %v178, %v177
        %v184 = vpack.c.bf16 %v180, %v179
        %v185 = vld [vmem:[%s1] sm:$0xf]
        %v186 = vld [vmem:[%s1 + $0x4] sm:$0xf]
        %v187 = vld [vmem:[%s1 + $0x8] sm:$0xf]
        %v188 = vld [vmem:[%s1 + $0xc] sm:$0xf]
        %v193 = vunpack.c.l.b16 %v185
        %v194 = vunpack.c.l.b16 %v186
        %v195 = vunpack.c.l.b16 %v187
        %v196 = vunpack.c.l.b16 %v188
        %v197 = vpack.c.b16 %v194, %v193
        %v198 = vpack.c.b16 %v196, %v195
        %vm201 = vcmask 261120
        %v203 = vsel %vm201, %v181, 0
        %v206 = vsel %vm201, %v182, 0
        %v209 = vsel %vm201, %v183, 0
        %v212 = vsel %vm201, %v184, 0
        %214 = vmatprep.subr.bf16.mxu0 0
        %215 = vmatpush1.bf16.msra.mxu0 %v197
        %216 = vmatprep.subr.bf16.mxu0 0
        %217 = vmatpush1.bf16.msra.mxu0 %v198
        %218 = vmatprep.subr.bf16.mxu0 0
        %219 = vmatpush1.bf16.msra.mxu0 0
        %220 = vmatprep.subr.bf16.mxu0 0
        %221 = vmatpush1.bf16.msra.mxu0 0
        %222 = vmatprep.subr.bf16.mxu0 0
        %223 = vmatpush1.bf16.msra.mxu0 0
        %224 = vmatprep.subr.bf16.mxu0 0
        %225 = vmatpush1.bf16.msra.mxu0 0
        %226 = vmatprep.subr.bf16.mxu0 0
        %227 = vmatpush1.bf16.msra.mxu0 0
        %228 = vmatprep.subr.bf16.mxu0 0
        %229 = vmatpush1.bf16.msra.mxu0 0
        %230 = vmatprep.subr.bf16.mxu0 0
        %231 = vmatpush1.bf16.msra.mxu0 0
        %232 = vmatprep.subr.bf16.mxu0 0
        %233 = vmatpush1.bf16.msra.mxu0 0
        %234 = vmatprep.subr.bf16.mxu0 0
        %235 = vmatpush1.bf16.msra.mxu0 0
        %236 = vmatprep.subr.bf16.mxu0 0
        %237 = vmatpush1.bf16.msra.mxu0 0
        %238 = vmatprep.subr.bf16.mxu0 0
        %239 = vmatpush1.bf16.msra.mxu0 0
        %240 = vmatprep.subr.bf16.mxu0 0
        %241 = vmatpush1.bf16.msra.mxu0 0
        %242 = vmatprep.subr.bf16.mxu0 0
        %243 = vmatpush1.bf16.msra.mxu0 0
        %244 = vmatprep.subr.bf16.mxu0 0
        %245 = vmatpush1.bf16.msra.mxu0 0
        %246 = vmatprep.mubr.bf16.mxu0 0
        %247 = vmatmul.mubr.bf16.gmra.mrb[0].mxu0 %v203
        %v248 = vpop.f32.mrb[0].mxu0
        %v249 = vadd.f32 0.0, %v248
        %v250 = vpop.f32.mrb[0].mxu0
        %v251 = vpop.f32.mrb[0].mxu0
        %v252 = vadd.f32 0.0, %v251
        %v253 = vpop.f32.mrb[0].mxu0
        %254 = vmatprep.mubr.bf16.mxu0 0
        %255 = vmatmul.mubr.bf16.gmra.mrb[0].mxu0 %v206
        %v256 = vpop.f32.mrb[0].mxu0
        %v257 = vadd.f32 0.0, %v256
        %v258 = vpop.f32.mrb[0].mxu0
        %v259 = vpop.f32.mrb[0].mxu0
        %v260 = vadd.f32 0.0, %v259
        %v261 = vpop.f32.mrb[0].mxu0
        %262 = vmatprep.mubr.bf16.mxu0 0
        %263 = vmatmul.mubr.bf16.gmra.mrb[0].mxu0 %v209
        %v264 = vpop.f32.mrb[0].mxu0
        %v265 = vadd.f32 0.0, %v264
        %v266 = vpop.f32.mrb[0].mxu0
        %v267 = vpop.f32.mrb[0].mxu0
        %v268 = vadd.f32 0.0, %v267
        %v269 = vpop.f32.mrb[0].mxu0
        %270 = vmatprep.mubr.bf16.mxu0 0
        %271 = vmatmul.mubr.bf16.gmra.mrb[0].mxu0 %v212
        %v272 = vpop.f32.mrb[0].mxu0
        %v273 = vadd.f32 0.0, %v272
        %v274 = vpop.f32.mrb[0].mxu0
        %v275 = vpop.f32.mrb[0].mxu0
        %v276 = vadd.f32 0.0, %v275
        %v277 = vpop.f32.mrb[0].mxu0
        %278 = vdwg.mxu0
        %v279 = vxor.u32 %v249, 2147483648
        %v280 = vxor.u32 %v252, 2147483648
        %v281 = vxor.u32 %v257, 2147483648
        %v282 = vxor.u32 %v260, 2147483648
        %v283 = vxor.u32 %v265, 2147483648
        %v284 = vxor.u32 %v268, 2147483648
        %v285 = vxor.u32 %v273, 2147483648
        %v286 = vxor.u32 %v276, 2147483648
        %v287 = vmul.f32 %v279, 1.442695
        %v288 = vpow.pop %v287
        %v289 = vmul.f32 %v280, 1.442695
        %v290 = vpow.pop %v289
        %v291 = vmul.f32 %v281, 1.442695
        %v292 = vpow.pop %v291
        %v293 = vmul.f32 %v282, 1.442695
        %v294 = vpow.pop %v293
        %v295 = vmul.f32 %v283, 1.442695
        %v296 = vpow.pop %v295
        %v297 = vmul.f32 %v284, 1.442695
        %v298 = vpow.pop %v297
        %v299 = vmul.f32 %v285, 1.442695
        %v300 = vpow.pop %v299
        %v301 = vmul.f32 %v286, 1.442695
        %v302 = vpow.pop %v301
        %v303 = vadd.f32 %v288, 1.0
        %v304 = vadd.f32 %v290, 1.0
        %v305 = vadd.f32 %v292, 1.0
        %v306 = vadd.f32 %v294, 1.0
        %v307 = vadd.f32 %v296, 1.0
        %v308 = vadd.f32 %v298, 1.0
        %v309 = vadd.f32 %v300, 1.0
        %v310 = vadd.f32 %v302, 1.0
        %v311 = vrcp.pop %v303
        %v312 = vmul.f32 1.0, %v311
        %v313 = vrcp.pop %v304
        %v314 = vmul.f32 1.0, %v313
        %v315 = vrcp.pop %v305
        %v316 = vmul.f32 1.0, %v315
        %v317 = vrcp.pop %v306
        %v318 = vmul.f32 1.0, %v317
        %v319 = vrcp.pop %v307
        %v320 = vmul.f32 1.0, %v319
        %v321 = vrcp.pop %v308
        %v322 = vmul.f32 1.0, %v321
        %v323 = vrcp.pop %v309
        %v324 = vmul.f32 1.0, %v323
        %v325 = vrcp.pop %v310
        %v326 = vmul.f32 1.0, %v325
        %v327 = vld [vmem:[%s2] sm:$0x1]
        %v329 = vlaneseq
        %v330 = vshrl.u32 %v329, 7
        %v331 = vsub.s32 0, %v330
        %v332 = vrot.slane %v327, %v331
        %v334 = vadd.f32 %v312, %v332
        %v335 = vadd.f32 %v314, %v332
        %v336 = vadd.f32 %v316, %v332
        %v337 = vadd.f32 %v318, %v332
        %v338 = vadd.f32 %v320, %v332
        %v339 = vadd.f32 %v322, %v332
        %v340 = vadd.f32 %v324, %v332
        %v341 = vadd.f32 %v326, %v332
        %342 = vrot.lane.b32.xlu0 %v334, 127
        %v343 = vpop.permute.xlu0 %342
        %344 = vrot.lane.b32.xlu0 %v335, 127
        %v345 = vpop.permute.xlu0 %344
        %346 = vrot.lane.b32.xlu0 %v336, 127
        %v347 = vpop.permute.xlu0 %346
        %348 = vrot.lane.b32.xlu0 %v337, 127
        %v349 = vpop.permute.xlu0 %348
        %350 = vrot.lane.b32.xlu0 %v338, 127
        %v351 = vpop.permute.xlu0 %350
        %352 = vrot.lane.b32.xlu0 %v339, 127
        %v353 = vpop.permute.xlu0 %352
        %354 = vrot.lane.b32.xlu0 %v340, 127
        %v355 = vpop.permute.xlu0 %354
        %356 = vrot.lane.b32.xlu0 %v341, 127
        %v357 = vpop.permute.xlu0 %356
        %358 = vrot.lane.b32.xlu0 -inf, 127
        %v359 = vpop.permute.xlu0 %358
        %v360 = vmax.f32 %v334, %v343
        %v361 = vmax.f32 %v335, %v345
        %v362 = vmax.f32 %v336, %v347
        %v363 = vmax.f32 %v337, %v349
        %v364 = vmax.f32 %v338, %v351
        %v365 = vmax.f32 %v339, %v353
        %v366 = vmax.f32 %v340, %v355
        %v367 = vmax.f32 %v341, %v357
        %v368 = vmin.f32 %v334, %v343
        %v369 = vmin.f32 %v335, %v345
        %v370 = vmin.f32 %v336, %v347
        %v371 = vmin.f32 %v337, %v349
        %v372 = vmin.f32 %v338, %v351
        %v373 = vmin.f32 %v339, %v353
        %v374 = vmin.f32 %v340, %v355
        %v375 = vmin.f32 %v341, %v357
        %v376 = vmax.f32 %v368, %v359
        %v377 = vmax.f32 %v369, %v359
        %v378 = vmax.f32 %v370, %v359
        %v379 = vmax.f32 %v371, %v359
        %v380 = vmax.f32 %v372, %v359
        %v381 = vmax.f32 %v373, %v359
        %v382 = vmax.f32 %v374, %v359
        %v383 = vmax.f32 %v375, %v359
        %384 = vrot.lane.b32.xlu0 %v360, 126
        %v385 = vpop.permute.xlu0 %384
        %386 = vrot.lane.b32.xlu0 %v361, 126
        %v387 = vpop.permute.xlu0 %386
        %388 = vrot.lane.b32.xlu0 %v362, 126
        %v389 = vpop.permute.xlu0 %388
        %390 = vrot.lane.b32.xlu0 %v363, 126
        %v391 = vpop.permute.xlu0 %390
        %392 = vrot.lane.b32.xlu0 %v364, 126
        %v393 = vpop.permute.xlu0 %392
        %394 = vrot.lane.b32.xlu0 %v365, 126
        %v395 = vpop.permute.xlu0 %394
        %396 = vrot.lane.b32.xlu0 %v366, 126
        %v397 = vpop.permute.xlu0 %396
        %398 = vrot.lane.b32.xlu0 %v367, 126
        %v399 = vpop.permute.xlu0 %398
        %400 = vrot.lane.b32.xlu0 %v376, 126
        %v401 = vpop.permute.xlu0 %400
        %402 = vrot.lane.b32.xlu0 %v377, 126
        %v403 = vpop.permute.xlu0 %402
        %404 = vrot.lane.b32.xlu0 %v378, 126
        %v405 = vpop.permute.xlu0 %404
        %406 = vrot.lane.b32.xlu0 %v379, 126
        %v407 = vpop.permute.xlu0 %406
        %408 = vrot.lane.b32.xlu0 %v380, 126
        %v409 = vpop.permute.xlu0 %408
        %410 = vrot.lane.b32.xlu0 %v381, 126
        %v411 = vpop.permute.xlu0 %410
        %412 = vrot.lane.b32.xlu0 %v382, 126
        %v413 = vpop.permute.xlu0 %412
        %414 = vrot.lane.b32.xlu0 %v383, 126
        %v415 = vpop.permute.xlu0 %414
        %v416 = vmax.f32 %v360, %v385
        %v417 = vmax.f32 %v361, %v387
        %v418 = vmax.f32 %v362, %v389
        %v419 = vmax.f32 %v363, %v391
        %v420 = vmax.f32 %v364, %v393
        %v421 = vmax.f32 %v365, %v395
        %v422 = vmax.f32 %v366, %v397
        %v423 = vmax.f32 %v367, %v399
        %v424 = vmin.f32 %v360, %v385
        %v425 = vmin.f32 %v361, %v387
        %v426 = vmin.f32 %v362, %v389
        %v427 = vmin.f32 %v363, %v391
        %v428 = vmin.f32 %v364, %v393
        %v429 = vmin.f32 %v365, %v395
        %v430 = vmin.f32 %v366, %v397
        %v431 = vmin.f32 %v367, %v399
        %v432 = vmax.f32 %v376, %v401
        %v433 = vmax.f32 %v377, %v403
        %v434 = vmax.f32 %v378, %v405
        %v435 = vmax.f32 %v379, %v407
        %v436 = vmax.f32 %v380, %v409
        %v437 = vmax.f32 %v381, %v411
        %v438 = vmax.f32 %v382, %v413
        %v439 = vmax.f32 %v383, %v415
        %v440 = vmax.f32 %v424, %v432
        %v441 = vmax.f32 %v425, %v433
        %v442 = vmax.f32 %v426, %v434
        %v443 = vmax.f32 %v427, %v435
        %v444 = vmax.f32 %v428, %v436
        %v445 = vmax.f32 %v429, %v437
        %v446 = vmax.f32 %v430, %v438
        %v447 = vmax.f32 %v431, %v439
        %448 = vrot.lane.b32.xlu0 %v416, 124
        %v449 = vpop.permute.xlu0 %448
        %450 = vrot.lane.b32.xlu0 %v417, 124
        %v451 = vpop.permute.xlu0 %450
        %452 = vrot.lane.b32.xlu0 %v418, 124
        %v453 = vpop.permute.xlu0 %452
        %454 = vrot.lane.b32.xlu0 %v419, 124
        %v455 = vpop.permute.xlu0 %454
        %456 = vrot.lane.b32.xlu0 %v420, 124
        %v457 = vpop.permute.xlu0 %456
        %458 = vrot.lane.b32.xlu0 %v421, 124
        %v459 = vpop.permute.xlu0 %458
        %460 = vrot.lane.b32.xlu0 %v422, 124
        %v461 = vpop.permute.xlu0 %460
        %462 = vrot.lane.b32.xlu0 %v423, 124
        %v463 = vpop.permute.xlu0 %462
        %464 = vrot.lane.b32.xlu0 %v440, 124
        %v465 = vpop.permute.xlu0 %464
        %466 = vrot.lane.b32.xlu0 %v441, 124
        %v467 = vpop.permute.xlu0 %466
        %468 = vrot.lane.b32.xlu0 %v442, 124
        %v469 = vpop.permute.xlu0 %468
        %470 = vrot.lane.b32.xlu0 %v443, 124
        %v471 = vpop.permute.xlu0 %470
        %472 = vrot.lane.b32.xlu0 %v444, 124
        %v473 = vpop.permute.xlu0 %472
        %474 = vrot.lane.b32.xlu0 %v445, 124
        %v475 = vpop.permute.xlu0 %474
        %476 = vrot.lane.b32.xlu0 %v446, 124
        %v477 = vpop.permute.xlu0 %476
        %478 = vrot.lane.b32.xlu0 %v447, 124
        %v479 = vpop.permute.xlu0 %478
        %v480 = vmax.f32 %v416, %v449
        %v481 = vmax.f32 %v417, %v451
        %v482 = vmax.f32 %v418, %v453
        %v483 = vmax.f32 %v419, %v455
        %v484 = vmax.f32 %v420, %v457
        %v485 = vmax.f32 %v421, %v459
        %v486 = vmax.f32 %v422, %v461
        %v487 = vmax.f32 %v423, %v463
        %v488 = vmin.f32 %v416, %v449
        %v489 = vmin.f32 %v417, %v451
        %v490 = vmin.f32 %v418, %v453
        %v491 = vmin.f32 %v419, %v455
        %v492 = vmin.f32 %v420, %v457
        %v493 = vmin.f32 %v421, %v459
        %v494 = vmin.f32 %v422, %v461
        %v495 = vmin.f32 %v423, %v463
        %v496 = vmax.f32 %v440, %v465
        %v497 = vmax.f32 %v441, %v467
        %v498 = vmax.f32 %v442, %v469
        %v499 = vmax.f32 %v443, %v471
        %v500 = vmax.f32 %v444, %v473
        %v501 = vmax.f32 %v445, %v475
        %v502 = vmax.f32 %v446, %v477
        %v503 = vmax.f32 %v447, %v479
        %v504 = vmax.f32 %v488, %v496
        %v505 = vmax.f32 %v489, %v497
        %v506 = vmax.f32 %v490, %v498
        %v507 = vmax.f32 %v491, %v499
        %v508 = vmax.f32 %v492, %v500
        %v509 = vmax.f32 %v493, %v501
        %v510 = vmax.f32 %v494, %v502
        %v511 = vmax.f32 %v495, %v503
        %512 = vrot.lane.b32.xlu0 %v480, 120
        %v513 = vpop.permute.xlu0 %512
        %514 = vrot.lane.b32.xlu0 %v481, 120
        %v515 = vpop.permute.xlu0 %514
        %516 = vrot.lane.b32.xlu0 %v482, 120
        %v517 = vpop.permute.xlu0 %516
        %518 = vrot.lane.b32.xlu0 %v483, 120
        %v519 = vpop.permute.xlu0 %518
        %520 = vrot.lane.b32.xlu0 %v484, 120
        %v521 = vpop.permute.xlu0 %520
        %522 = vrot.lane.b32.xlu0 %v485, 120
        %v523 = vpop.permute.xlu0 %522
        %524 = vrot.lane.b32.xlu0 %v486, 120
        %v525 = vpop.permute.xlu0 %524
        %526 = vrot.lane.b32.xlu0 %v487, 120
        %v527 = vpop.permute.xlu0 %526
        %528 = vrot.lane.b32.xlu0 %v504, 120
        %v529 = vpop.permute.xlu0 %528
        %530 = vrot.lane.b32.xlu0 %v505, 120
        %v531 = vpop.permute.xlu0 %530
        %532 = vrot.lane.b32.xlu0 %v506, 120
        %v533 = vpop.permute.xlu0 %532
        %534 = vrot.lane.b32.xlu0 %v507, 120
        %v535 = vpop.permute.xlu0 %534
        %536 = vrot.lane.b32.xlu0 %v508, 120
        %v537 = vpop.permute.xlu0 %536
        %538 = vrot.lane.b32.xlu0 %v509, 120
        %v539 = vpop.permute.xlu0 %538
        %540 = vrot.lane.b32.xlu0 %v510, 120
        %v541 = vpop.permute.xlu0 %540
        %542 = vrot.lane.b32.xlu0 %v511, 120
        %v543 = vpop.permute.xlu0 %542
        %v544 = vmax.f32 %v480, %v513
        %v545 = vmax.f32 %v481, %v515
        %v546 = vmax.f32 %v482, %v517
        %v547 = vmax.f32 %v483, %v519
        %v548 = vmax.f32 %v484, %v521
        %v549 = vmax.f32 %v485, %v523
        %v550 = vmax.f32 %v486, %v525
        %v551 = vmax.f32 %v487, %v527
        %v552 = vmin.f32 %v480, %v513
        %v553 = vmin.f32 %v481, %v515
        %v554 = vmin.f32 %v482, %v517
        %v555 = vmin.f32 %v483, %v519
        %v556 = vmin.f32 %v484, %v521
        %v557 = vmin.f32 %v485, %v523
        %v558 = vmin.f32 %v486, %v525
        %v559 = vmin.f32 %v487, %v527
        %v560 = vmax.f32 %v504, %v529
        %v561 = vmax.f32 %v505, %v531
        %v562 = vmax.f32 %v506, %v533
        %v563 = vmax.f32 %v507, %v535
        %v564 = vmax.f32 %v508, %v537
        %v565 = vmax.f32 %v509, %v539
        %v566 = vmax.f32 %v510, %v541
        %v567 = vmax.f32 %v511, %v543
        %v568 = vmax.f32 %v552, %v560
        %v569 = vmax.f32 %v553, %v561
        %v570 = vmax.f32 %v554, %v562
        %v571 = vmax.f32 %v555, %v563
        %v572 = vmax.f32 %v556, %v564
        %v573 = vmax.f32 %v557, %v565
        %v574 = vmax.f32 %v558, %v566
        %v575 = vmax.f32 %v559, %v567
        %576 = vrot.lane.b32.xlu0 %v544, 112
        %v577 = vpop.permute.xlu0 %576
        %578 = vrot.lane.b32.xlu0 %v545, 112
        %v579 = vpop.permute.xlu0 %578
        %580 = vrot.lane.b32.xlu0 %v546, 112
        %v581 = vpop.permute.xlu0 %580
        %582 = vrot.lane.b32.xlu0 %v547, 112
        %v583 = vpop.permute.xlu0 %582
        %584 = vrot.lane.b32.xlu0 %v548, 112
        %v585 = vpop.permute.xlu0 %584
        %586 = vrot.lane.b32.xlu0 %v549, 112
        %v587 = vpop.permute.xlu0 %586
        %588 = vrot.lane.b32.xlu0 %v550, 112
        %v589 = vpop.permute.xlu0 %588
        %590 = vrot.lane.b32.xlu0 %v551, 112
        %v591 = vpop.permute.xlu0 %590
        %592 = vrot.lane.b32.xlu0 %v568, 112
        %v593 = vpop.permute.xlu0 %592
        %594 = vrot.lane.b32.xlu0 %v569, 112
        %v595 = vpop.permute.xlu0 %594
        %596 = vrot.lane.b32.xlu0 %v570, 112
        %v597 = vpop.permute.xlu0 %596
        %598 = vrot.lane.b32.xlu0 %v571, 112
        %v599 = vpop.permute.xlu0 %598
        %600 = vrot.lane.b32.xlu0 %v572, 112
        %v601 = vpop.permute.xlu0 %600
        %602 = vrot.lane.b32.xlu0 %v573, 112
        %v603 = vpop.permute.xlu0 %602
        %604 = vrot.lane.b32.xlu0 %v574, 112
        %v605 = vpop.permute.xlu0 %604
        %606 = vrot.lane.b32.xlu0 %v575, 112
        %v607 = vpop.permute.xlu0 %606
        %v608 = vmax.f32 %v544, %v577
        %v609 = vmax.f32 %v545, %v579
        %v610 = vmax.f32 %v546, %v581
        %v611 = vmax.f32 %v547, %v583
        %v612 = vmax.f32 %v548, %v585
        %v613 = vmax.f32 %v549, %v587
        %v614 = vmax.f32 %v550, %v589
        %v615 = vmax.f32 %v551, %v591
        %v616 = vmin.f32 %v544, %v577
        %v617 = vmin.f32 %v545, %v579
        %v618 = vmin.f32 %v546, %v581
        %v619 = vmin.f32 %v547, %v583
        %v620 = vmin.f32 %v548, %v585
        %v621 = vmin.f32 %v549, %v587
        %v622 = vmin.f32 %v550, %v589
        %v623 = vmin.f32 %v551, %v591
        %v624 = vmax.f32 %v568, %v593
        %v625 = vmax.f32 %v569, %v595
        %v626 = vmax.f32 %v570, %v597
        %v627 = vmax.f32 %v571, %v599
        %v628 = vmax.f32 %v572, %v601
        %v629 = vmax.f32 %v573, %v603
        %v630 = vmax.f32 %v574, %v605
        %v631 = vmax.f32 %v575, %v607
        %v632 = vmax.f32 %v616, %v624
        %v633 = vmax.f32 %v617, %v625
        %v634 = vmax.f32 %v618, %v626
        %v635 = vmax.f32 %v619, %v627
        %v636 = vmax.f32 %v620, %v628
        %v637 = vmax.f32 %v621, %v629
        %v638 = vmax.f32 %v622, %v630
        %v639 = vmax.f32 %v623, %v631
        %v640 = vlaneseq
        %v641 = vand.u32 %v640, 127
        %v642 = vand.u32 %v641, 31
        %vm643 = vcmp.eq.s32.totalorder %v642, 0
        %v644 = vadd.f32 %v608, %v632
        %v645 = vadd.f32 %v609, %v633
        %v646 = vadd.f32 %v610, %v634
        %v647 = vadd.f32 %v611, %v635
        %v648 = vadd.f32 %v612, %v636
        %v649 = vadd.f32 %v613, %v637
        %v650 = vadd.f32 %v614, %v638
        %v651 = vadd.f32 %v615, %v639
        %v652 = vsel %vm643, %v644, -inf
        %v653 = vsel %vm643, %v645, -inf
        %v654 = vsel %vm643, %v646, -inf
        %v655 = vsel %vm643, %v647, -inf
        %v656 = vsel %vm643, %v648, -inf
        %v657 = vsel %vm643, %v649, -inf
        %v658 = vsel %vm643, %v650, -inf
        %v659 = vsel %vm643, %v651, -inf
        %660 = vmax.xlane.f32.xlu0 %v652
        %v661 = vpop.xlane.xlu0 %660
        %662 = vmax.xlane.f32.xlu0 %v653
        %v663 = vpop.xlane.xlu0 %662
        %664 = vmax.xlane.f32.xlu0 %v654
        %v665 = vpop.xlane.xlu0 %664
        %666 = vmax.xlane.f32.xlu0 %v655
        %v667 = vpop.xlane.xlu0 %666
        %668 = vmax.xlane.f32.xlu0 %v656
        %v669 = vpop.xlane.xlu0 %668
        %670 = vmax.xlane.f32.xlu0 %v657
        %v671 = vpop.xlane.xlu0 %670
        %672 = vmax.xlane.f32.xlu0 %v658
        %v673 = vpop.xlane.xlu0 %672
        %674 = vmax.xlane.f32.xlu0 %v659
        %v675 = vpop.xlane.xlu0 %674
        %vm676 = vcmp.eq.f32.partialorder %v652, %v661
        %vm677 = vcmp.eq.f32.partialorder %v653, %v663
        %vm678 = vcmp.eq.f32.partialorder %v654, %v665
        %vm679 = vcmp.eq.f32.partialorder %v655, %v667
        %vm680 = vcmp.eq.f32.partialorder %v656, %v669
        %vm681 = vcmp.eq.f32.partialorder %v657, %v671
        %vm682 = vcmp.eq.f32.partialorder %v658, %v673
        %vm683 = vcmp.eq.f32.partialorder %v659, %v675
        %v684 = vsel %vm676, %v641, 128
        %v685 = vsel %vm677, %v641, 128
        %v686 = vsel %vm678, %v641, 128
        %v687 = vsel %vm679, %v641, 128
        %v688 = vsel %vm680, %v641, 128
        %v689 = vsel %vm681, %v641, 128
        %v690 = vsel %vm682, %v641, 128
        %v691 = vsel %vm683, %v641, 128
        %v692 = vand.u32 %v684, 65535
        %v693 = vshra.s32 %v684, 16
        %v694 = vcvt.s32.f32 %v692
        %v695 = vcvt.s32.f32 %v693
        %696 = vmin.xlane.f32.xlu0 %v695
        %v697 = vpop.xlane.xlu0 %696
        %vm698 = vcmp.eq.f32.partialorder %v695, %v697
        %v699 = vsel %vm698, %v694, inf
        %700 = vmin.xlane.f32.xlu0 %v699
        %v701 = vpop.xlane.xlu0 %700
        %v702 = vcvt.f32.s32 %v701
        %v703 = vcvt.f32.s32 %v697
        %v704 = vshll.u32 %v703, 16
        %v705 = vadd.s32 %v704, %v702
        %v706 = vand.u32 %v685, 65535
        %v707 = vshra.s32 %v685, 16
        %v708 = vcvt.s32.f32 %v706
        %v709 = vcvt.s32.f32 %v707
        %710 = vmin.xlane.f32.xlu0 %v709
        %v711 = vpop.xlane.xlu0 %710
        %vm712 = vcmp.eq.f32.partialorder %v709, %v711
        %v713 = vsel %vm712, %v708, inf
        %714 = vmin.xlane.f32.xlu0 %v713
        %v715 = vpop.xlane.xlu0 %714
        %v716 = vcvt.f32.s32 %v715
        %v717 = vcvt.f32.s32 %v711
        %v718 = vshll.u32 %v717, 16
        %v719 = vadd.s32 %v718, %v716
        %v720 = vand.u32 %v686, 65535
        %v721 = vshra.s32 %v686, 16
        %v722 = vcvt.s32.f32 %v720
        %v723 = vcvt.s32.f32 %v721
        %724 = vmin.xlane.f32.xlu0 %v723
        %v725 = vpop.xlane.xlu0 %724
        %vm726 = vcmp.eq.f32.partialorder %v723, %v725
        %v727 = vsel %vm726, %v722, inf
        %728 = vmin.xlane.f32.xlu0 %v727
        %v729 = vpop.xlane.xlu0 %728
        %v730 = vcvt.f32.s32 %v729
        %v731 = vcvt.f32.s32 %v725
        %v732 = vshll.u32 %v731, 16
        %v733 = vadd.s32 %v732, %v730
        %v734 = vand.u32 %v687, 65535
        %v735 = vshra.s32 %v687, 16
        %v736 = vcvt.s32.f32 %v734
        %v737 = vcvt.s32.f32 %v735
        %738 = vmin.xlane.f32.xlu0 %v737
        %v739 = vpop.xlane.xlu0 %738
        %vm740 = vcmp.eq.f32.partialorder %v737, %v739
        %v741 = vsel %vm740, %v736, inf
        %742 = vmin.xlane.f32.xlu0 %v741
        %v743 = vpop.xlane.xlu0 %742
        %v744 = vcvt.f32.s32 %v743
        %v745 = vcvt.f32.s32 %v739
        %v746 = vshll.u32 %v745, 16
        %v747 = vadd.s32 %v746, %v744
        %v748 = vand.u32 %v688, 65535
        %v749 = vshra.s32 %v688, 16
        %v750 = vcvt.s32.f32 %v748
        %v751 = vcvt.s32.f32 %v749
        %752 = vmin.xlane.f32.xlu0 %v751
        %v753 = vpop.xlane.xlu0 %752
        %vm754 = vcmp.eq.f32.partialorder %v751, %v753
        %v755 = vsel %vm754, %v750, inf
        %756 = vmin.xlane.f32.xlu0 %v755
        %v757 = vpop.xlane.xlu0 %756
        %v758 = vcvt.f32.s32 %v757
        %v759 = vcvt.f32.s32 %v753
        %v760 = vshll.u32 %v759, 16
        %v761 = vadd.s32 %v760, %v758
        %v762 = vand.u32 %v689, 65535
        %v763 = vshra.s32 %v689, 16
        %v764 = vcvt.s32.f32 %v762
        %v765 = vcvt.s32.f32 %v763
        %766 = vmin.xlane.f32.xlu0 %v765
        %v767 = vpop.xlane.xlu0 %766
        %vm768 = vcmp.eq.f32.partialorder %v765, %v767
        %v769 = vsel %vm768, %v764, inf
        %770 = vmin.xlane.f32.xlu0 %v769
        %v771 = vpop.xlane.xlu0 %770
        %v772 = vcvt.f32.s32 %v771
        %v773 = vcvt.f32.s32 %v767
        %v774 = vshll.u32 %v773, 16
        %v775 = vadd.s32 %v774, %v772
        %v776 = vand.u32 %v690, 65535
        %v777 = vshra.s32 %v690, 16
        %v778 = vcvt.s32.f32 %v776
        %v779 = vcvt.s32.f32 %v777
        %780 = vmin.xlane.f32.xlu0 %v779
        %v781 = vpop.xlane.xlu0 %780
        %vm782 = vcmp.eq.f32.partialorder %v779, %v781
        %v783 = vsel %vm782, %v778, inf
        %784 = vmin.xlane.f32.xlu0 %v783
        %v785 = vpop.xlane.xlu0 %784
        %v786 = vcvt.f32.s32 %v785
        %v787 = vcvt.f32.s32 %v781
        %v788 = vshll.u32 %v787, 16
        %v789 = vadd.s32 %v788, %v786
        %v790 = vand.u32 %v691, 65535
        %v791 = vshra.s32 %v691, 16
        %v792 = vcvt.s32.f32 %v790
        %v793 = vcvt.s32.f32 %v791
        %794 = vmin.xlane.f32.xlu0 %v793
        %v795 = vpop.xlane.xlu0 %794
        %vm796 = vcmp.eq.f32.partialorder %v793, %v795
        %v797 = vsel %vm796, %v792, inf
        %798 = vmin.xlane.f32.xlu0 %v797
        %v799 = vpop.xlane.xlu0 %798
        %v800 = vcvt.f32.s32 %v799
        %v801 = vcvt.f32.s32 %v795
        %v802 = vshll.u32 %v801, 16
        %v803 = vadd.s32 %v802, %v800
        %v804 = vshra.s32 %v641, 5
        %v805 = vshra.s32 %v705, 5
        %v806 = vshra.s32 %v719, 5
        %v807 = vshra.s32 %v733, 5
        %v808 = vshra.s32 %v747, 5
        %v809 = vshra.s32 %v761, 5
        %v810 = vshra.s32 %v775, 5
        %v811 = vshra.s32 %v789, 5
        %v812 = vshra.s32 %v803, 5
        %vm813 = vcmp.eq.s32.totalorder %v804, %v805
        %vm814 = vcmp.eq.s32.totalorder %v804, %v806
        %vm815 = vcmp.eq.s32.totalorder %v804, %v807
        %vm816 = vcmp.eq.s32.totalorder %v804, %v808
        %vm817 = vcmp.eq.s32.totalorder %v804, %v809
        %vm818 = vcmp.eq.s32.totalorder %v804, %v810
        %vm819 = vcmp.eq.s32.totalorder %v804, %v811
        %vm820 = vcmp.eq.s32.totalorder %v804, %v812
        %vm821 = vcmp.eq.s32.totalorder %v641, %v705
        %vm822 = vcmp.eq.s32.totalorder %v641, %v719
        %vm823 = vcmp.eq.s32.totalorder %v641, %v733
        %vm824 = vcmp.eq.s32.totalorder %v641, %v747
        %vm825 = vcmp.eq.s32.totalorder %v641, %v761
        %vm826 = vcmp.eq.s32.totalorder %v641, %v775
        %vm827 = vcmp.eq.s32.totalorder %v641, %v789
        %vm828 = vcmp.eq.s32.totalorder %v641, %v803
        %v829 = vsel %vm821, -inf, %v652
        %v830 = vsel %vm822, -inf, %v653
        %v831 = vsel %vm823, -inf, %v654
        %v832 = vsel %vm824, -inf, %v655
        %v833 = vsel %vm825, -inf, %v656
        %v834 = vsel %vm826, -inf, %v657
        %v835 = vsel %vm827, -inf, %v658
        %v836 = vsel %vm828, -inf, %v659
        %837 = vmax.xlane.f32.xlu0 %v829
        %v838 = vpop.xlane.xlu0 %837
        %839 = vmax.xlane.f32.xlu0 %v830
        %v840 = vpop.xlane.xlu0 %839
        %841 = vmax.xlane.f32.xlu0 %v831
        %v842 = vpop.xlane.xlu0 %841
        %843 = vmax.xlane.f32.xlu0 %v832
        %v844 = vpop.xlane.xlu0 %843
        %845 = vmax.xlane.f32.xlu0 %v833
        %v846 = vpop.xlane.xlu0 %845
        %847 = vmax.xlane.f32.xlu0 %v834
        %v848 = vpop.xlane.xlu0 %847
        %849 = vmax.xlane.f32.xlu0 %v835
        %v850 = vpop.xlane.xlu0 %849
        %851 = vmax.xlane.f32.xlu0 %v836
        %v852 = vpop.xlane.xlu0 %851
        %vm853 = vcmp.eq.f32.partialorder %v829, %v838
        %vm854 = vcmp.eq.f32.partialorder %v830, %v840
        %vm855 = vcmp.eq.f32.partialorder %v831, %v842
        %vm856 = vcmp.eq.f32.partialorder %v832, %v844
        %vm857 = vcmp.eq.f32.partialorder %v833, %v846
        %vm858 = vcmp.eq.f32.partialorder %v834, %v848
        %vm859 = vcmp.eq.f32.partialorder %v835, %v850
        %vm860 = vcmp.eq.f32.partialorder %v836, %v852
        %v861 = vsel %vm853, %v641, 128
        %v862 = vsel %vm854, %v641, 128
        %v863 = vsel %vm855, %v641, 128
        %v864 = vsel %vm856, %v641, 128
        %v865 = vsel %vm857, %v641, 128
        %v866 = vsel %vm858, %v641, 128
        %v867 = vsel %vm859, %v641, 128
        %v868 = vsel %vm860, %v641, 128
        %v869 = vand.u32 %v861, 65535
        %v870 = vshra.s32 %v861, 16
        %v871 = vcvt.s32.f32 %v869
        %v872 = vcvt.s32.f32 %v870
        %873 = vmin.xlane.f32.xlu0 %v872
        %v874 = vpop.xlane.xlu0 %873
        %vm875 = vcmp.eq.f32.partialorder %v872, %v874
        %v876 = vsel %vm875, %v871, inf
        %877 = vmin.xlane.f32.xlu0 %v876
        %v878 = vpop.xlane.xlu0 %877
        %v879 = vcvt.f32.s32 %v878
        %v880 = vcvt.f32.s32 %v874
        %v881 = vshll.u32 %v880, 16
        %v882 = vadd.s32 %v881, %v879
        %v883 = vand.u32 %v862, 65535
        %v884 = vshra.s32 %v862, 16
        %v885 = vcvt.s32.f32 %v883
        %v886 = vcvt.s32.f32 %v884
        %887 = vmin.xlane.f32.xlu0 %v886
        %v888 = vpop.xlane.xlu0 %887
        %vm889 = vcmp.eq.f32.partialorder %v886, %v888
        %v890 = vsel %vm889, %v885, inf
        %891 = vmin.xlane.f32.xlu0 %v890
        %v892 = vpop.xlane.xlu0 %891
        %v893 = vcvt.f32.s32 %v892
        %v894 = vcvt.f32.s32 %v888
        %v895 = vshll.u32 %v894, 16
        %v896 = vadd.s32 %v895, %v893
        %v897 = vand.u32 %v863, 65535
        %v898 = vshra.s32 %v863, 16
        %v899 = vcvt.s32.f32 %v897
        %v900 = vcvt.s32.f32 %v898
        %901 = vmin.xlane.f32.xlu0 %v900
        %v902 = vpop.xlane.xlu0 %901
        %vm903 = vcmp.eq.f32.partialorder %v900, %v902
        %v904 = vsel %vm903, %v899, inf
        %905 = vmin.xlane.f32.xlu0 %v904
        %v906 = vpop.xlane.xlu0 %905
        %v907 = vcvt.f32.s32 %v906
        %v908 = vcvt.f32.s32 %v902
        %v909 = vshll.u32 %v908, 16
        %v910 = vadd.s32 %v909, %v907
        %v911 = vand.u32 %v864, 65535
        %v912 = vshra.s32 %v864, 16
        %v913 = vcvt.s32.f32 %v911
        %v914 = vcvt.s32.f32 %v912
        %915 = vmin.xlane.f32.xlu0 %v914
        %v916 = vpop.xlane.xlu0 %915
        %vm917 = vcmp.eq.f32.partialorder %v914, %v916
        %v918 = vsel %vm917, %v913, inf
        %919 = vmin.xlane.f32.xlu0 %v918
        %v920 = vpop.xlane.xlu0 %919
        %v921 = vcvt.f32.s32 %v920
        %v922 = vcvt.f32.s32 %v916
        %v923 = vshll.u32 %v922, 16
        %v924 = vadd.s32 %v923, %v921
        %v925 = vand.u32 %v865, 65535
        %v926 = vshra.s32 %v865, 16
        %v927 = vcvt.s32.f32 %v925
        %v928 = vcvt.s32.f32 %v926
        %929 = vmin.xlane.f32.xlu0 %v928
        %v930 = vpop.xlane.xlu0 %929
        %vm931 = vcmp.eq.f32.partialorder %v928, %v930
        %v932 = vsel %vm931, %v927, inf
        %933 = vmin.xlane.f32.xlu0 %v932
        %v934 = vpop.xlane.xlu0 %933
        %v935 = vcvt.f32.s32 %v934
        %v936 = vcvt.f32.s32 %v930
        %v937 = vshll.u32 %v936, 16
        %v938 = vadd.s32 %v937, %v935
        %v939 = vand.u32 %v866, 65535
        %v940 = vshra.s32 %v866, 16
        %v941 = vcvt.s32.f32 %v939
        %v942 = vcvt.s32.f32 %v940
        %943 = vmin.xlane.f32.xlu0 %v942
        %v944 = vpop.xlane.xlu0 %943
        %vm945 = vcmp.eq.f32.partialorder %v942, %v944
        %v946 = vsel %vm945, %v941, inf
        %947 = vmin.xlane.f32.xlu0 %v946
        %v948 = vpop.xlane.xlu0 %947
        %v949 = vcvt.f32.s32 %v948
        %v950 = vcvt.f32.s32 %v944
        %v951 = vshll.u32 %v950, 16
        %v952 = vadd.s32 %v951, %v949
        %v953 = vand.u32 %v867, 65535
        %v954 = vshra.s32 %v867, 16
        %v955 = vcvt.s32.f32 %v953
        %v956 = vcvt.s32.f32 %v954
        %957 = vmin.xlane.f32.xlu0 %v956
        %v958 = vpop.xlane.xlu0 %957
        %vm959 = vcmp.eq.f32.partialorder %v956, %v958
        %v960 = vsel %vm959, %v955, inf
        %961 = vmin.xlane.f32.xlu0 %v960
        %v962 = vpop.xlane.xlu0 %961
        %v963 = vcvt.f32.s32 %v962
        %v964 = vcvt.f32.s32 %v958
        %v965 = vshll.u32 %v964, 16
        %v966 = vadd.s32 %v965, %v963
        %v967 = vand.u32 %v868, 65535
        %v968 = vshra.s32 %v868, 16
        %v969 = vcvt.s32.f32 %v967
        %v970 = vcvt.s32.f32 %v968
        %971 = vmin.xlane.f32.xlu0 %v970
        %v972 = vpop.xlane.xlu0 %971
        %vm973 = vcmp.eq.f32.partialorder %v970, %v972
        %v974 = vsel %vm973, %v969, inf
        %975 = vmin.xlane.f32.xlu0 %v974
        %v976 = vpop.xlane.xlu0 %975
        %v977 = vcvt.f32.s32 %v976
        %v978 = vcvt.f32.s32 %v972
        %v979 = vshll.u32 %v978, 16
        %v980 = vadd.s32 %v979, %v977
        %v981 = vshra.s32 %v882, 5
        %v982 = vshra.s32 %v896, 5
        %v983 = vshra.s32 %v910, 5
        %v984 = vshra.s32 %v924, 5
        %v985 = vshra.s32 %v938, 5
        %v986 = vshra.s32 %v952, 5
        %v987 = vshra.s32 %v966, 5
        %v988 = vshra.s32 %v980, 5
        %vm989 = vcmp.eq.s32.totalorder %v804, %v981
        %vm990 = vcmp.eq.s32.totalorder %v804, %v982
        %vm991 = vcmp.eq.s32.totalorder %v804, %v983
        %vm992 = vcmp.eq.s32.totalorder %v804, %v984
        %vm993 = vcmp.eq.s32.totalorder %v804, %v985
        %vm994 = vcmp.eq.s32.totalorder %v804, %v986
        %vm995 = vcmp.eq.s32.totalorder %v804, %v987
        %vm996 = vcmp.eq.s32.totalorder %v804, %v988
        %vm997 = vmor %vm813, %vm989
        %vm998 = vmor %vm814, %vm990
        %vm999 = vmor %vm815, %vm991
        %vm1000 = vmor %vm816, %vm992
        %vm1001 = vmor %vm817, %vm993
        %vm1002 = vmor %vm818, %vm994
        %vm1003 = vmor %vm819, %vm995
        %vm1004 = vmor %vm820, %vm996
        %v1005 = vsel %vm997, %v334, -inf
        %v1006 = vsel %vm998, %v335, -inf
        %v1007 = vsel %vm999, %v336, -inf
        %v1008 = vsel %vm1000, %v337, -inf
        %v1009 = vsel %vm1001, %v338, -inf
        %v1010 = vsel %vm1002, %v339, -inf
        %v1011 = vsel %vm1003, %v340, -inf
        %v1012 = vsel %vm1004, %v341, -inf
        %1013 = vmax.xlane.f32.xlu0 %v1005
        %v1014 = vpop.xlane.xlu0 %1013
        %1015 = vmax.xlane.f32.xlu0 %v1006
        %v1016 = vpop.xlane.xlu0 %1015
        %1017 = vmax.xlane.f32.xlu0 %v1007
        %v1018 = vpop.xlane.xlu0 %1017
        %1019 = vmax.xlane.f32.xlu0 %v1008
        %v1020 = vpop.xlane.xlu0 %1019
        %1021 = vmax.xlane.f32.xlu0 %v1009
        %v1022 = vpop.xlane.xlu0 %1021
        %1023 = vmax.xlane.f32.xlu0 %v1010
        %v1024 = vpop.xlane.xlu0 %1023
        %1025 = vmax.xlane.f32.xlu0 %v1011
        %v1026 = vpop.xlane.xlu0 %1025
        %1027 = vmax.xlane.f32.xlu0 %v1012
        %v1028 = vpop.xlane.xlu0 %1027
        %vm1029 = vcmp.eq.f32.partialorder %v1005, %v1014
        %vm1030 = vcmp.eq.f32.partialorder %v1006, %v1016
        %vm1031 = vcmp.eq.f32.partialorder %v1007, %v1018
        %vm1032 = vcmp.eq.f32.partialorder %v1008, %v1020
        %vm1033 = vcmp.eq.f32.partialorder %v1009, %v1022
        %vm1034 = vcmp.eq.f32.partialorder %v1010, %v1024
        %vm1035 = vcmp.eq.f32.partialorder %v1011, %v1026
        %vm1036 = vcmp.eq.f32.partialorder %v1012, %v1028
        %v1037 = vsel %vm1029, %v641, 128
        %v1038 = vsel %vm1030, %v641, 128
        %v1039 = vsel %vm1031, %v641, 128
        %v1040 = vsel %vm1032, %v641, 128
        %v1041 = vsel %vm1033, %v641, 128
        %v1042 = vsel %vm1034, %v641, 128
        %v1043 = vsel %vm1035, %v641, 128
        %v1044 = vsel %vm1036, %v641, 128
        %v1045 = vand.u32 %v1037, 65535
        %v1046 = vshra.s32 %v1037, 16
        %v1047 = vcvt.s32.f32 %v1045
        %v1048 = vcvt.s32.f32 %v1046
        %1049 = vmin.xlane.f32.xlu0 %v1048
        %v1050 = vpop.xlane.xlu0 %1049
        %vm1051 = vcmp.eq.f32.partialorder %v1048, %v1050
        %v1052 = vsel %vm1051, %v1047, inf
        %1053 = vmin.xlane.f32.xlu0 %v1052
        %v1054 = vpop.xlane.xlu0 %1053
        %v1055 = vcvt.f32.s32 %v1054
        %v1056 = vcvt.f32.s32 %v1050
        %v1057 = vshll.u32 %v1056, 16
        %v1058 = vadd.s32 %v1057, %v1055
        %v1059 = vand.u32 %v1038, 65535
        %v1060 = vshra.s32 %v1038, 16
        %v1061 = vcvt.s32.f32 %v1059
        %v1062 = vcvt.s32.f32 %v1060
        %1063 = vmin.xlane.f32.xlu0 %v1062
        %v1064 = vpop.xlane.xlu0 %1063
        %vm1065 = vcmp.eq.f32.partialorder %v1062, %v1064
        %v1066 = vsel %vm1065, %v1061, inf
        %1067 = vmin.xlane.f32.xlu0 %v1066
        %v1068 = vpop.xlane.xlu0 %1067
        %v1069 = vcvt.f32.s32 %v1068
        %v1070 = vcvt.f32.s32 %v1064
        %v1071 = vshll.u32 %v1070, 16
        %v1072 = vadd.s32 %v1071, %v1069
        %v1073 = vand.u32 %v1039, 65535
        %v1074 = vshra.s32 %v1039, 16
        %v1075 = vcvt.s32.f32 %v1073
        %v1076 = vcvt.s32.f32 %v1074
        %1077 = vmin.xlane.f32.xlu0 %v1076
        %v1078 = vpop.xlane.xlu0 %1077
        %vm1079 = vcmp.eq.f32.partialorder %v1076, %v1078
        %v1080 = vsel %vm1079, %v1075, inf
        %1081 = vmin.xlane.f32.xlu0 %v1080
        %v1082 = vpop.xlane.xlu0 %1081
        %v1083 = vcvt.f32.s32 %v1082
        %v1084 = vcvt.f32.s32 %v1078
        %v1085 = vshll.u32 %v1084, 16
        %v1086 = vadd.s32 %v1085, %v1083
        %v1087 = vand.u32 %v1040, 65535
        %v1088 = vshra.s32 %v1040, 16
        %v1089 = vcvt.s32.f32 %v1087
        %v1090 = vcvt.s32.f32 %v1088
        %1091 = vmin.xlane.f32.xlu0 %v1090
        %v1092 = vpop.xlane.xlu0 %1091
        %vm1093 = vcmp.eq.f32.partialorder %v1090, %v1092
        %v1094 = vsel %vm1093, %v1089, inf
        %1095 = vmin.xlane.f32.xlu0 %v1094
        %v1096 = vpop.xlane.xlu0 %1095
        %v1097 = vcvt.f32.s32 %v1096
        %v1098 = vcvt.f32.s32 %v1092
        %v1099 = vshll.u32 %v1098, 16
        %v1100 = vadd.s32 %v1099, %v1097
        %v1101 = vand.u32 %v1041, 65535
        %v1102 = vshra.s32 %v1041, 16
        %v1103 = vcvt.s32.f32 %v1101
        %v1104 = vcvt.s32.f32 %v1102
        %1105 = vmin.xlane.f32.xlu0 %v1104
        %v1106 = vpop.xlane.xlu0 %1105
        %vm1107 = vcmp.eq.f32.partialorder %v1104, %v1106
        %v1108 = vsel %vm1107, %v1103, inf
        %1109 = vmin.xlane.f32.xlu0 %v1108
        %v1110 = vpop.xlane.xlu0 %1109
        %v1111 = vcvt.f32.s32 %v1110
        %v1112 = vcvt.f32.s32 %v1106
        %v1113 = vshll.u32 %v1112, 16
        %v1114 = vadd.s32 %v1113, %v1111
        %v1115 = vand.u32 %v1042, 65535
        %v1116 = vshra.s32 %v1042, 16
        %v1117 = vcvt.s32.f32 %v1115
        %v1118 = vcvt.s32.f32 %v1116
        %1119 = vmin.xlane.f32.xlu0 %v1118
        %v1120 = vpop.xlane.xlu0 %1119
        %vm1121 = vcmp.eq.f32.partialorder %v1118, %v1120
        %v1122 = vsel %vm1121, %v1117, inf
        %1123 = vmin.xlane.f32.xlu0 %v1122
        %v1124 = vpop.xlane.xlu0 %1123
        %v1125 = vcvt.f32.s32 %v1124
        %v1126 = vcvt.f32.s32 %v1120
        %v1127 = vshll.u32 %v1126, 16
        %v1128 = vadd.s32 %v1127, %v1125
        %v1129 = vand.u32 %v1043, 65535
        %v1130 = vshra.s32 %v1043, 16
        %v1131 = vcvt.s32.f32 %v1129
        %v1132 = vcvt.s32.f32 %v1130
        %1133 = vmin.xlane.f32.xlu0 %v1132
        %v1134 = vpop.xlane.xlu0 %1133
        %vm1135 = vcmp.eq.f32.partialorder %v1132, %v1134
        %v1136 = vsel %vm1135, %v1131, inf
        %1137 = vmin.xlane.f32.xlu0 %v1136
        %v1138 = vpop.xlane.xlu0 %1137
        %v1139 = vcvt.f32.s32 %v1138
        %v1140 = vcvt.f32.s32 %v1134
        %v1141 = vshll.u32 %v1140, 16
        %v1142 = vadd.s32 %v1141, %v1139
        %v1143 = vand.u32 %v1044, 65535
        %v1144 = vshra.s32 %v1044, 16
        %v1145 = vcvt.s32.f32 %v1143
        %v1146 = vcvt.s32.f32 %v1144
        %1147 = vmin.xlane.f32.xlu0 %v1146
        %v1148 = vpop.xlane.xlu0 %1147
        %vm1149 = vcmp.eq.f32.partialorder %v1146, %v1148
        %v1150 = vsel %vm1149, %v1145, inf
        %1151 = vmin.xlane.f32.xlu0 %v1150
        %v1152 = vpop.xlane.xlu0 %1151
        %v1153 = vcvt.f32.s32 %v1152
        %v1154 = vcvt.f32.s32 %v1148
        %v1155 = vshll.u32 %v1154, 16
        %v1156 = vadd.s32 %v1155, %v1153
        %vm1157 = vcmp.eq.s32.totalorder %v641, %v1058
        %vm1158 = vcmp.eq.s32.totalorder %v641, %v1072
        %vm1159 = vcmp.eq.s32.totalorder %v641, %v1086
        %vm1160 = vcmp.eq.s32.totalorder %v641, %v1100
        %vm1161 = vcmp.eq.s32.totalorder %v641, %v1114
        %vm1162 = vcmp.eq.s32.totalorder %v641, %v1128
        %vm1163 = vcmp.eq.s32.totalorder %v641, %v1142
        %vm1164 = vcmp.eq.s32.totalorder %v641, %v1156
        %v1165 = vsel %vm1157, %v312, -inf
        %v1166 = vsel %vm1158, %v314, -inf
        %v1167 = vsel %vm1159, %v316, -inf
        %v1168 = vsel %vm1160, %v318, -inf
        %v1169 = vsel %vm1161, %v320, -inf
        %v1170 = vsel %vm1162, %v322, -inf
        %v1171 = vsel %vm1163, %v324, -inf
        %v1172 = vsel %vm1164, %v326, -inf
        %1173 = vmax.xlane.f32.xlu0 %v1165
        %v1174 = vpop.xlane.xlu0 %1173
        %1175 = vmax.xlane.f32.xlu0 %v1166
        %v1176 = vpop.xlane.xlu0 %1175
        %1177 = vmax.xlane.f32.xlu0 %v1167
        %v1178 = vpop.xlane.xlu0 %1177
        %1179 = vmax.xlane.f32.xlu0 %v1168
        %v1180 = vpop.xlane.xlu0 %1179
        %1181 = vmax.xlane.f32.xlu0 %v1169
        %v1182 = vpop.xlane.xlu0 %1181
        %1183 = vmax.xlane.f32.xlu0 %v1170
        %v1184 = vpop.xlane.xlu0 %1183
        %1185 = vmax.xlane.f32.xlu0 %v1171
        %v1186 = vpop.xlane.xlu0 %1185
        %1187 = vmax.xlane.f32.xlu0 %v1172
        %v1188 = vpop.xlane.xlu0 %1187
        %v1189 = vsel %vm1157, -inf, %v1005
        %v1190 = vsel %vm1158, -inf, %v1006
        %v1191 = vsel %vm1159, -inf, %v1007
        %v1192 = vsel %vm1160, -inf, %v1008
        %v1193 = vsel %vm1161, -inf, %v1009
        %v1194 = vsel %vm1162, -inf, %v1010
        %v1195 = vsel %vm1163, -inf, %v1011
        %v1196 = vsel %vm1164, -inf, %v1012
        %vm1197 = vcmp.eq.s32.totalorder %v641, 0
        %v1198 = vsel %vm1197, %v1174, 0.0
        %v1199 = vsel %vm1197, %v1176, 0.0
        %v1200 = vsel %vm1197, %v1178, 0.0
        %v1201 = vsel %vm1197, %v1180, 0.0
        %v1202 = vsel %vm1197, %v1182, 0.0
        %v1203 = vsel %vm1197, %v1184, 0.0
        %v1204 = vsel %vm1197, %v1186, 0.0
        %v1205 = vsel %vm1197, %v1188, 0.0
        %vm1206 = vcmp.eq.s32.totalorder %v641, 2
        %v1207 = vcvt.s32.f32 %v1058
        %v1208 = vcvt.s32.f32 %v1072
        %v1209 = vcvt.s32.f32 %v1086
        %v1210 = vcvt.s32.f32 %v1100
        %v1211 = vcvt.s32.f32 %v1114
        %v1212 = vcvt.s32.f32 %v1128
        %v1213 = vcvt.s32.f32 %v1142
        %v1214 = vcvt.s32.f32 %v1156
        %v1215 = vsel %vm1206, %v1207, %v1198
        %v1216 = vsel %vm1206, %v1208, %v1199
        %v1217 = vsel %vm1206, %v1209, %v1200
        %v1218 = vsel %vm1206, %v1210, %v1201
        %v1219 = vsel %vm1206, %v1211, %v1202
        %v1220 = vsel %vm1206, %v1212, %v1203
        %v1221 = vsel %vm1206, %v1213, %v1204
        %v1222 = vsel %vm1206, %v1214, %v1205
        %1223 = vmax.xlane.f32.xlu0 %v1189
        %v1224 = vpop.xlane.xlu0 %1223
        %1225 = vmax.xlane.f32.xlu0 %v1190
        %v1226 = vpop.xlane.xlu0 %1225
        %1227 = vmax.xlane.f32.xlu0 %v1191
        %v1228 = vpop.xlane.xlu0 %1227
        %1229 = vmax.xlane.f32.xlu0 %v1192
        %v1230 = vpop.xlane.xlu0 %1229
        %1231 = vmax.xlane.f32.xlu0 %v1193
        %v1232 = vpop.xlane.xlu0 %1231
        %1233 = vmax.xlane.f32.xlu0 %v1194
        %v1234 = vpop.xlane.xlu0 %1233
        %1235 = vmax.xlane.f32.xlu0 %v1195
        %v1236 = vpop.xlane.xlu0 %1235
        %1237 = vmax.xlane.f32.xlu0 %v1196
        %v1238 = vpop.xlane.xlu0 %1237
        %vm1239 = vcmp.eq.f32.partialorder %v1189, %v1224
        %vm1240 = vcmp.eq.f32.partialorder %v1190, %v1226
        %vm1241 = vcmp.eq.f32.partialorder %v1191, %v1228
        %vm1242 = vcmp.eq.f32.partialorder %v1192, %v1230
        %vm1243 = vcmp.eq.f32.partialorder %v1193, %v1232
        %vm1244 = vcmp.eq.f32.partialorder %v1194, %v1234
        %vm1245 = vcmp.eq.f32.partialorder %v1195, %v1236
        %vm1246 = vcmp.eq.f32.partialorder %v1196, %v1238
        %v1247 = vsel %vm1239, %v641, 128
        %v1248 = vsel %vm1240, %v641, 128
        %v1249 = vsel %vm1241, %v641, 128
        %v1250 = vsel %vm1242, %v641, 128
        %v1251 = vsel %vm1243, %v641, 128
        %v1252 = vsel %vm1244, %v641, 128
        %v1253 = vsel %vm1245, %v641, 128
        %v1254 = vsel %vm1246, %v641, 128
        %v1255 = vand.u32 %v1247, 65535
        %v1256 = vshra.s32 %v1247, 16
        %v1257 = vcvt.s32.f32 %v1255
        %v1258 = vcvt.s32.f32 %v1256
        %1259 = vmin.xlane.f32.xlu0 %v1258
        %v1260 = vpop.xlane.xlu0 %1259
        %vm1261 = vcmp.eq.f32.partialorder %v1258, %v1260
        %v1262 = vsel %vm1261, %v1257, inf
        %1263 = vmin.xlane.f32.xlu0 %v1262
        %v1264 = vpop.xlane.xlu0 %1263
        %v1265 = vcvt.f32.s32 %v1264
        %v1266 = vcvt.f32.s32 %v1260
        %v1267 = vshll.u32 %v1266, 16
        %v1268 = vadd.s32 %v1267, %v1265
        %v1269 = vand.u32 %v1248, 65535
        %v1270 = vshra.s32 %v1248, 16
        %v1271 = vcvt.s32.f32 %v1269
        %v1272 = vcvt.s32.f32 %v1270
        %1273 = vmin.xlane.f32.xlu0 %v1272
        %v1274 = vpop.xlane.xlu0 %1273
        %vm1275 = vcmp.eq.f32.partialorder %v1272, %v1274
        %v1276 = vsel %vm1275, %v1271, inf
        %1277 = vmin.xlane.f32.xlu0 %v1276
        %v1278 = vpop.xlane.xlu0 %1277
        %v1279 = vcvt.f32.s32 %v1278
        %v1280 = vcvt.f32.s32 %v1274
        %v1281 = vshll.u32 %v1280, 16
        %v1282 = vadd.s32 %v1281, %v1279
        %v1283 = vand.u32 %v1249, 65535
        %v1284 = vshra.s32 %v1249, 16
        %v1285 = vcvt.s32.f32 %v1283
        %v1286 = vcvt.s32.f32 %v1284
        %1287 = vmin.xlane.f32.xlu0 %v1286
        %v1288 = vpop.xlane.xlu0 %1287
        %vm1289 = vcmp.eq.f32.partialorder %v1286, %v1288
        %v1290 = vsel %vm1289, %v1285, inf
        %1291 = vmin.xlane.f32.xlu0 %v1290
        %v1292 = vpop.xlane.xlu0 %1291
        %v1293 = vcvt.f32.s32 %v1292
        %v1294 = vcvt.f32.s32 %v1288
        %v1295 = vshll.u32 %v1294, 16
        %v1296 = vadd.s32 %v1295, %v1293
        %v1297 = vand.u32 %v1250, 65535
        %v1298 = vshra.s32 %v1250, 16
        %v1299 = vcvt.s32.f32 %v1297
        %v1300 = vcvt.s32.f32 %v1298
        %1301 = vmin.xlane.f32.xlu0 %v1300
        %v1302 = vpop.xlane.xlu0 %1301
        %vm1303 = vcmp.eq.f32.partialorder %v1300, %v1302
        %v1304 = vsel %vm1303, %v1299, inf
        %1305 = vmin.xlane.f32.xlu0 %v1304
        %v1306 = vpop.xlane.xlu0 %1305
        %v1307 = vcvt.f32.s32 %v1306
        %v1308 = vcvt.f32.s32 %v1302
        %v1309 = vshll.u32 %v1308, 16
        %v1310 = vadd.s32 %v1309, %v1307
        %v1311 = vand.u32 %v1251, 65535
        %v1312 = vshra.s32 %v1251, 16
        %v1313 = vcvt.s32.f32 %v1311
        %v1314 = vcvt.s32.f32 %v1312
        %1315 = vmin.xlane.f32.xlu0 %v1314
        %v1316 = vpop.xlane.xlu0 %1315
        %vm1317 = vcmp.eq.f32.partialorder %v1314, %v1316
        %v1318 = vsel %vm1317, %v1313, inf
        %1319 = vmin.xlane.f32.xlu0 %v1318
        %v1320 = vpop.xlane.xlu0 %1319
        %v1321 = vcvt.f32.s32 %v1320
        %v1322 = vcvt.f32.s32 %v1316
        %v1323 = vshll.u32 %v1322, 16
        %v1324 = vadd.s32 %v1323, %v1321
        %v1325 = vand.u32 %v1252, 65535
        %v1326 = vshra.s32 %v1252, 16
        %v1327 = vcvt.s32.f32 %v1325
        %v1328 = vcvt.s32.f32 %v1326
        %1329 = vmin.xlane.f32.xlu0 %v1328
        %v1330 = vpop.xlane.xlu0 %1329
        %vm1331 = vcmp.eq.f32.partialorder %v1328, %v1330
        %v1332 = vsel %vm1331, %v1327, inf
        %1333 = vmin.xlane.f32.xlu0 %v1332
        %v1334 = vpop.xlane.xlu0 %1333
        %v1335 = vcvt.f32.s32 %v1334
        %v1336 = vcvt.f32.s32 %v1330
        %v1337 = vshll.u32 %v1336, 16
        %v1338 = vadd.s32 %v1337, %v1335
        %v1339 = vand.u32 %v1253, 65535
        %v1340 = vshra.s32 %v1253, 16
        %v1341 = vcvt.s32.f32 %v1339
        %v1342 = vcvt.s32.f32 %v1340
        %1343 = vmin.xlane.f32.xlu0 %v1342
        %v1344 = vpop.xlane.xlu0 %1343
        %vm1345 = vcmp.eq.f32.partialorder %v1342, %v1344
        %v1346 = vsel %vm1345, %v1341, inf
        %1347 = vmin.xlane.f32.xlu0 %v1346
        %v1348 = vpop.xlane.xlu0 %1347
        %v1349 = vcvt.f32.s32 %v1348
        %v1350 = vcvt.f32.s32 %v1344
        %v1351 = vshll.u32 %v1350, 16
        %v1352 = vadd.s32 %v1351, %v1349
        %v1353 = vand.u32 %v1254, 65535
        %v1354 = vshra.s32 %v1254, 16
        %v1355 = vcvt.s32.f32 %v1353
        %v1356 = vcvt.s32.f32 %v1354
        %1357 = vmin.xlane.f32.xlu0 %v1356
        %v1358 = vpop.xlane.xlu0 %1357
        %vm1359 = vcmp.eq.f32.partialorder %v1356, %v1358
        %v1360 = vsel %vm1359, %v1355, inf
        %1361 = vmin.xlane.f32.xlu0 %v1360
        %v1362 = vpop.xlane.xlu0 %1361
        %v1363 = vcvt.f32.s32 %v1362
        %v1364 = vcvt.f32.s32 %v1358
        %v1365 = vshll.u32 %v1364, 16
        %v1366 = vadd.s32 %v1365, %v1363
        %vm1367 = vcmp.eq.s32.totalorder %v641, %v1268
        %vm1368 = vcmp.eq.s32.totalorder %v641, %v1282
        %vm1369 = vcmp.eq.s32.totalorder %v641, %v1296
        %vm1370 = vcmp.eq.s32.totalorder %v641, %v1310
        %vm1371 = vcmp.eq.s32.totalorder %v641, %v1324
        %vm1372 = vcmp.eq.s32.totalorder %v641, %v1338
        %vm1373 = vcmp.eq.s32.totalorder %v641, %v1352
        %vm1374 = vcmp.eq.s32.totalorder %v641, %v1366
        %v1375 = vsel %vm1367, %v312, -inf
        %v1376 = vsel %vm1368, %v314, -inf
        %v1377 = vsel %vm1369, %v316, -inf
        %v1378 = vsel %vm1370, %v318, -inf
        %v1379 = vsel %vm1371, %v320, -inf
        %v1380 = vsel %vm1372, %v322, -inf
        %v1381 = vsel %vm1373, %v324, -inf
        %v1382 = vsel %vm1374, %v326, -inf
        %1383 = vmax.xlane.f32.xlu0 %v1375
        %v1384 = vpop.xlane.xlu0 %1383
        %1385 = vmax.xlane.f32.xlu0 %v1376
        %v1386 = vpop.xlane.xlu0 %1385
        %1387 = vmax.xlane.f32.xlu0 %v1377
        %v1388 = vpop.xlane.xlu0 %1387
        %1389 = vmax.xlane.f32.xlu0 %v1378
        %v1390 = vpop.xlane.xlu0 %1389
        %1391 = vmax.xlane.f32.xlu0 %v1379
        %v1392 = vpop.xlane.xlu0 %1391
        %1393 = vmax.xlane.f32.xlu0 %v1380
        %v1394 = vpop.xlane.xlu0 %1393
        %1395 = vmax.xlane.f32.xlu0 %v1381
        %v1396 = vpop.xlane.xlu0 %1395
        %1397 = vmax.xlane.f32.xlu0 %v1382
        %v1398 = vpop.xlane.xlu0 %1397
        %vm1399 = vcmp.eq.s32.totalorder %v641, 1
        %v1400 = vsel %vm1399, %v1384, %v1215
        %v1401 = vsel %vm1399, %v1386, %v1216
        %v1402 = vsel %vm1399, %v1388, %v1217
        %v1403 = vsel %vm1399, %v1390, %v1218
        %v1404 = vsel %vm1399, %v1392, %v1219
        %v1405 = vsel %vm1399, %v1394, %v1220
        %v1406 = vsel %vm1399, %v1396, %v1221
        %v1407 = vsel %vm1399, %v1398, %v1222
        %vm1408 = vcmp.eq.s32.totalorder %v641, 3
        %v1409 = vcvt.s32.f32 %v1268
        %v1410 = vcvt.s32.f32 %v1282
        %v1411 = vcvt.s32.f32 %v1296
        %v1412 = vcvt.s32.f32 %v1310
        %v1413 = vcvt.s32.f32 %v1324
        %v1414 = vcvt.s32.f32 %v1338
        %v1415 = vcvt.s32.f32 %v1352
        %v1416 = vcvt.s32.f32 %v1366
        %v1417 = vsel %vm1408, %v1409, %v1400
        %v1418 = vsel %vm1408, %v1410, %v1401
        %v1419 = vsel %vm1408, %v1411, %v1402
        %v1420 = vsel %vm1408, %v1412, %v1403
        %v1421 = vsel %vm1408, %v1413, %v1404
        %v1422 = vsel %vm1408, %v1414, %v1405
        %v1423 = vsel %vm1408, %v1415, %v1406
        %v1424 = vsel %vm1408, %v1416, %v1407
        %1425 = vst [vmem:[%s164] sm:$0xff] %v1417
        %1426 = vst [vmem:[%s164 + $0x8] sm:$0xff] %v1418
        %1427 = vst [vmem:[%s164 + $0x10] sm:$0xff] %v1419
        %1428 = vst [vmem:[%s164 + $0x18] sm:$0xff] %v1420
        %1429 = vst [vmem:[%s164 + $0x20] sm:$0xff] %v1421
        %1430 = vst [vmem:[%s164 + $0x28] sm:$0xff] %v1422
        %1431 = vst [vmem:[%s164 + $0x30] sm:$0xff] %v1423
        %1432 = vst [vmem:[%s164 + $0x38] sm:$0xff] %v1424
        %s1433 = sand.u32 %s93, 1
        %s1434 = scalar_lea.sflag [#allocation3], %s1433
        %s1435 = sand.u32 %s93, 1
        %s1436 = smul.addr %s1435, 64
        %s1437 = scalar_lea.vmem [#allocation2], %s1436
        // Predicated region
        $region33: #{tpu_custom_call.1} parent=31 // pred_check
          %p1438 = pneg %p103
        $region34: #{tpu_custom_call.1} parent=31 // pred_check_branch
          %1440 = sbr.rel (%p1438) target = $region36
        $region35: #{tpu_custom_call.1} parent=31 // pred_region
          %s1441 = smul.u32 8, %s17
          %s1443 = ssub.s32 1024, 1024
          %1444 = vsyncadd %s1434, %s1443
          %s1445 = smul.addr %s1441, 128
          %s1446 = scalar_lea.hbm %s3, %s1445
          %s1447 = sshll.u32 %s1437, 4
          %s1448 = int_to_ptr.vmem [resolvable:$true] %s1447
          %1453 = dma.vmem_to_hbm [thread:$0]  %s1448, 1024, %s1446, %s1434, 128, 128, 8
        $region36: #{tpu_custom_call.1} parent=31 // pred_fallthru
          _
      $region32: #{tpu_custom_call.1} parent=5 // pred_fallthru
        _
      %p1454 = scmp.le.s32.totalorder 2, %s12
      // Predicated region
      $region37: #{tpu_custom_call.1} parent=5 // pred_check
        %p1455 = pneg %p1454
      $region38: #{tpu_custom_call.1} parent=5 // pred_check_branch
        %1457 = sbr.rel (%p1455) target = $region40
      $region39: #{tpu_custom_call.1} parent=5 // pred_region
        %s1458 = ssub.s32 %s12, 2
        // Predicated region
        $region41: #{tpu_custom_call.1} parent=39 // pred_check
          %p1459 = pneg %p109
        $region42: #{tpu_custom_call.1} parent=39 // pred_check_branch
          %1461 = sbr.rel (%p1459) target = $region44
        $region43: #{tpu_custom_call.1} parent=39 // pred_region
          %s1462 = sand.u32 %s94, 1
          %s1463 = scalar_lea.sflag [#allocation3], %s1462
          %s1464 = sand.u32 %s94, 1
          %s1465 = smul.addr %s1464, 64
          %s1466 = scalar_lea.vmem [#allocation2], %s1465
          %1467 = dma.done %s1463, 1024
        $region44: #{tpu_custom_call.1} parent=39 // pred_fallthru
          _
      $region40: #{tpu_custom_call.1} parent=5 // pred_fallthru
        _
    $region6: #{tpu_custom_call.1} parent=1 // loop_footer
      %s16 = sadd.s32 1, %s12
    $region7: #{tpu_custom_call.1} parent=1 // loop_footer_branch
      %11 = sbr.rel target = $region3
    $region8: #{tpu_custom_call.1} parent=1 // loop_exit
      _
    %1468 = vsyncpa [#allocation3], 1
    %s1469 = scalar_lea.sflag [#allocation3], 1
    %1470 = vsyncpa %s1469, 1

</llo_original>
